<compile_context>
chip_gen: v7x
topology: tpu7x:2x2x1
jax: 0.10.0
libtpu: 0.0.40
codegen_flags: <defaults>
</compile_context>

<pallas_src>
import math
import functools

import jax
import jax.numpy as jnp
from jax.experimental import pallas as pl
from jax.experimental.pallas import tpu as pltpu  # noqa: F401  (TPU tuning hooks)

# ----------------------------- config (small) -----------------------------
SEQ_LEN = 16
PRED_LEN = 8
PATCH_SIZE = 4
STRIDE = 4
D_MODEL = 32
N_HEAD = 4
GPT_LAYERS = 2
PATCH_NUM = (SEQ_LEN - PATCH_SIZE) // STRIDE + 1 + 1  # +1 from ReplicationPad1d((0, stride))
N_POS = 32
EPS_LN = 1e-5
EPS_REVIN = 1e-5

LANES = 128
PRED_ROWS = 16                       # predict_linear weight block rows (bf16-tile aligned)
LAYER_W_ROWS = 7 * D_MODEL           # qkv(D) + proj(D) + fc(D) + pr(4D) rows per layer = 224
BIAS_ROWS_PER_LAYER = 8


# ----------------------------- fused Pallas kernel -----------------------------
def fused_gpt4ts_kernel(xt_ref, xp_ref, wpe_ref, ab_ref, bs_ref, ws_ref, o_ref,
                        *, n_head, n_layers, patch_num):
    """Whole GPT4TS forward on VMEM-resident data (no grid).

    xt_ref : (R, L)  f32   raw series, replicated n-major (row n*BM+s = series s)
    xp_ref : (R, 16) f32   unfolded patches (cols >= PATCH_SIZE are zero padding)
    wpe_ref: (R, D)  f32   positional embedding per token row
    ab_ref : (R, R)  f32   additive block-diag causal attention bias (precomputed)
    bs_ref : (24,128) f32  packed biases / LN gains (one row each, zero padded)
    ws_ref : (624,128) bf16 packed weight matrices (zero padded to 128 lanes)
    o_ref  : (BM,128) f32  lane-dense output slab (first PRED_LEN lanes meaningful)
    """
    f32 = jnp.float32
    bf16 = jnp.bfloat16

    N = patch_num
    BM = o_ref.shape[0]
    D = wpe_ref.shape[1]
    dh = D // n_head
    R = BM * N

    # ---- RevIN statistics, computed directly per token row (n-major replication) ----
    xt = xt_ref[...]                                     # (R, L)
    mean_r = jnp.mean(xt, axis=-1, keepdims=True)        # (R, 1)
    xc = xt - mean_r
    var_r = jnp.mean(xc * xc, axis=-1, keepdims=True)    # unbiased=False
    inv_std_r = jax.lax.rsqrt(var_r + EPS_REVIN)         # (R, 1)
    mean_s = mean_r[:BM]                                 # (BM, 1) rows 0..BM-1 == series 0..BM-1
    std_s = jnp.sqrt(var_r[:BM] + EPS_REVIN)             # (BM, 1) for de-norm

    bs = bs_ref[...]                                     # (24, 128) f32, load once

    def brow(i):
        return bs[i:i + 1, :]                            # (1, 128)

    # ---- normalize patches, predict_linear (P -> D), + positional embedding ----
    xn = (xp_ref[...] - mean_r) * inv_std_r              # (R, 16); junk cols hit zero weight rows
    predw = ws_ref[0:PRED_ROWS, :]                       # (16, 128) bf16
    h = jnp.dot(xn.astype(bf16), predw, preferred_element_type=f32)   # (R, 128)
    h = (h + brow(0))[:, :D] + wpe_ref[...]              # (R, D) f32

    att_bias = ab_ref[...]                               # (R, R)
    inv_sqrt_dh = 1.0 / math.sqrt(dh)
    gelu_c = math.sqrt(2.0 / math.pi)

    def layer_norm(x, g, b):
        mu = jnp.mean(x, axis=-1, keepdims=True)
        v = jnp.mean((x - mu) ** 2, axis=-1, keepdims=True)
        return (x - mu) * jax.lax.rsqrt(v + EPS_LN) * g + b

    # ---- GPT-2 blocks, all sequences processed together as one (R, D) slab ----
    for li in range(n_layers):
        wb = PRED_ROWS + li * LAYER_W_ROWS
        bb = 1 + li * BIAS_ROWS_PER_LAYER
        ln1_g, ln1_b = brow(bb + 0)[:, :D], brow(bb + 1)[:, :D]
        b_qkv, b_proj = brow(bb + 2), brow(bb + 3)          # (1,128), zero padded
        ln2_g, ln2_b = brow(bb + 4)[:, :D], brow(bb + 5)[:, :D]
        b_fc, b_pr = brow(bb + 6), brow(bb + 7)
        w_qkv = ws_ref[wb:wb + D, :]                        # (32,128) bf16 (96 real cols)
        w_proj = ws_ref[wb + D:wb + 2 * D, :]               # (32,128)      (32 real cols)
        w_fc = ws_ref[wb + 2 * D:wb + 3 * D, :]             # (32,128)
        w_pr = ws_ref[wb + 3 * D:wb + 7 * D, :]             # (128,128)     (32 real cols)

        # -- attention sub-block (pre-LN, block-diag causal via additive bias) --
        hn = layer_norm(h, ln1_g, ln1_b)
        qkv = jnp.dot(hn.astype(bf16), w_qkv, preferred_element_type=f32) + b_qkv  # (R,128)
        heads = []
        for hh in range(n_head):
            qh = qkv[:, hh * dh:(hh + 1) * dh]
            kh = qkv[:, D + hh * dh:D + (hh + 1) * dh]
            vh = qkv[:, 2 * D + hh * dh:2 * D + (hh + 1) * dh]
            s = jnp.dot(qh.astype(bf16), kh.T.astype(bf16),
                        preferred_element_type=f32) * inv_sqrt_dh + att_bias
            s = s - jnp.max(s, axis=-1, keepdims=True)
            p = jnp.exp(s)                                                 # f32 EUP
            p = p * pl.reciprocal(jnp.sum(p, axis=-1, keepdims=True), approx=True)
            heads.append(jnp.dot(p.astype(bf16), vh.astype(bf16),
                                 preferred_element_type=f32))              # (R, dh)
        attn = jnp.concatenate(heads, axis=-1)                             # (R, D)
        proj = jnp.dot(attn.astype(bf16), w_proj, preferred_element_type=f32) + b_proj
        h = h + proj[:, :D]

        # -- MLP sub-block (pre-LN, gelu_new) --
        hn2 = layer_norm(h, ln2_g, ln2_b)
        ff = jnp.dot(hn2.astype(bf16), w_fc, preferred_element_type=f32) + b_fc    # (R,128)
        ff = 0.5 * ff * (1.0 + jnp.tanh(gelu_c * (ff + 0.044715 * ff ** 3)))       # f32
        ff2 = jnp.dot(ff.astype(bf16), w_pr, preferred_element_type=f32) + b_pr    # (R,128)
        h = h + ff2[:, :D]

    # ---- final LayerNorm ----
    bl = 1 + n_layers * BIAS_ROWS_PER_LAYER
    hf = layer_norm(h, brow(bl)[:, :D], brow(bl + 1)[:, :D])                # (R, D)

    # ---- out_layer: n-major rows -> N static contiguous slices, one matmul each ----
    ob = PRED_ROWS + n_layers * LAYER_W_ROWS
    out = jnp.zeros((BM, LANES), f32)
    for n in range(N):
        gn = hf[n * BM:(n + 1) * BM, :]                                     # (BM, D)
        wn = ws_ref[ob + n * D:ob + (n + 1) * D, :]                         # (D, 128) bf16
        out = out + jnp.dot(gn.astype(bf16), wn, preferred_element_type=f32)
    out = out + brow(bl + 2)                                                # out_b (padded)

    # ---- de-normalize; lane-dense write (sliced to pred_len in XLA) ----
    o_ref[...] = (out * std_s + mean_s).astype(o_ref.dtype)


# ----------------------------- parameters -----------------------------
def init_params(key):
    # TODO(synk): pretrained GPT-2 weights replaced with deterministic random init.
    def nrm(k, shape, scale=0.02):
        return scale * jax.random.normal(k, shape, dtype=jnp.float32)

    keys = iter(jax.random.split(key, 64))
    p = {}
    p['wpe'] = nrm(next(keys), (N_POS, D_MODEL))
    p['pred_w'] = nrm(next(keys), (PATCH_SIZE, D_MODEL))
    p['pred_b'] = jnp.zeros((1, D_MODEL), jnp.float32)
    layers = []
    for _ in range(GPT_LAYERS):
        layers.append(dict(
            ln1_g=jnp.ones((1, D_MODEL), jnp.float32),
            ln1_b=jnp.zeros((1, D_MODEL), jnp.float32),
            w_qkv=nrm(next(keys), (D_MODEL, 3 * D_MODEL)),
            b_qkv=jnp.zeros((1, 3 * D_MODEL), jnp.float32),
            w_proj=nrm(next(keys), (D_MODEL, D_MODEL)),
            b_proj=jnp.zeros((1, D_MODEL), jnp.float32),
            ln2_g=jnp.ones((1, D_MODEL), jnp.float32),
            ln2_b=jnp.zeros((1, D_MODEL), jnp.float32),
            w_fc=nrm(next(keys), (D_MODEL, 4 * D_MODEL)),
            b_fc=jnp.zeros((1, 4 * D_MODEL), jnp.float32),
            w_pr=nrm(next(keys), (4 * D_MODEL, D_MODEL)),
            b_pr=jnp.zeros((1, D_MODEL), jnp.float32),
        ))
    p['layers'] = layers
    p['lnf_g'] = jnp.ones((1, D_MODEL), jnp.float32)
    p['lnf_b'] = jnp.zeros((1, D_MODEL), jnp.float32)
    p['out_w'] = nrm(next(keys), (D_MODEL * PATCH_NUM, PRED_LEN))
    p['out_b'] = jnp.zeros((1, PRED_LEN), jnp.float32)
    return p


def pack_params(params):
    """Pack all weights into one bf16 (624,128) slab and all biases/gains into one
    f32 (24,128) slab (done once, outside the kernel)."""
    def padw(w):                                   # pad cols to 128
        r, c = w.shape
        return jnp.pad(w, ((0, 0), (0, LANES - c)))

    blocks = [jnp.pad(params['pred_w'],
                      ((0, PRED_ROWS - PATCH_SIZE), (0, LANES - D_MODEL)))]
    for lp in params['layers']:
        blocks += [padw(lp['w_qkv']), padw(lp['w_proj']), padw(lp['w_fc']), padw(lp['w_pr'])]
    blocks.append(padw(params['out_w']))
    w_slab = jnp.concatenate(blocks, axis=0).astype(jnp.bfloat16)     # (624, 128)

    def padb(b):
        b = b.reshape(1, -1)
        return jnp.pad(b, ((0, 0), (0, LANES - b.shape[1])))

    brows = [padb(params['pred_b'])]
    for lp in params['layers']:
        brows += [padb(lp['ln1_g']), padb(lp['ln1_b']), padb(lp['b_qkv']), padb(lp['b_proj']),
                  padb(lp['ln2_g']), padb(lp['ln2_b']), padb(lp['b_fc']), padb(lp['b_pr'])]
    brows += [padb(params['lnf_g']), padb(params['lnf_b']), padb(params['out_b'])]
    b_slab = jnp.concatenate(brows, axis=0)
    b_slab = jnp.pad(b_slab, ((0, (-b_slab.shape[0]) % 8), (0, 0))).astype(jnp.float32)

    return {'w_slab': w_slab, 'b_slab': b_slab, 'wpe': params['wpe']}


# ----------------------------- forward -----------------------------
@jax.jit
def forward(x_enc, packed):
    B, L, M = x_enc.shape
    BM = B * M
    N = PATCH_NUM
    R = N * BM

    # Tiny layout glue (one XLA fusion) feeding the single fused Pallas kernel:
    #   b l m -> (b m) l, ReplicationPad1d((0, stride)), unfold, n-major row order.
    x_t = jnp.transpose(x_enc, (0, 2, 1)).reshape(BM, L)                     # (BM, L)
    x_pad = jnp.concatenate(
        [x_t, jnp.repeat(x_t[:, -1:], STRIDE, axis=-1)], axis=-1)            # (BM, L+S)
    idx = (jnp.arange(PATCH_NUM)[:, None] * STRIDE
           + jnp.arange(PATCH_SIZE)[None, :])
    x_patch = x_pad[:, idx]                                                  # (BM, N, P)
    x_patch = jnp.transpose(x_patch, (1, 0, 2)).reshape(R, PATCH_SIZE)       # n-major
    x_patch = jnp.pad(x_patch, ((0, 0), (0, PRED_ROWS - PATCH_SIZE)))        # (R, 16)

    x_rep = jnp.tile(x_t, (N, 1))                                            # (R, L) n-major
    wpe_tiled = jnp.repeat(packed['wpe'][:N], BM, axis=0)                    # (R, D) n-major

    # Data-independent additive attention bias (constant-folded by XLA):
    # allowed iff same series (row % BM == col % BM) and causal over patch index.
    n_idx = jnp.arange(R) // BM
    s_idx = jnp.arange(R) % BM
    allowed = (s_idx[:, None] == s_idx[None, :]) & (n_idx[None, :] <= n_idx[:, None])
    att_bias = jnp.where(allowed, 0.0, -1e30).astype(jnp.float32)            # (R, R)

    # Single fused kernel: no grid, everything resident in VMEM.
    # TODO(synk): dropout layers of GPT2 are omitted (inference/eval semantics).
    out = pl.pallas_call(
        functools.partial(fused_gpt4ts_kernel, n_head=N_HEAD,
                          n_layers=GPT_LAYERS, patch_num=N),
        out_shape=jax.ShapeDtypeStruct((BM, LANES), jnp.float32),
    )(x_rep, x_patch, wpe_tiled, att_bias, packed['b_slab'], packed['w_slab'])

    out = out[:, :PRED_LEN].astype(x_enc.dtype)                              # (BM, pred_len)
    out = out.reshape(B, M, PRED_LEN).transpose(0, 2, 1)                     # (B, pred_len, M)
    return out  # [:, -PRED_LEN:, :] is a no-op (already pred_len rows)


# ----------------------------- main -----------------------------
if __name__ == "__main__":
    key = jax.random.PRNGKey(0)
    pkey, xkey = jax.random.split(key)
    params = init_params(pkey)
    packed = pack_params(params)

    B, M = 2, 4
    x_enc = jax.random.normal(xkey, (B, SEQ_LEN, M), dtype=jnp.float32)

    out = forward(x_enc, packed)
    out = jax.block_until_ready(out)
    assert out.shape == (B, PRED_LEN, M), out.shape
    assert jnp.all(jnp.isfinite(out))
    print("KERNEL_OK")
</pallas_src>

<mosaic_0001>
module attributes {stable_mosaic.version = 11 : i64} {
  func.func @fused_gpt4ts_kernel(%arg0: memref<40x16xf32, #tpu.memory_space<vmem>>, %arg1: memref<40x16xf32, #tpu.memory_space<vmem>>, %arg2: memref<40x32xf32, #tpu.memory_space<vmem>>, %arg3: memref<40x40xf32, #tpu.memory_space<vmem>>, %arg4: memref<24x128xf32, #tpu.memory_space<vmem>>, %arg5: memref<624x128xbf16, #tpu.memory_space<vmem>>, %arg6: memref<8x128xf32, #tpu.memory_space<vmem>>) attributes {dimension_semantics = [], scalar_prefetch = 0 : i64, scratch_operands = 0 : i64, tpu.core_type = #tpu.core_type<tc>} {
    %c0 = arith.constant 0 : index
    %c0_0 = arith.constant 0 : index
    %0 = vector.load %arg0[%c0, %c0_0] : memref<40x16xf32, #tpu.memory_space<vmem>>, vector<40x16xf32>
    %cst = arith.constant dense<0.000000e+00> : vector<40xf32>
    %1 = vector.multi_reduction <add>, %0, %cst [1] : vector<40x16xf32> to vector<40xf32>
    %2 = vector.shape_cast %1 : vector<40xf32> to vector<40x1xf32>
    %cst_1 = arith.constant 1.600000e+01 : f32
    %3 = vector.broadcast %cst_1 : f32 to vector<40x1xf32>
    %4 = arith.divf %2, %3 : vector<40x1xf32>
    %5 = vector.broadcast %4 : vector<40x1xf32> to vector<40x16xf32>
    %6 = arith.subf %0, %5 : vector<40x16xf32>
    %7 = arith.mulf %6, %6 : vector<40x16xf32>
    %cst_2 = arith.constant dense<0.000000e+00> : vector<40xf32>
    %8 = vector.multi_reduction <add>, %7, %cst_2 [1] : vector<40x16xf32> to vector<40xf32>
    %9 = vector.shape_cast %8 : vector<40xf32> to vector<40x1xf32>
    %cst_3 = arith.constant 1.600000e+01 : f32
    %10 = vector.broadcast %cst_3 : f32 to vector<40x1xf32>
    %11 = arith.divf %9, %10 : vector<40x1xf32>
    %cst_4 = arith.constant 9.99999974E-6 : f32
    %12 = vector.broadcast %cst_4 : f32 to vector<40x1xf32>
    %13 = arith.addf %11, %12 : vector<40x1xf32>
    %14 = math.rsqrt %13 : vector<40x1xf32>
    %15 = vector.extract_strided_slice %4 {offsets = [0, 0], sizes = [8, 1], strides = [1, 1]} : vector<40x1xf32> to vector<8x1xf32>
    %16 = vector.extract_strided_slice %11 {offsets = [0, 0], sizes = [8, 1], strides = [1, 1]} : vector<40x1xf32> to vector<8x1xf32>
    %cst_5 = arith.constant 9.99999974E-6 : f32
    %17 = vector.broadcast %cst_5 : f32 to vector<8x1xf32>
    %18 = arith.addf %16, %17 : vector<8x1xf32>
    %19 = math.sqrt %18 : vector<8x1xf32>
    %c0_6 = arith.constant 0 : index
    %c0_7 = arith.constant 0 : index
    %20 = vector.load %arg4[%c0_6, %c0_7] : memref<24x128xf32, #tpu.memory_space<vmem>>, vector<24x128xf32>
    %c0_8 = arith.constant 0 : index
    %c0_9 = arith.constant 0 : index
    %21 = vector.load %arg1[%c0_8, %c0_9] : memref<40x16xf32, #tpu.memory_space<vmem>>, vector<40x16xf32>
    %22 = vector.broadcast %4 : vector<40x1xf32> to vector<40x16xf32>
    %23 = arith.subf %21, %22 : vector<40x16xf32>
    %24 = vector.broadcast %14 : vector<40x1xf32> to vector<40x16xf32>
    %25 = arith.mulf %23, %24 : vector<40x16xf32>
    %c0_10 = arith.constant 0 : index
    %c0_11 = arith.constant 0 : index
    %26 = vector.load %arg5[%c0_10, %c0_11] : memref<624x128xbf16, #tpu.memory_space<vmem>>, vector<16x128xbf16>
    %27 = arith.truncf %25 : vector<40x16xf32> to vector<40x16xbf16>
    %cst_12 = arith.constant dense<0.000000e+00> : vector<40x128xf32>
    %28 = tpu.matmul %27, %26, %cst_12 {dimension_numbers = #tpu.dot_dimension_numbers<[1], [0], [0], [1], [0, 0, 1, 1], [], []>} : vector<40x16xbf16>, vector<16x128xbf16>, vector<40x128xf32> -> vector<40x128xf32>
    %29 = vector.extract_strided_slice %20 {offsets = [0, 0], sizes = [1, 128], strides = [1, 1]} : vector<24x128xf32> to vector<1x128xf32>
    %30 = vector.broadcast %29 : vector<1x128xf32> to vector<40x128xf32>
    %31 = arith.addf %28, %30 : vector<40x128xf32>
    %32 = vector.extract_strided_slice %31 {offsets = [0, 0], sizes = [40, 32], strides = [1, 1]} : vector<40x128xf32> to vector<40x32xf32>
    %c0_13 = arith.constant 0 : index
    %c0_14 = arith.constant 0 : index
    %33 = vector.load %arg2[%c0_13, %c0_14] : memref<40x32xf32, #tpu.memory_space<vmem>>, vector<40x32xf32>
    %34 = arith.addf %32, %33 : vector<40x32xf32>
    %c0_15 = arith.constant 0 : index
    %c0_16 = arith.constant 0 : index
    %35 = vector.load %arg3[%c0_15, %c0_16] : memref<40x40xf32, #tpu.memory_space<vmem>>, vector<40x40xf32>
    %36 = vector.extract_strided_slice %20 {offsets = [1, 0], sizes = [1, 128], strides = [1, 1]} : vector<24x128xf32> to vector<1x128xf32>
    %37 = vector.extract_strided_slice %36 {offsets = [0, 0], sizes = [1, 32], strides = [1, 1]} : vector<1x128xf32> to vector<1x32xf32>
    %38 = vector.extract_strided_slice %20 {offsets = [2, 0], sizes = [1, 128], strides = [1, 1]} : vector<24x128xf32> to vector<1x128xf32>
    %39 = vector.extract_strided_slice %38 {offsets = [0, 0], sizes = [1, 32], strides = [1, 1]} : vector<1x128xf32> to vector<1x32xf32>
    %40 = vector.extract_strided_slice %20 {offsets = [3, 0], sizes = [1, 128], strides = [1, 1]} : vector<24x128xf32> to vector<1x128xf32>
    %41 = vector.extract_strided_slice %20 {offsets = [4, 0], sizes = [1, 128], strides = [1, 1]} : vector<24x128xf32> to vector<1x128xf32>
    %42 = vector.extract_strided_slice %20 {offsets = [5, 0], sizes = [1, 128], strides = [1, 1]} : vector<24x128xf32> to vector<1x128xf32>
    %43 = vector.extract_strided_slice %42 {offsets = [0, 0], sizes = [1, 32], strides = [1, 1]} : vector<1x128xf32> to vector<1x32xf32>
    %44 = vector.extract_strided_slice %20 {offsets = [6, 0], sizes = [1, 128], strides = [1, 1]} : vector<24x128xf32> to vector<1x128xf32>
    %45 = vector.extract_strided_slice %44 {offsets = [0, 0], sizes = [1, 32], strides = [1, 1]} : vector<1x128xf32> to vector<1x32xf32>
    %46 = vector.extract_strided_slice %20 {offsets = [7, 0], sizes = [1, 128], strides = [1, 1]} : vector<24x128xf32> to vector<1x128xf32>
    %47 = vector.extract_strided_slice %20 {offsets = [8, 0], sizes = [1, 128], strides = [1, 1]} : vector<24x128xf32> to vector<1x128xf32>
    %c16 = arith.constant 16 : index
    %c0_17 = arith.constant 0 : index
    %48 = vector.load %arg5[%c16, %c0_17] : memref<624x128xbf16, #tpu.memory_space<vmem>>, vector<32x128xbf16>
    %c48 = arith.constant 48 : index
    %c0_18 = arith.constant 0 : index
    %49 = vector.load %arg5[%c48, %c0_18] : memref<624x128xbf16, #tpu.memory_space<vmem>>, vector<32x128xbf16>
    %c80 = arith.constant 80 : index
    %c0_19 = arith.constant 0 : index
    %50 = vector.load %arg5[%c80, %c0_19] : memref<624x128xbf16, #tpu.memory_space<vmem>>, vector<32x128xbf16>
    %c112 = arith.constant 112 : index
    %c0_20 = arith.constant 0 : index
    %51 = vector.load %arg5[%c112, %c0_20] : memref<624x128xbf16, #tpu.memory_space<vmem>>, vector<128x128xbf16>
    %cst_21 = arith.constant dense<0.000000e+00> : vector<40xf32>
    %52 = vector.multi_reduction <add>, %34, %cst_21 [1] : vector<40x32xf32> to vector<40xf32>
    %53 = vector.shape_cast %52 : vector<40xf32> to vector<40x1xf32>
    %cst_22 = arith.constant 3.200000e+01 : f32
    %54 = vector.broadcast %cst_22 : f32 to vector<40x1xf32>
    %55 = arith.divf %53, %54 : vector<40x1xf32>
    %56 = vector.broadcast %55 : vector<40x1xf32> to vector<40x32xf32>
    %57 = arith.subf %34, %56 : vector<40x32xf32>
    %58 = arith.mulf %57, %57 : vector<40x32xf32>
    %cst_23 = arith.constant dense<0.000000e+00> : vector<40xf32>
    %59 = vector.multi_reduction <add>, %58, %cst_23 [1] : vector<40x32xf32> to vector<40xf32>
    %60 = vector.shape_cast %59 : vector<40xf32> to vector<40x1xf32>
    %cst_24 = arith.constant 3.200000e+01 : f32
    %61 = vector.broadcast %cst_24 : f32 to vector<40x1xf32>
    %62 = arith.divf %60, %61 : vector<40x1xf32>
    %63 = vector.broadcast %55 : vector<40x1xf32> to vector<40x32xf32>
    %64 = arith.subf %34, %63 : vector<40x32xf32>
    %cst_25 = arith.constant 9.99999974E-6 : f32
    %65 = vector.broadcast %cst_25 : f32 to vector<40x1xf32>
    %66 = arith.addf %62, %65 : vector<40x1xf32>
    %67 = math.rsqrt %66 : vector<40x1xf32>
    %68 = vector.broadcast %67 : vector<40x1xf32> to vector<40x32xf32>
    %69 = arith.mulf %64, %68 : vector<40x32xf32>
    %70 = vector.broadcast %37 : vector<1x32xf32> to vector<40x32xf32>
    %71 = arith.mulf %69, %70 : vector<40x32xf32>
    %72 = vector.broadcast %39 : vector<1x32xf32> to vector<40x32xf32>
    %73 = arith.addf %71, %72 : vector<40x32xf32>
    %74 = arith.truncf %73 : vector<40x32xf32> to vector<40x32xbf16>
    %cst_26 = arith.constant dense<0.000000e+00> : vector<40x128xf32>
    %75 = tpu.matmul %74, %48, %cst_26 {dimension_numbers = #tpu.dot_dimension_numbers<[1], [0], [0], [1], [0, 0, 1, 1], [], []>} : vector<40x32xbf16>, vector<32x128xbf16>, vector<40x128xf32> -> vector<40x128xf32>
    %76 = vector.broadcast %40 : vector<1x128xf32> to vector<40x128xf32>
    %77 = arith.addf %75, %76 : vector<40x128xf32>
    %78 = vector.extract_strided_slice %77 {offsets = [0, 0], sizes = [40, 8], strides = [1, 1]} : vector<40x128xf32> to vector<40x8xf32>
    %79 = vector.extract_strided_slice %77 {offsets = [0, 32], sizes = [40, 8], strides = [1, 1]} : vector<40x128xf32> to vector<40x8xf32>
    %80 = vector.extract_strided_slice %77 {offsets = [0, 64], sizes = [40, 8], strides = [1, 1]} : vector<40x128xf32> to vector<40x8xf32>
    %81 = arith.truncf %78 : vector<40x8xf32> to vector<40x8xbf16>
    %82 = tpu.transpose %79, [1, 0] : vector<40x8xf32> -> vector<8x40xf32>
    %83 = arith.truncf %82 : vector<8x40xf32> to vector<8x40xbf16>
    %cst_27 = arith.constant dense<0.000000e+00> : vector<40x40xf32>
    %84 = tpu.matmul %81, %83, %cst_27 {dimension_numbers = #tpu.dot_dimension_numbers<[1], [0], [0], [1], [0, 0, 1, 1], [], []>} : vector<40x8xbf16>, vector<8x40xbf16>, vector<40x40xf32> -> vector<40x40xf32>
    %cst_28 = arith.constant 0.353553385 : f32
    %85 = vector.broadcast %cst_28 : f32 to vector<40x40xf32>
    %86 = arith.mulf %84, %85 : vector<40x40xf32>
    %87 = arith.addf %86, %35 : vector<40x40xf32>
    %cst_29 = arith.constant dense<0xFF800000> : vector<40xf32>
    %88 = vector.multi_reduction <maximumf>, %87, %cst_29 [1] : vector<40x40xf32> to vector<40xf32>
    %89 = vector.shape_cast %88 : vector<40xf32> to vector<40x1xf32>
    %90 = vector.broadcast %89 : vector<40x1xf32> to vector<40x40xf32>
    %91 = arith.subf %87, %90 : vector<40x40xf32>
    %92 = math.exp %91 : vector<40x40xf32>
    %cst_30 = arith.constant dense<0.000000e+00> : vector<40xf32>
    %93 = vector.multi_reduction <add>, %92, %cst_30 [1] : vector<40x40xf32> to vector<40xf32>
    %94 = vector.shape_cast %93 : vector<40xf32> to vector<40x1xf32>
    %95 = tpu.reciprocal %94 {approx = true} : vector<40x1xf32> -> vector<40x1xf32>
    %96 = vector.broadcast %95 : vector<40x1xf32> to vector<40x40xf32>
    %97 = arith.mulf %92, %96 : vector<40x40xf32>
    %98 = arith.truncf %97 : vector<40x40xf32> to vector<40x40xbf16>
    %99 = arith.truncf %80 : vector<40x8xf32> to vector<40x8xbf16>
    %cst_31 = arith.constant dense<0.000000e+00> : vector<40x8xf32>
    %100 = tpu.matmul %98, %99, %cst_31 {dimension_numbers = #tpu.dot_dimension_numbers<[1], [0], [0], [1], [0, 0, 1, 1], [], []>} : vector<40x40xbf16>, vector<40x8xbf16>, vector<40x8xf32> -> vector<40x8xf32>
    %101 = vector.extract_strided_slice %77 {offsets = [0, 8], sizes = [40, 8], strides = [1, 1]} : vector<40x128xf32> to vector<40x8xf32>
    %102 = vector.extract_strided_slice %77 {offsets = [0, 40], sizes = [40, 8], strides = [1, 1]} : vector<40x128xf32> to vector<40x8xf32>
    %103 = vector.extract_strided_slice %77 {offsets = [0, 72], sizes = [40, 8], strides = [1, 1]} : vector<40x128xf32> to vector<40x8xf32>
    %104 = arith.truncf %101 : vector<40x8xf32> to vector<40x8xbf16>
    %105 = tpu.transpose %102, [1, 0] : vector<40x8xf32> -> vector<8x40xf32>
    %106 = arith.truncf %105 : vector<8x40xf32> to vector<8x40xbf16>
    %cst_32 = arith.constant dense<0.000000e+00> : vector<40x40xf32>
    %107 = tpu.matmul %104, %106, %cst_32 {dimension_numbers = #tpu.dot_dimension_numbers<[1], [0], [0], [1], [0, 0, 1, 1], [], []>} : vector<40x8xbf16>, vector<8x40xbf16>, vector<40x40xf32> -> vector<40x40xf32>
    %cst_33 = arith.constant 0.353553385 : f32
    %108 = vector.broadcast %cst_33 : f32 to vector<40x40xf32>
    %109 = arith.mulf %107, %108 : vector<40x40xf32>
    %110 = arith.addf %109, %35 : vector<40x40xf32>
    %cst_34 = arith.constant dense<0xFF800000> : vector<40xf32>
    %111 = vector.multi_reduction <maximumf>, %110, %cst_34 [1] : vector<40x40xf32> to vector<40xf32>
    %112 = vector.shape_cast %111 : vector<40xf32> to vector<40x1xf32>
    %113 = vector.broadcast %112 : vector<40x1xf32> to vector<40x40xf32>
    %114 = arith.subf %110, %113 : vector<40x40xf32>
    %115 = math.exp %114 : vector<40x40xf32>
    %cst_35 = arith.constant dense<0.000000e+00> : vector<40xf32>
    %116 = vector.multi_reduction <add>, %115, %cst_35 [1] : vector<40x40xf32> to vector<40xf32>
    %117 = vector.shape_cast %116 : vector<40xf32> to vector<40x1xf32>
    %118 = tpu.reciprocal %117 {approx = true} : vector<40x1xf32> -> vector<40x1xf32>
    %119 = vector.broadcast %118 : vector<40x1xf32> to vector<40x40xf32>
    %120 = arith.mulf %115, %119 : vector<40x40xf32>
    %121 = arith.truncf %120 : vector<40x40xf32> to vector<40x40xbf16>
    %122 = arith.truncf %103 : vector<40x8xf32> to vector<40x8xbf16>
    %cst_36 = arith.constant dense<0.000000e+00> : vector<40x8xf32>
    %123 = tpu.matmul %121, %122, %cst_36 {dimension_numbers = #tpu.dot_dimension_numbers<[1], [0], [0], [1], [0, 0, 1, 1], [], []>} : vector<40x40xbf16>, vector<40x8xbf16>, vector<40x8xf32> -> vector<40x8xf32>
    %124 = vector.extract_strided_slice %77 {offsets = [0, 16], sizes = [40, 8], strides = [1, 1]} : vector<40x128xf32> to vector<40x8xf32>
    %125 = vector.extract_strided_slice %77 {offsets = [0, 48], sizes = [40, 8], strides = [1, 1]} : vector<40x128xf32> to vector<40x8xf32>
    %126 = vector.extract_strided_slice %77 {offsets = [0, 80], sizes = [40, 8], strides = [1, 1]} : vector<40x128xf32> to vector<40x8xf32>
    %127 = arith.truncf %124 : vector<40x8xf32> to vector<40x8xbf16>
    %128 = tpu.transpose %125, [1, 0] : vector<40x8xf32> -> vector<8x40xf32>
    %129 = arith.truncf %128 : vector<8x40xf32> to vector<8x40xbf16>
    %cst_37 = arith.constant dense<0.000000e+00> : vector<40x40xf32>
    %130 = tpu.matmul %127, %129, %cst_37 {dimension_numbers = #tpu.dot_dimension_numbers<[1], [0], [0], [1], [0, 0, 1, 1], [], []>} : vector<40x8xbf16>, vector<8x40xbf16>, vector<40x40xf32> -> vector<40x40xf32>
    %cst_38 = arith.constant 0.353553385 : f32
    %131 = vector.broadcast %cst_38 : f32 to vector<40x40xf32>
    %132 = arith.mulf %130, %131 : vector<40x40xf32>
    %133 = arith.addf %132, %35 : vector<40x40xf32>
    %cst_39 = arith.constant dense<0xFF800000> : vector<40xf32>
    %134 = vector.multi_reduction <maximumf>, %133, %cst_39 [1] : vector<40x40xf32> to vector<40xf32>
    %135 = vector.shape_cast %134 : vector<40xf32> to vector<40x1xf32>
    %136 = vector.broadcast %135 : vector<40x1xf32> to vector<40x40xf32>
    %137 = arith.subf %133, %136 : vector<40x40xf32>
    %138 = math.exp %137 : vector<40x40xf32>
    %cst_40 = arith.constant dense<0.000000e+00> : vector<40xf32>
    %139 = vector.multi_reduction <add>, %138, %cst_40 [1] : vector<40x40xf32> to vector<40xf32>
    %140 = vector.shape_cast %139 : vector<40xf32> to vector<40x1xf32>
    %141 = tpu.reciprocal %140 {approx = true} : vector<40x1xf32> -> vector<40x1xf32>
    %142 = vector.broadcast %141 : vector<40x1xf32> to vector<40x40xf32>
    %143 = arith.mulf %138, %142 : vector<40x40xf32>
    %144 = arith.truncf %143 : vector<40x40xf32> to vector<40x40xbf16>
    %145 = arith.truncf %126 : vector<40x8xf32> to vector<40x8xbf16>
    %cst_41 = arith.constant dense<0.000000e+00> : vector<40x8xf32>
    %146 = tpu.matmul %144, %145, %cst_41 {dimension_numbers = #tpu.dot_dimension_numbers<[1], [0], [0], [1], [0, 0, 1, 1], [], []>} : vector<40x40xbf16>, vector<40x8xbf16>, vector<40x8xf32> -> vector<40x8xf32>
    %147 = vector.extract_strided_slice %77 {offsets = [0, 24], sizes = [40, 8], strides = [1, 1]} : vector<40x128xf32> to vector<40x8xf32>
    %148 = vector.extract_strided_slice %77 {offsets = [0, 56], sizes = [40, 8], strides = [1, 1]} : vector<40x128xf32> to vector<40x8xf32>
    %149 = vector.extract_strided_slice %77 {offsets = [0, 88], sizes = [40, 8], strides = [1, 1]} : vector<40x128xf32> to vector<40x8xf32>
    %150 = arith.truncf %147 : vector<40x8xf32> to vector<40x8xbf16>
    %151 = tpu.transpose %148, [1, 0] : vector<40x8xf32> -> vector<8x40xf32>
    %152 = arith.truncf %151 : vector<8x40xf32> to vector<8x40xbf16>
    %cst_42 = arith.constant dense<0.000000e+00> : vector<40x40xf32>
    %153 = tpu.matmul %150, %152, %cst_42 {dimension_numbers = #tpu.dot_dimension_numbers<[1], [0], [0], [1], [0, 0, 1, 1], [], []>} : vector<40x8xbf16>, vector<8x40xbf16>, vector<40x40xf32> -> vector<40x40xf32>
    %cst_43 = arith.constant 0.353553385 : f32
    %154 = vector.broadcast %cst_43 : f32 to vector<40x40xf32>
    %155 = arith.mulf %153, %154 : vector<40x40xf32>
    %156 = arith.addf %155, %35 : vector<40x40xf32>
    %cst_44 = arith.constant dense<0xFF800000> : vector<40xf32>
    %157 = vector.multi_reduction <maximumf>, %156, %cst_44 [1] : vector<40x40xf32> to vector<40xf32>
    %158 = vector.shape_cast %157 : vector<40xf32> to vector<40x1xf32>
    %159 = vector.broadcast %158 : vector<40x1xf32> to vector<40x40xf32>
    %160 = arith.subf %156, %159 : vector<40x40xf32>
    %161 = math.exp %160 : vector<40x40xf32>
    %cst_45 = arith.constant dense<0.000000e+00> : vector<40xf32>
    %162 = vector.multi_reduction <add>, %161, %cst_45 [1] : vector<40x40xf32> to vector<40xf32>
    %163 = vector.shape_cast %162 : vector<40xf32> to vector<40x1xf32>
    %164 = tpu.reciprocal %163 {approx = true} : vector<40x1xf32> -> vector<40x1xf32>
    %165 = vector.broadcast %164 : vector<40x1xf32> to vector<40x40xf32>
    %166 = arith.mulf %161, %165 : vector<40x40xf32>
    %167 = arith.truncf %166 : vector<40x40xf32> to vector<40x40xbf16>
    %168 = arith.truncf %149 : vector<40x8xf32> to vector<40x8xbf16>
    %cst_46 = arith.constant dense<0.000000e+00> : vector<40x8xf32>
    %169 = tpu.matmul %167, %168, %cst_46 {dimension_numbers = #tpu.dot_dimension_numbers<[1], [0], [0], [1], [0, 0, 1, 1], [], []>} : vector<40x40xbf16>, vector<40x8xbf16>, vector<40x8xf32> -> vector<40x8xf32>
    %170 = tpu.concatenate %100, %123, %146, %169 in 1 : vector<40x8xf32>, vector<40x8xf32>, vector<40x8xf32>, vector<40x8xf32> -> vector<40x32xf32>
    %171 = arith.truncf %170 : vector<40x32xf32> to vector<40x32xbf16>
    %cst_47 = arith.constant dense<0.000000e+00> : vector<40x128xf32>
    %172 = tpu.matmul %171, %49, %cst_47 {dimension_numbers = #tpu.dot_dimension_numbers<[1], [0], [0], [1], [0, 0, 1, 1], [], []>} : vector<40x32xbf16>, vector<32x128xbf16>, vector<40x128xf32> -> vector<40x128xf32>
    %173 = vector.broadcast %41 : vector<1x128xf32> to vector<40x128xf32>
    %174 = arith.addf %172, %173 : vector<40x128xf32>
    %175 = vector.extract_strided_slice %174 {offsets = [0, 0], sizes = [40, 32], strides = [1, 1]} : vector<40x128xf32> to vector<40x32xf32>
    %176 = arith.addf %34, %175 : vector<40x32xf32>
    %cst_48 = arith.constant dense<0.000000e+00> : vector<40xf32>
    %177 = vector.multi_reduction <add>, %176, %cst_48 [1] : vector<40x32xf32> to vector<40xf32>
    %178 = vector.shape_cast %177 : vector<40xf32> to vector<40x1xf32>
    %cst_49 = arith.constant 3.200000e+01 : f32
    %179 = vector.broadcast %cst_49 : f32 to vector<40x1xf32>
    %180 = arith.divf %178, %179 : vector<40x1xf32>
    %181 = vector.broadcast %180 : vector<40x1xf32> to vector<40x32xf32>
    %182 = arith.subf %176, %181 : vector<40x32xf32>
    %183 = arith.mulf %182, %182 : vector<40x32xf32>
    %cst_50 = arith.constant dense<0.000000e+00> : vector<40xf32>
    %184 = vector.multi_reduction <add>, %183, %cst_50 [1] : vector<40x32xf32> to vector<40xf32>
    %185 = vector.shape_cast %184 : vector<40xf32> to vector<40x1xf32>
    %cst_51 = arith.constant 3.200000e+01 : f32
    %186 = vector.broadcast %cst_51 : f32 to vector<40x1xf32>
    %187 = arith.divf %185, %186 : vector<40x1xf32>
    %188 = vector.broadcast %180 : vector<40x1xf32> to vector<40x32xf32>
    %189 = arith.subf %176, %188 : vector<40x32xf32>
    %cst_52 = arith.constant 9.99999974E-6 : f32
    %190 = vector.broadcast %cst_52 : f32 to vector<40x1xf32>
    %191 = arith.addf %187, %190 : vector<40x1xf32>
    %192 = math.rsqrt %191 : vector<40x1xf32>
    %193 = vector.broadcast %192 : vector<40x1xf32> to vector<40x32xf32>
    %194 = arith.mulf %189, %193 : vector<40x32xf32>
    %195 = vector.broadcast %43 : vector<1x32xf32> to vector<40x32xf32>
    %196 = arith.mulf %194, %195 : vector<40x32xf32>
    %197 = vector.broadcast %45 : vector<1x32xf32> to vector<40x32xf32>
    %198 = arith.addf %196, %197 : vector<40x32xf32>
    %199 = arith.truncf %198 : vector<40x32xf32> to vector<40x32xbf16>
    %cst_53 = arith.constant dense<0.000000e+00> : vector<40x128xf32>
    %200 = tpu.matmul %199, %50, %cst_53 {dimension_numbers = #tpu.dot_dimension_numbers<[1], [0], [0], [1], [0, 0, 1, 1], [], []>} : vector<40x32xbf16>, vector<32x128xbf16>, vector<40x128xf32> -> vector<40x128xf32>
    %201 = vector.broadcast %46 : vector<1x128xf32> to vector<40x128xf32>
    %202 = arith.addf %200, %201 : vector<40x128xf32>
    %cst_54 = arith.constant 5.000000e-01 : f32
    %203 = vector.broadcast %cst_54 : f32 to vector<40x128xf32>
    %204 = arith.mulf %203, %202 : vector<40x128xf32>
    %205 = arith.mulf %202, %202 : vector<40x128xf32>
    %206 = arith.mulf %202, %205 : vector<40x128xf32>
    %cst_55 = arith.constant 4.471500e-02 : f32
    %207 = vector.broadcast %cst_55 : f32 to vector<40x128xf32>
    %208 = arith.mulf %207, %206 : vector<40x128xf32>
    %209 = arith.addf %202, %208 : vector<40x128xf32>
    %cst_56 = arith.constant 0.797884583 : f32
    %210 = vector.broadcast %cst_56 : f32 to vector<40x128xf32>
    %211 = arith.mulf %210, %209 : vector<40x128xf32>
    %212 = math.tanh %211 : vector<40x128xf32>
    %cst_57 = arith.constant 1.000000e+00 : f32
    %213 = vector.broadcast %cst_57 : f32 to vector<40x128xf32>
    %214 = arith.addf %213, %212 : vector<40x128xf32>
    %215 = arith.mulf %204, %214 : vector<40x128xf32>
    %216 = arith.truncf %215 : vector<40x128xf32> to vector<40x128xbf16>
    %cst_58 = arith.constant dense<0.000000e+00> : vector<40x128xf32>
    %217 = tpu.matmul %216, %51, %cst_58 {dimension_numbers = #tpu.dot_dimension_numbers<[1], [0], [0], [1], [0, 0, 1, 1], [], []>} : vector<40x128xbf16>, vector<128x128xbf16>, vector<40x128xf32> -> vector<40x128xf32>
    %218 = vector.broadcast %47 : vector<1x128xf32> to vector<40x128xf32>
    %219 = arith.addf %217, %218 : vector<40x128xf32>
    %220 = vector.extract_strided_slice %219 {offsets = [0, 0], sizes = [40, 32], strides = [1, 1]} : vector<40x128xf32> to vector<40x32xf32>
    %221 = arith.addf %176, %220 : vector<40x32xf32>
    %222 = vector.extract_strided_slice %20 {offsets = [9, 0], sizes = [1, 128], strides = [1, 1]} : vector<24x128xf32> to vector<1x128xf32>
    %223 = vector.extract_strided_slice %222 {offsets = [0, 0], sizes = [1, 32], strides = [1, 1]} : vector<1x128xf32> to vector<1x32xf32>
    %224 = vector.extract_strided_slice %20 {offsets = [10, 0], sizes = [1, 128], strides = [1, 1]} : vector<24x128xf32> to vector<1x128xf32>
    %225 = vector.extract_strided_slice %224 {offsets = [0, 0], sizes = [1, 32], strides = [1, 1]} : vector<1x128xf32> to vector<1x32xf32>
    %226 = vector.extract_strided_slice %20 {offsets = [11, 0], sizes = [1, 128], strides = [1, 1]} : vector<24x128xf32> to vector<1x128xf32>
    %227 = vector.extract_strided_slice %20 {offsets = [12, 0], sizes = [1, 128], strides = [1, 1]} : vector<24x128xf32> to vector<1x128xf32>
    %228 = vector.extract_strided_slice %20 {offsets = [13, 0], sizes = [1, 128], strides = [1, 1]} : vector<24x128xf32> to vector<1x128xf32>
    %229 = vector.extract_strided_slice %228 {offsets = [0, 0], sizes = [1, 32], strides = [1, 1]} : vector<1x128xf32> to vector<1x32xf32>
    %230 = vector.extract_strided_slice %20 {offsets = [14, 0], sizes = [1, 128], strides = [1, 1]} : vector<24x128xf32> to vector<1x128xf32>
    %231 = vector.extract_strided_slice %230 {offsets = [0, 0], sizes = [1, 32], strides = [1, 1]} : vector<1x128xf32> to vector<1x32xf32>
    %232 = vector.extract_strided_slice %20 {offsets = [15, 0], sizes = [1, 128], strides = [1, 1]} : vector<24x128xf32> to vector<1x128xf32>
    %233 = vector.extract_strided_slice %20 {offsets = [16, 0], sizes = [1, 128], strides = [1, 1]} : vector<24x128xf32> to vector<1x128xf32>
    %c240 = arith.constant 240 : index
    %c0_59 = arith.constant 0 : index
    %234 = vector.load %arg5[%c240, %c0_59] : memref<624x128xbf16, #tpu.memory_space<vmem>>, vector<32x128xbf16>
    %c272 = arith.constant 272 : index
    %c0_60 = arith.constant 0 : index
    %235 = vector.load %arg5[%c272, %c0_60] : memref<624x128xbf16, #tpu.memory_space<vmem>>, vector<32x128xbf16>
    %c304 = arith.constant 304 : index
    %c0_61 = arith.constant 0 : index
    %236 = vector.load %arg5[%c304, %c0_61] : memref<624x128xbf16, #tpu.memory_space<vmem>>, vector<32x128xbf16>
    %c336 = arith.constant 336 : index
    %c0_62 = arith.constant 0 : index
    %237 = vector.load %arg5[%c336, %c0_62] : memref<624x128xbf16, #tpu.memory_space<vmem>>, vector<128x128xbf16>
    %cst_63 = arith.constant dense<0.000000e+00> : vector<40xf32>
    %238 = vector.multi_reduction <add>, %221, %cst_63 [1] : vector<40x32xf32> to vector<40xf32>
    %239 = vector.shape_cast %238 : vector<40xf32> to vector<40x1xf32>
    %cst_64 = arith.constant 3.200000e+01 : f32
    %240 = vector.broadcast %cst_64 : f32 to vector<40x1xf32>
    %241 = arith.divf %239, %240 : vector<40x1xf32>
    %242 = vector.broadcast %241 : vector<40x1xf32> to vector<40x32xf32>
    %243 = arith.subf %221, %242 : vector<40x32xf32>
    %244 = arith.mulf %243, %243 : vector<40x32xf32>
    %cst_65 = arith.constant dense<0.000000e+00> : vector<40xf32>
    %245 = vector.multi_reduction <add>, %244, %cst_65 [1] : vector<40x32xf32> to vector<40xf32>
    %246 = vector.shape_cast %245 : vector<40xf32> to vector<40x1xf32>
    %cst_66 = arith.constant 3.200000e+01 : f32
    %247 = vector.broadcast %cst_66 : f32 to vector<40x1xf32>
    %248 = arith.divf %246, %247 : vector<40x1xf32>
    %249 = vector.broadcast %241 : vector<40x1xf32> to vector<40x32xf32>
    %250 = arith.subf %221, %249 : vector<40x32xf32>
    %cst_67 = arith.constant 9.99999974E-6 : f32
    %251 = vector.broadcast %cst_67 : f32 to vector<40x1xf32>
    %252 = arith.addf %248, %251 : vector<40x1xf32>
    %253 = math.rsqrt %252 : vector<40x1xf32>
    %254 = vector.broadcast %253 : vector<40x1xf32> to vector<40x32xf32>
    %255 = arith.mulf %250, %254 : vector<40x32xf32>
    %256 = vector.broadcast %223 : vector<1x32xf32> to vector<40x32xf32>
    %257 = arith.mulf %255, %256 : vector<40x32xf32>
    %258 = vector.broadcast %225 : vector<1x32xf32> to vector<40x32xf32>
    %259 = arith.addf %257, %258 : vector<40x32xf32>
    %260 = arith.truncf %259 : vector<40x32xf32> to vector<40x32xbf16>
    %cst_68 = arith.constant dense<0.000000e+00> : vector<40x128xf32>
    %261 = tpu.matmul %260, %234, %cst_68 {dimension_numbers = #tpu.dot_dimension_numbers<[1], [0], [0], [1], [0, 0, 1, 1], [], []>} : vector<40x32xbf16>, vector<32x128xbf16>, vector<40x128xf32> -> vector<40x128xf32>
    %262 = vector.broadcast %226 : vector<1x128xf32> to vector<40x128xf32>
    %263 = arith.addf %261, %262 : vector<40x128xf32>
    %264 = vector.extract_strided_slice %263 {offsets = [0, 0], sizes = [40, 8], strides = [1, 1]} : vector<40x128xf32> to vector<40x8xf32>
    %265 = vector.extract_strided_slice %263 {offsets = [0, 32], sizes = [40, 8], strides = [1, 1]} : vector<40x128xf32> to vector<40x8xf32>
    %266 = vector.extract_strided_slice %263 {offsets = [0, 64], sizes = [40, 8], strides = [1, 1]} : vector<40x128xf32> to vector<40x8xf32>
    %267 = arith.truncf %264 : vector<40x8xf32> to vector<40x8xbf16>
    %268 = tpu.transpose %265, [1, 0] : vector<40x8xf32> -> vector<8x40xf32>
    %269 = arith.truncf %268 : vector<8x40xf32> to vector<8x40xbf16>
    %cst_69 = arith.constant dense<0.000000e+00> : vector<40x40xf32>
    %270 = tpu.matmul %267, %269, %cst_69 {dimension_numbers = #tpu.dot_dimension_numbers<[1], [0], [0], [1], [0, 0, 1, 1], [], []>} : vector<40x8xbf16>, vector<8x40xbf16>, vector<40x40xf32> -> vector<40x40xf32>
    %cst_70 = arith.constant 0.353553385 : f32
    %271 = vector.broadcast %cst_70 : f32 to vector<40x40xf32>
    %272 = arith.mulf %270, %271 : vector<40x40xf32>
    %273 = arith.addf %272, %35 : vector<40x40xf32>
    %cst_71 = arith.constant dense<0xFF800000> : vector<40xf32>
    %274 = vector.multi_reduction <maximumf>, %273, %cst_71 [1] : vector<40x40xf32> to vector<40xf32>
    %275 = vector.shape_cast %274 : vector<40xf32> to vector<40x1xf32>
    %276 = vector.broadcast %275 : vector<40x1xf32> to vector<40x40xf32>
    %277 = arith.subf %273, %276 : vector<40x40xf32>
    %278 = math.exp %277 : vector<40x40xf32>
    %cst_72 = arith.constant dense<0.000000e+00> : vector<40xf32>
    %279 = vector.multi_reduction <add>, %278, %cst_72 [1] : vector<40x40xf32> to vector<40xf32>
    %280 = vector.shape_cast %279 : vector<40xf32> to vector<40x1xf32>
    %281 = tpu.reciprocal %280 {approx = true} : vector<40x1xf32> -> vector<40x1xf32>
    %282 = vector.broadcast %281 : vector<40x1xf32> to vector<40x40xf32>
    %283 = arith.mulf %278, %282 : vector<40x40xf32>
    %284 = arith.truncf %283 : vector<40x40xf32> to vector<40x40xbf16>
    %285 = arith.truncf %266 : vector<40x8xf32> to vector<40x8xbf16>
    %cst_73 = arith.constant dense<0.000000e+00> : vector<40x8xf32>
    %286 = tpu.matmul %284, %285, %cst_73 {dimension_numbers = #tpu.dot_dimension_numbers<[1], [0], [0], [1], [0, 0, 1, 1], [], []>} : vector<40x40xbf16>, vector<40x8xbf16>, vector<40x8xf32> -> vector<40x8xf32>
    %287 = vector.extract_strided_slice %263 {offsets = [0, 8], sizes = [40, 8], strides = [1, 1]} : vector<40x128xf32> to vector<40x8xf32>
    %288 = vector.extract_strided_slice %263 {offsets = [0, 40], sizes = [40, 8], strides = [1, 1]} : vector<40x128xf32> to vector<40x8xf32>
    %289 = vector.extract_strided_slice %263 {offsets = [0, 72], sizes = [40, 8], strides = [1, 1]} : vector<40x128xf32> to vector<40x8xf32>
    %290 = arith.truncf %287 : vector<40x8xf32> to vector<40x8xbf16>
    %291 = tpu.transpose %288, [1, 0] : vector<40x8xf32> -> vector<8x40xf32>
    %292 = arith.truncf %291 : vector<8x40xf32> to vector<8x40xbf16>
    %cst_74 = arith.constant dense<0.000000e+00> : vector<40x40xf32>
    %293 = tpu.matmul %290, %292, %cst_74 {dimension_numbers = #tpu.dot_dimension_numbers<[1], [0], [0], [1], [0, 0, 1, 1], [], []>} : vector<40x8xbf16>, vector<8x40xbf16>, vector<40x40xf32> -> vector<40x40xf32>
    %cst_75 = arith.constant 0.353553385 : f32
    %294 = vector.broadcast %cst_75 : f32 to vector<40x40xf32>
    %295 = arith.mulf %293, %294 : vector<40x40xf32>
    %296 = arith.addf %295, %35 : vector<40x40xf32>
    %cst_76 = arith.constant dense<0xFF800000> : vector<40xf32>
    %297 = vector.multi_reduction <maximumf>, %296, %cst_76 [1] : vector<40x40xf32> to vector<40xf32>
    %298 = vector.shape_cast %297 : vector<40xf32> to vector<40x1xf32>
    %299 = vector.broadcast %298 : vector<40x1xf32> to vector<40x40xf32>
    %300 = arith.subf %296, %299 : vector<40x40xf32>
    %301 = math.exp %300 : vector<40x40xf32>
    %cst_77 = arith.constant dense<0.000000e+00> : vector<40xf32>
    %302 = vector.multi_reduction <add>, %301, %cst_77 [1] : vector<40x40xf32> to vector<40xf32>
    %303 = vector.shape_cast %302 : vector<40xf32> to vector<40x1xf32>
    %304 = tpu.reciprocal %303 {approx = true} : vector<40x1xf32> -> vector<40x1xf32>
    %305 = vector.broadcast %304 : vector<40x1xf32> to vector<40x40xf32>
    %306 = arith.mulf %301, %305 : vector<40x40xf32>
    %307 = arith.truncf %306 : vector<40x40xf32> to vector<40x40xbf16>
    %308 = arith.truncf %289 : vector<40x8xf32> to vector<40x8xbf16>
    %cst_78 = arith.constant dense<0.000000e+00> : vector<40x8xf32>
    %309 = tpu.matmul %307, %308, %cst_78 {dimension_numbers = #tpu.dot_dimension_numbers<[1], [0], [0], [1], [0, 0, 1, 1], [], []>} : vector<40x40xbf16>, vector<40x8xbf16>, vector<40x8xf32> -> vector<40x8xf32>
    %310 = vector.extract_strided_slice %263 {offsets = [0, 16], sizes = [40, 8], strides = [1, 1]} : vector<40x128xf32> to vector<40x8xf32>
    %311 = vector.extract_strided_slice %263 {offsets = [0, 48], sizes = [40, 8], strides = [1, 1]} : vector<40x128xf32> to vector<40x8xf32>
    %312 = vector.extract_strided_slice %263 {offsets = [0, 80], sizes = [40, 8], strides = [1, 1]} : vector<40x128xf32> to vector<40x8xf32>
    %313 = arith.truncf %310 : vector<40x8xf32> to vector<40x8xbf16>
    %314 = tpu.transpose %311, [1, 0] : vector<40x8xf32> -> vector<8x40xf32>
    %315 = arith.truncf %314 : vector<8x40xf32> to vector<8x40xbf16>
    %cst_79 = arith.constant dense<0.000000e+00> : vector<40x40xf32>
    %316 = tpu.matmul %313, %315, %cst_79 {dimension_numbers = #tpu.dot_dimension_numbers<[1], [0], [0], [1], [0, 0, 1, 1], [], []>} : vector<40x8xbf16>, vector<8x40xbf16>, vector<40x40xf32> -> vector<40x40xf32>
    %cst_80 = arith.constant 0.353553385 : f32
    %317 = vector.broadcast %cst_80 : f32 to vector<40x40xf32>
    %318 = arith.mulf %316, %317 : vector<40x40xf32>
    %319 = arith.addf %318, %35 : vector<40x40xf32>
    %cst_81 = arith.constant dense<0xFF800000> : vector<40xf32>
    %320 = vector.multi_reduction <maximumf>, %319, %cst_81 [1] : vector<40x40xf32> to vector<40xf32>
    %321 = vector.shape_cast %320 : vector<40xf32> to vector<40x1xf32>
    %322 = vector.broadcast %321 : vector<40x1xf32> to vector<40x40xf32>
    %323 = arith.subf %319, %322 : vector<40x40xf32>
    %324 = math.exp %323 : vector<40x40xf32>
    %cst_82 = arith.constant dense<0.000000e+00> : vector<40xf32>
    %325 = vector.multi_reduction <add>, %324, %cst_82 [1] : vector<40x40xf32> to vector<40xf32>
    %326 = vector.shape_cast %325 : vector<40xf32> to vector<40x1xf32>
    %327 = tpu.reciprocal %326 {approx = true} : vector<40x1xf32> -> vector<40x1xf32>
    %328 = vector.broadcast %327 : vector<40x1xf32> to vector<40x40xf32>
    %329 = arith.mulf %324, %328 : vector<40x40xf32>
    %330 = arith.truncf %329 : vector<40x40xf32> to vector<40x40xbf16>
    %331 = arith.truncf %312 : vector<40x8xf32> to vector<40x8xbf16>
    %cst_83 = arith.constant dense<0.000000e+00> : vector<40x8xf32>
    %332 = tpu.matmul %330, %331, %cst_83 {dimension_numbers = #tpu.dot_dimension_numbers<[1], [0], [0], [1], [0, 0, 1, 1], [], []>} : vector<40x40xbf16>, vector<40x8xbf16>, vector<40x8xf32> -> vector<40x8xf32>
    %333 = vector.extract_strided_slice %263 {offsets = [0, 24], sizes = [40, 8], strides = [1, 1]} : vector<40x128xf32> to vector<40x8xf32>
    %334 = vector.extract_strided_slice %263 {offsets = [0, 56], sizes = [40, 8], strides = [1, 1]} : vector<40x128xf32> to vector<40x8xf32>
    %335 = vector.extract_strided_slice %263 {offsets = [0, 88], sizes = [40, 8], strides = [1, 1]} : vector<40x128xf32> to vector<40x8xf32>
    %336 = arith.truncf %333 : vector<40x8xf32> to vector<40x8xbf16>
    %337 = tpu.transpose %334, [1, 0] : vector<40x8xf32> -> vector<8x40xf32>
    %338 = arith.truncf %337 : vector<8x40xf32> to vector<8x40xbf16>
    %cst_84 = arith.constant dense<0.000000e+00> : vector<40x40xf32>
    %339 = tpu.matmul %336, %338, %cst_84 {dimension_numbers = #tpu.dot_dimension_numbers<[1], [0], [0], [1], [0, 0, 1, 1], [], []>} : vector<40x8xbf16>, vector<8x40xbf16>, vector<40x40xf32> -> vector<40x40xf32>
    %cst_85 = arith.constant 0.353553385 : f32
    %340 = vector.broadcast %cst_85 : f32 to vector<40x40xf32>
    %341 = arith.mulf %339, %340 : vector<40x40xf32>
    %342 = arith.addf %341, %35 : vector<40x40xf32>
    %cst_86 = arith.constant dense<0xFF800000> : vector<40xf32>
    %343 = vector.multi_reduction <maximumf>, %342, %cst_86 [1] : vector<40x40xf32> to vector<40xf32>
    %344 = vector.shape_cast %343 : vector<40xf32> to vector<40x1xf32>
    %345 = vector.broadcast %344 : vector<40x1xf32> to vector<40x40xf32>
    %346 = arith.subf %342, %345 : vector<40x40xf32>
    %347 = math.exp %346 : vector<40x40xf32>
    %cst_87 = arith.constant dense<0.000000e+00> : vector<40xf32>
    %348 = vector.multi_reduction <add>, %347, %cst_87 [1] : vector<40x40xf32> to vector<40xf32>
    %349 = vector.shape_cast %348 : vector<40xf32> to vector<40x1xf32>
    %350 = tpu.reciprocal %349 {approx = true} : vector<40x1xf32> -> vector<40x1xf32>
    %351 = vector.broadcast %350 : vector<40x1xf32> to vector<40x40xf32>
    %352 = arith.mulf %347, %351 : vector<40x40xf32>
    %353 = arith.truncf %352 : vector<40x40xf32> to vector<40x40xbf16>
    %354 = arith.truncf %335 : vector<40x8xf32> to vector<40x8xbf16>
    %cst_88 = arith.constant dense<0.000000e+00> : vector<40x8xf32>
    %355 = tpu.matmul %353, %354, %cst_88 {dimension_numbers = #tpu.dot_dimension_numbers<[1], [0], [0], [1], [0, 0, 1, 1], [], []>} : vector<40x40xbf16>, vector<40x8xbf16>, vector<40x8xf32> -> vector<40x8xf32>
    %356 = tpu.concatenate %286, %309, %332, %355 in 1 : vector<40x8xf32>, vector<40x8xf32>, vector<40x8xf32>, vector<40x8xf32> -> vector<40x32xf32>
    %357 = arith.truncf %356 : vector<40x32xf32> to vector<40x32xbf16>
    %cst_89 = arith.constant dense<0.000000e+00> : vector<40x128xf32>
    %358 = tpu.matmul %357, %235, %cst_89 {dimension_numbers = #tpu.dot_dimension_numbers<[1], [0], [0], [1], [0, 0, 1, 1], [], []>} : vector<40x32xbf16>, vector<32x128xbf16>, vector<40x128xf32> -> vector<40x128xf32>
    %359 = vector.broadcast %227 : vector<1x128xf32> to vector<40x128xf32>
    %360 = arith.addf %358, %359 : vector<40x128xf32>
    %361 = vector.extract_strided_slice %360 {offsets = [0, 0], sizes = [40, 32], strides = [1, 1]} : vector<40x128xf32> to vector<40x32xf32>
    %362 = arith.addf %221, %361 : vector<40x32xf32>
    %cst_90 = arith.constant dense<0.000000e+00> : vector<40xf32>
    %363 = vector.multi_reduction <add>, %362, %cst_90 [1] : vector<40x32xf32> to vector<40xf32>
    %364 = vector.shape_cast %363 : vector<40xf32> to vector<40x1xf32>
    %cst_91 = arith.constant 3.200000e+01 : f32
    %365 = vector.broadcast %cst_91 : f32 to vector<40x1xf32>
    %366 = arith.divf %364, %365 : vector<40x1xf32>
    %367 = vector.broadcast %366 : vector<40x1xf32> to vector<40x32xf32>
    %368 = arith.subf %362, %367 : vector<40x32xf32>
    %369 = arith.mulf %368, %368 : vector<40x32xf32>
    %cst_92 = arith.constant dense<0.000000e+00> : vector<40xf32>
    %370 = vector.multi_reduction <add>, %369, %cst_92 [1] : vector<40x32xf32> to vector<40xf32>
    %371 = vector.shape_cast %370 : vector<40xf32> to vector<40x1xf32>
    %cst_93 = arith.constant 3.200000e+01 : f32
    %372 = vector.broadcast %cst_93 : f32 to vector<40x1xf32>
    %373 = arith.divf %371, %372 : vector<40x1xf32>
    %374 = vector.broadcast %366 : vector<40x1xf32> to vector<40x32xf32>
    %375 = arith.subf %362, %374 : vector<40x32xf32>
    %cst_94 = arith.constant 9.99999974E-6 : f32
    %376 = vector.broadcast %cst_94 : f32 to vector<40x1xf32>
    %377 = arith.addf %373, %376 : vector<40x1xf32>
    %378 = math.rsqrt %377 : vector<40x1xf32>
    %379 = vector.broadcast %378 : vector<40x1xf32> to vector<40x32xf32>
    %380 = arith.mulf %375, %379 : vector<40x32xf32>
    %381 = vector.broadcast %229 : vector<1x32xf32> to vector<40x32xf32>
    %382 = arith.mulf %380, %381 : vector<40x32xf32>
    %383 = vector.broadcast %231 : vector<1x32xf32> to vector<40x32xf32>
    %384 = arith.addf %382, %383 : vector<40x32xf32>
    %385 = arith.truncf %384 : vector<40x32xf32> to vector<40x32xbf16>
    %cst_95 = arith.constant dense<0.000000e+00> : vector<40x128xf32>
    %386 = tpu.matmul %385, %236, %cst_95 {dimension_numbers = #tpu.dot_dimension_numbers<[1], [0], [0], [1], [0, 0, 1, 1], [], []>} : vector<40x32xbf16>, vector<32x128xbf16>, vector<40x128xf32> -> vector<40x128xf32>
    %387 = vector.broadcast %232 : vector<1x128xf32> to vector<40x128xf32>
    %388 = arith.addf %386, %387 : vector<40x128xf32>
    %cst_96 = arith.constant 5.000000e-01 : f32
    %389 = vector.broadcast %cst_96 : f32 to vector<40x128xf32>
    %390 = arith.mulf %389, %388 : vector<40x128xf32>
    %391 = arith.mulf %388, %388 : vector<40x128xf32>
    %392 = arith.mulf %388, %391 : vector<40x128xf32>
    %cst_97 = arith.constant 4.471500e-02 : f32
    %393 = vector.broadcast %cst_97 : f32 to vector<40x128xf32>
    %394 = arith.mulf %393, %392 : vector<40x128xf32>
    %395 = arith.addf %388, %394 : vector<40x128xf32>
    %cst_98 = arith.constant 0.797884583 : f32
    %396 = vector.broadcast %cst_98 : f32 to vector<40x128xf32>
    %397 = arith.mulf %396, %395 : vector<40x128xf32>
    %398 = math.tanh %397 : vector<40x128xf32>
    %cst_99 = arith.constant 1.000000e+00 : f32
    %399 = vector.broadcast %cst_99 : f32 to vector<40x128xf32>
    %400 = arith.addf %399, %398 : vector<40x128xf32>
    %401 = arith.mulf %390, %400 : vector<40x128xf32>
    %402 = arith.truncf %401 : vector<40x128xf32> to vector<40x128xbf16>
    %cst_100 = arith.constant dense<0.000000e+00> : vector<40x128xf32>
    %403 = tpu.matmul %402, %237, %cst_100 {dimension_numbers = #tpu.dot_dimension_numbers<[1], [0], [0], [1], [0, 0, 1, 1], [], []>} : vector<40x128xbf16>, vector<128x128xbf16>, vector<40x128xf32> -> vector<40x128xf32>
    %404 = vector.broadcast %233 : vector<1x128xf32> to vector<40x128xf32>
    %405 = arith.addf %403, %404 : vector<40x128xf32>
    %406 = vector.extract_strided_slice %405 {offsets = [0, 0], sizes = [40, 32], strides = [1, 1]} : vector<40x128xf32> to vector<40x32xf32>
    %407 = arith.addf %362, %406 : vector<40x32xf32>
    %408 = vector.extract_strided_slice %20 {offsets = [17, 0], sizes = [1, 128], strides = [1, 1]} : vector<24x128xf32> to vector<1x128xf32>
    %409 = vector.extract_strided_slice %408 {offsets = [0, 0], sizes = [1, 32], strides = [1, 1]} : vector<1x128xf32> to vector<1x32xf32>
    %410 = vector.extract_strided_slice %20 {offsets = [18, 0], sizes = [1, 128], strides = [1, 1]} : vector<24x128xf32> to vector<1x128xf32>
    %411 = vector.extract_strided_slice %410 {offsets = [0, 0], sizes = [1, 32], strides = [1, 1]} : vector<1x128xf32> to vector<1x32xf32>
    %cst_101 = arith.constant dense<0.000000e+00> : vector<40xf32>
    %412 = vector.multi_reduction <add>, %407, %cst_101 [1] : vector<40x32xf32> to vector<40xf32>
    %413 = vector.shape_cast %412 : vector<40xf32> to vector<40x1xf32>
    %cst_102 = arith.constant 3.200000e+01 : f32
    %414 = vector.broadcast %cst_102 : f32 to vector<40x1xf32>
    %415 = arith.divf %413, %414 : vector<40x1xf32>
    %416 = vector.broadcast %415 : vector<40x1xf32> to vector<40x32xf32>
    %417 = arith.subf %407, %416 : vector<40x32xf32>
    %418 = arith.mulf %417, %417 : vector<40x32xf32>
    %cst_103 = arith.constant dense<0.000000e+00> : vector<40xf32>
    %419 = vector.multi_reduction <add>, %418, %cst_103 [1] : vector<40x32xf32> to vector<40xf32>
    %420 = vector.shape_cast %419 : vector<40xf32> to vector<40x1xf32>
    %cst_104 = arith.constant 3.200000e+01 : f32
    %421 = vector.broadcast %cst_104 : f32 to vector<40x1xf32>
    %422 = arith.divf %420, %421 : vector<40x1xf32>
    %423 = vector.broadcast %415 : vector<40x1xf32> to vector<40x32xf32>
    %424 = arith.subf %407, %423 : vector<40x32xf32>
    %cst_105 = arith.constant 9.99999974E-6 : f32
    %425 = vector.broadcast %cst_105 : f32 to vector<40x1xf32>
    %426 = arith.addf %422, %425 : vector<40x1xf32>
    %427 = math.rsqrt %426 : vector<40x1xf32>
    %428 = vector.broadcast %427 : vector<40x1xf32> to vector<40x32xf32>
    %429 = arith.mulf %424, %428 : vector<40x32xf32>
    %430 = vector.broadcast %409 : vector<1x32xf32> to vector<40x32xf32>
    %431 = arith.mulf %429, %430 : vector<40x32xf32>
    %432 = vector.broadcast %411 : vector<1x32xf32> to vector<40x32xf32>
    %433 = arith.addf %431, %432 : vector<40x32xf32>
    %cst_106 = arith.constant 0.000000e+00 : f32
    %434 = vector.broadcast %cst_106 : f32 to vector<8x128xf32>
    %435 = vector.extract_strided_slice %433 {offsets = [0, 0], sizes = [8, 32], strides = [1, 1]} : vector<40x32xf32> to vector<8x32xf32>
    %c464 = arith.constant 464 : index
    %c0_107 = arith.constant 0 : index
    %436 = vector.load %arg5[%c464, %c0_107] : memref<624x128xbf16, #tpu.memory_space<vmem>>, vector<32x128xbf16>
    %437 = arith.truncf %435 : vector<8x32xf32> to vector<8x32xbf16>
    %cst_108 = arith.constant dense<0.000000e+00> : vector<8x128xf32>
    %438 = tpu.matmul %437, %436, %cst_108 {dimension_numbers = #tpu.dot_dimension_numbers<[1], [0], [0], [1], [0, 0, 1, 1], [], []>} : vector<8x32xbf16>, vector<32x128xbf16>, vector<8x128xf32> -> vector<8x128xf32>
    %439 = arith.addf %434, %438 : vector<8x128xf32>
    %440 = vector.extract_strided_slice %433 {offsets = [8, 0], sizes = [8, 32], strides = [1, 1]} : vector<40x32xf32> to vector<8x32xf32>
    %c496 = arith.constant 496 : index
    %c0_109 = arith.constant 0 : index
    %441 = vector.load %arg5[%c496, %c0_109] : memref<624x128xbf16, #tpu.memory_space<vmem>>, vector<32x128xbf16>
    %442 = arith.truncf %440 : vector<8x32xf32> to vector<8x32xbf16>
    %cst_110 = arith.constant dense<0.000000e+00> : vector<8x128xf32>
    %443 = tpu.matmul %442, %441, %cst_110 {dimension_numbers = #tpu.dot_dimension_numbers<[1], [0], [0], [1], [0, 0, 1, 1], [], []>} : vector<8x32xbf16>, vector<32x128xbf16>, vector<8x128xf32> -> vector<8x128xf32>
    %444 = arith.addf %439, %443 : vector<8x128xf32>
    %445 = vector.extract_strided_slice %433 {offsets = [16, 0], sizes = [8, 32], strides = [1, 1]} : vector<40x32xf32> to vector<8x32xf32>
    %c528 = arith.constant 528 : index
    %c0_111 = arith.constant 0 : index
    %446 = vector.load %arg5[%c528, %c0_111] : memref<624x128xbf16, #tpu.memory_space<vmem>>, vector<32x128xbf16>
    %447 = arith.truncf %445 : vector<8x32xf32> to vector<8x32xbf16>
    %cst_112 = arith.constant dense<0.000000e+00> : vector<8x128xf32>
    %448 = tpu.matmul %447, %446, %cst_112 {dimension_numbers = #tpu.dot_dimension_numbers<[1], [0], [0], [1], [0, 0, 1, 1], [], []>} : vector<8x32xbf16>, vector<32x128xbf16>, vector<8x128xf32> -> vector<8x128xf32>
    %449 = arith.addf %444, %448 : vector<8x128xf32>
    %450 = vector.extract_strided_slice %433 {offsets = [24, 0], sizes = [8, 32], strides = [1, 1]} : vector<40x32xf32> to vector<8x32xf32>
    %c560 = arith.constant 560 : index
    %c0_113 = arith.constant 0 : index
    %451 = vector.load %arg5[%c560, %c0_113] : memref<624x128xbf16, #tpu.memory_space<vmem>>, vector<32x128xbf16>
    %452 = arith.truncf %450 : vector<8x32xf32> to vector<8x32xbf16>
    %cst_114 = arith.constant dense<0.000000e+00> : vector<8x128xf32>
    %453 = tpu.matmul %452, %451, %cst_114 {dimension_numbers = #tpu.dot_dimension_numbers<[1], [0], [0], [1], [0, 0, 1, 1], [], []>} : vector<8x32xbf16>, vector<32x128xbf16>, vector<8x128xf32> -> vector<8x128xf32>
    %454 = arith.addf %449, %453 : vector<8x128xf32>
    %455 = vector.extract_strided_slice %433 {offsets = [32, 0], sizes = [8, 32], strides = [1, 1]} : vector<40x32xf32> to vector<8x32xf32>
    %c592 = arith.constant 592 : index
    %c0_115 = arith.constant 0 : index
    %456 = vector.load %arg5[%c592, %c0_115] : memref<624x128xbf16, #tpu.memory_space<vmem>>, vector<32x128xbf16>
    %457 = arith.truncf %455 : vector<8x32xf32> to vector<8x32xbf16>
    %cst_116 = arith.constant dense<0.000000e+00> : vector<8x128xf32>
    %458 = tpu.matmul %457, %456, %cst_116 {dimension_numbers = #tpu.dot_dimension_numbers<[1], [0], [0], [1], [0, 0, 1, 1], [], []>} : vector<8x32xbf16>, vector<32x128xbf16>, vector<8x128xf32> -> vector<8x128xf32>
    %459 = arith.addf %454, %458 : vector<8x128xf32>
    %460 = vector.extract_strided_slice %20 {offsets = [19, 0], sizes = [1, 128], strides = [1, 1]} : vector<24x128xf32> to vector<1x128xf32>
    %461 = vector.broadcast %460 : vector<1x128xf32> to vector<8x128xf32>
    %462 = arith.addf %459, %461 : vector<8x128xf32>
    %463 = vector.broadcast %19 : vector<8x1xf32> to vector<8x128xf32>
    %464 = arith.mulf %462, %463 : vector<8x128xf32>
    %465 = vector.broadcast %15 : vector<8x1xf32> to vector<8x128xf32>
    %466 = arith.addf %464, %465 : vector<8x128xf32>
    %c0_117 = arith.constant 0 : index
    %c0_118 = arith.constant 0 : index
    %467 = vector.load %arg6[%c0_117, %c0_118] : memref<8x128xf32, #tpu.memory_space<vmem>>, vector<8x128xf32>
    tpu.vector_store %arg6[%c0_117, %c0_118], %466 {strides = array<i32>} : memref<8x128xf32, #tpu.memory_space<vmem>>, vector<8x128xf32>,
    return
  }
}

</mosaic_0001>

<llo_original>
// kernel: forward.1
$region0: #{forward.1}
  #allocation0 [shape = 'u32[]', space=smem, size = 0x4, offset = 0x4, fixed_abs, tag = 'smem constant byte address 0x4 - core index']
  #allocation1 [shape = 'u32[144,128]{1,0:T(1,128)}', space=vmem, size = 0x12000, scoped, tag = 'internal scratch']
  %s0 = inlined_call_operand.vmem [shape: f32[40,16], index: 0, kind: input, shape index: {}]
  %s1 = inlined_call_operand.vmem [shape: f32[40,16], index: 1, kind: input, shape index: {}]
  %s2 = inlined_call_operand.vmem [shape: f32[40,32], index: 2, kind: input, shape index: {}]
  %s3 = inlined_call_operand.vmem [shape: f32[40,40], index: 3, kind: input, shape index: {}]
  %s4 = inlined_call_operand.vmem [shape: f32[24,128], index: 4, kind: input, shape index: {}]
  %s5 = inlined_call_operand.vmem [shape: bf16[624,128], index: 5, kind: input, shape index: {}]
  %s6 = inlined_call_operand.hbm [shape: f32[8,128], index: 6, kind: output, shape index: {}]
  %s7 = sld [smem:[#allocation0]]
  $region34: #{forward.1} parent=0
    _
  %s9 = ssub.s32 1, %s7
  %s10 = scalar_select 0, %s9, %s7
  $region1: #{forward.1} parent=0
    #allocation2 [shape = 'u8[4096]{0}', space=vmem, size = 0x1000, scoped, tag = 'output window, operand 0, single buffered']
    #allocation3 [shape = 's32[1]{0}', space=sflag, size = 0x4, scoped, tag = 'scoped memory for forward.1']
    %11 = vsyncpa [#allocation3], 0
    // Predicated region
    $region2: #{forward.1} parent=1 // pred_check
      _
    $region3: #{forward.1} parent=1 // pred_check_branch
      %13 = sbr.rel (0) target = $region5
    $region4: #{forward.1} parent=1 // pred_region
      _
    $region5: #{forward.1} parent=1 // pred_fallthru
      _
    // Predicated region
    $region6: #{forward.1} parent=1 // pred_check
      _
    $region7: #{forward.1} parent=1 // pred_check_branch
      %15 = sbr.rel (0) target = $region9
    $region8: #{forward.1} parent=1 // pred_region
      _
    $region9: #{forward.1} parent=1 // pred_fallthru
      _
    // Predicated region
    $region10: #{forward.1} parent=1 // pred_check
      _
    $region11: #{forward.1} parent=1 // pred_check_branch
      %17 = sbr.rel (0) target = $region13
    $region12: #{forward.1} parent=1 // pred_region
      _
    $region13: #{forward.1} parent=1 // pred_fallthru
      _
    // Predicated region
    $region14: #{forward.1} parent=1 // pred_check
      _
    $region15: #{forward.1} parent=1 // pred_check_branch
      %19 = sbr.rel (0) target = $region17
    $region16: #{forward.1} parent=1 // pred_region
      _
    $region17: #{forward.1} parent=1 // pred_fallthru
      _
    // Predicated region
    $region18: #{forward.1} parent=1 // pred_check
      _
    $region19: #{forward.1} parent=1 // pred_check_branch
      %21 = sbr.rel (0) target = $region21
    $region20: #{forward.1} parent=1 // pred_region
      _
    $region21: #{forward.1} parent=1 // pred_fallthru
      _
    // Predicated region
    $region22: #{forward.1} parent=1 // pred_check
      _
    $region23: #{forward.1} parent=1 // pred_check_branch
      %23 = sbr.rel (0) target = $region25
    $region24: #{forward.1} parent=1 // pred_region
      _
    $region25: #{forward.1} parent=1 // pred_fallthru
      _
    %v25 = vld [vmem:[%s0] sm:$0xff]
    %v26 = vld [vmem:[%s0 + $0x8] sm:$0xff]
    %v27 = vld [vmem:[%s0 + $0x10] sm:$0xff]
    %v28 = vld [vmem:[%s0 + $0x18] sm:$0xff]
    %v29 = vld [vmem:[%s0 + $0x20] sm:$0xff]
    %vm30 = vcmask 130048
    %v31 = vsel %vm30, %v25, 0.0
    %32 = vadd.xlane.f32.xlu0 %v31
    %v33 = vpop.xlane.xlu0 %32
    %v34 = vsel %vm30, %v26, 0.0
    %35 = vadd.xlane.f32.xlu0 %v34
    %v36 = vpop.xlane.xlu0 %35
    %v37 = vsel %vm30, %v27, 0.0
    %38 = vadd.xlane.f32.xlu0 %v37
    %v39 = vpop.xlane.xlu0 %38
    %v40 = vsel %vm30, %v28, 0.0
    %41 = vadd.xlane.f32.xlu0 %v40
    %v42 = vpop.xlane.xlu0 %41
    %v43 = vsel %vm30, %v29, 0.0
    %44 = vadd.xlane.f32.xlu0 %v43
    %v45 = vpop.xlane.xlu0 %44
    %v46 = vrcp.pop 16.0
    %v47 = vmul.f32 %v33, %v46
    %v48 = vmul.f32 %v36, %v46
    %v49 = vmul.f32 %v39, %v46
    %v50 = vmul.f32 %v42, %v46
    %v51 = vmul.f32 %v45, %v46
    %v52 = vsub.f32 %v25, %v47
    %v53 = vsub.f32 %v26, %v48
    %v54 = vsub.f32 %v27, %v49
    %v55 = vsub.f32 %v28, %v50
    %v56 = vsub.f32 %v29, %v51
    %v57 = vmul.f32 %v52, %v52
    %v58 = vmul.f32 %v53, %v53
    %v59 = vmul.f32 %v54, %v54
    %v60 = vmul.f32 %v55, %v55
    %v61 = vmul.f32 %v56, %v56
    %v62 = vsel %vm30, %v57, 0.0
    %63 = vadd.xlane.f32.xlu0 %v62
    %v64 = vpop.xlane.xlu0 %63
    %v65 = vsel %vm30, %v58, 0.0
    %66 = vadd.xlane.f32.xlu0 %v65
    %v67 = vpop.xlane.xlu0 %66
    %v68 = vsel %vm30, %v59, 0.0
    %69 = vadd.xlane.f32.xlu0 %v68
    %v70 = vpop.xlane.xlu0 %69
    %v71 = vsel %vm30, %v60, 0.0
    %72 = vadd.xlane.f32.xlu0 %v71
    %v73 = vpop.xlane.xlu0 %72
    %v74 = vsel %vm30, %v61, 0.0
    %75 = vadd.xlane.f32.xlu0 %v74
    %v76 = vpop.xlane.xlu0 %75
    %v77 = vmul.f32 %v64, %v46
    %v78 = vmul.f32 %v67, %v46
    %v79 = vmul.f32 %v70, %v46
    %v80 = vmul.f32 %v73, %v46
    %v81 = vmul.f32 %v76, %v46
    %v82 = vadd.f32 %v77, 1e-05
    %v83 = vadd.f32 %v78, 1e-05
    %v84 = vadd.f32 %v79, 1e-05
    %v85 = vadd.f32 %v80, 1e-05
    %v86 = vadd.f32 %v81, 1e-05
    %v87 = vrsqrt.pop %v82
    %v88 = vrsqrt.pop %v83
    %v89 = vrsqrt.pop %v84
    %v90 = vrsqrt.pop %v85
    %v91 = vrsqrt.pop %v86
    %v92 = vrsqrt.pop %v82
    %v93 = vmul.f32 %v82, %v92
    %vm94 = vcmp.eq.f32.partialorder %v82, inf
    %v95 = vsel %vm94, %v82, %v93
    %vm96 = vcmp.eq.f32.partialorder %v82, 0.0
    %v97 = vand.u32 %v82, 2147483648
    %v98 = vsel %vm96, %v97, %v95
    %v99 = vld [vmem:[%s4] sm:$0xff]
    %v100 = vld [vmem:[%s4 + $0x8] sm:$0xff]
    %v101 = vld [vmem:[%s4 + $0x10] sm:$0xff]
    %v102 = vld [vmem:[%s1] sm:$0xff]
    %v103 = vld [vmem:[%s1 + $0x8] sm:$0xff]
    %v104 = vld [vmem:[%s1 + $0x10] sm:$0xff]
    %v105 = vld [vmem:[%s1 + $0x18] sm:$0xff]
    %v106 = vld [vmem:[%s1 + $0x20] sm:$0xff]
    %v107 = vsub.f32 %v102, %v47
    %v108 = vsub.f32 %v103, %v48
    %v109 = vsub.f32 %v104, %v49
    %v110 = vsub.f32 %v105, %v50
    %v111 = vsub.f32 %v106, %v51
    %v112 = vmul.f32 %v107, %v87
    %v113 = vmul.f32 %v108, %v88
    %v114 = vmul.f32 %v109, %v89
    %v115 = vmul.f32 %v110, %v90
    %v116 = vmul.f32 %v111, %v91
    %v117 = vld [vmem:[%s5] sm:$0xf]
    %v118 = vld [vmem:[%s5 + $0x4] sm:$0xf]
    %v119 = vpack.c.bf16 %v113, %v112
    %v120 = vpack.c.bf16 %v115, %v114
    %v121 = vpack.c.bf16 %v116, %v116
    %v122 = vlaneseq
    %v123 = vshrl.u32 %v122, 7
    %v124 = vsub.s32 0, %v123
    %v125 = vrot.slane %v99, %v124
    %v128 = vunpack.c.l.b16 %v117
    %v129 = vunpack.c.l.b16 %v118
    %v130 = vpack.c.b16 %v129, %v128
    %v133 = vsel %vm30, %v119, 0
    %v136 = vsel %vm30, %v120, 0
    %v139 = vsel %vm30, %v121, 0
    %141 = vmatprep.subr.bf16.mxu0 0
    %142 = vmatpush1.bf16.msra.mxu0 %v130
    %143 = vmatprep.subr.bf16.mxu0 0
    %144 = vmatpush1.bf16.msra.mxu0 0
    %145 = vmatprep.subr.bf16.mxu0 0
    %146 = vmatpush1.bf16.msra.mxu0 0
    %147 = vmatprep.subr.bf16.mxu0 0
    %148 = vmatpush1.bf16.msra.mxu0 0
    %149 = vmatprep.subr.bf16.mxu0 0
    %150 = vmatpush1.bf16.msra.mxu0 0
    %151 = vmatprep.subr.bf16.mxu0 0
    %152 = vmatpush1.bf16.msra.mxu0 0
    %153 = vmatprep.subr.bf16.mxu0 0
    %154 = vmatpush1.bf16.msra.mxu0 0
    %155 = vmatprep.subr.bf16.mxu0 0
    %156 = vmatpush1.bf16.msra.mxu0 0
    %157 = vmatprep.subr.bf16.mxu0 0
    %158 = vmatpush1.bf16.msra.mxu0 0
    %159 = vmatprep.subr.bf16.mxu0 0
    %160 = vmatpush1.bf16.msra.mxu0 0
    %161 = vmatprep.subr.bf16.mxu0 0
    %162 = vmatpush1.bf16.msra.mxu0 0
    %163 = vmatprep.subr.bf16.mxu0 0
    %164 = vmatpush1.bf16.msra.mxu0 0
    %165 = vmatprep.subr.bf16.mxu0 0
    %166 = vmatpush1.bf16.msra.mxu0 0
    %167 = vmatprep.subr.bf16.mxu0 0
    %168 = vmatpush1.bf16.msra.mxu0 0
    %169 = vmatprep.subr.bf16.mxu0 0
    %170 = vmatpush1.bf16.msra.mxu0 0
    %171 = vmatprep.subr.bf16.mxu0 0
    %172 = vmatpush1.bf16.msra.mxu0 0
    %173 = vmatprep.mubr.bf16.mxu0 0
    %174 = vmatmul.mubr.bf16.gmra.mrb[0].mxu0 %v133
    %v175 = vpop.f32.mrb[0].mxu0
    %v176 = vadd.f32 %v125, %v175
    %v177 = vpop.f32.mrb[0].mxu0
    %v178 = vpop.f32.mrb[0].mxu0
    %v179 = vadd.f32 %v125, %v178
    %v180 = vpop.f32.mrb[0].mxu0
    %181 = vmatprep.mubr.bf16.mxu0 0
    %182 = vmatmul.mubr.bf16.gmra.mrb[0].mxu0 %v136
    %v183 = vpop.f32.mrb[0].mxu0
    %v184 = vadd.f32 %v125, %v183
    %v185 = vpop.f32.mrb[0].mxu0
    %v186 = vpop.f32.mrb[0].mxu0
    %v187 = vadd.f32 %v125, %v186
    %v188 = vpop.f32.mrb[0].mxu0
    %189 = vmatprep.mubr.bf16.mxu0 0
    %190 = vmatmul.mubr.bf16.gmra.mrb[0].mxu0 %v139
    %v191 = vpop.f32.mrb[0].mxu0
    %v192 = vadd.f32 %v125, %v191
    %v193 = vpop.f32.mrb[0].mxu0
    %v194 = vpop.f32.mrb[0].mxu0
    %v195 = vpop.f32.mrb[0].mxu0
    %196 = vdwg.mxu0
    %v197 = vld [vmem:[%s2] sm:$0xff]
    %v198 = vld [vmem:[%s2 + $0x8] sm:$0xff]
    %v199 = vld [vmem:[%s2 + $0x10] sm:$0xff]
    %v200 = vld [vmem:[%s2 + $0x18] sm:$0xff]
    %v201 = vld [vmem:[%s2 + $0x20] sm:$0xff]
    %v202 = vadd.f32 %v176, %v197
    %v203 = vadd.f32 %v179, %v198
    %v204 = vadd.f32 %v184, %v199
    %v205 = vadd.f32 %v187, %v200
    %v206 = vadd.f32 %v192, %v201
    %v207 = vld [vmem:[%s3] sm:$0xff]
    %v208 = vld [vmem:[%s3 + $0x8] sm:$0xff]
    %v209 = vld [vmem:[%s3 + $0x10] sm:$0xff]
    %v210 = vld [vmem:[%s3 + $0x18] sm:$0xff]
    %v211 = vld [vmem:[%s3 + $0x20] sm:$0xff]
    %v212 = vld [vmem:[%s5 + $0x8] sm:$0xf]
    %v213 = vld [vmem:[%s5 + $0xc] sm:$0xf]
    %v214 = vld [vmem:[%s5 + $0x10] sm:$0xf]
    %v215 = vld [vmem:[%s5 + $0x14] sm:$0xf]
    %v216 = vld [vmem:[%s5 + $0x18] sm:$0xf]
    %v217 = vld [vmem:[%s5 + $0x1c] sm:$0xf]
    %v218 = vld [vmem:[%s5 + $0x20] sm:$0xf]
    %v219 = vld [vmem:[%s5 + $0x24] sm:$0xf]
    %v220 = vld [vmem:[%s5 + $0x28] sm:$0xf]
    %v221 = vld [vmem:[%s5 + $0x2c] sm:$0xf]
    %v222 = vld [vmem:[%s5 + $0x30] sm:$0xf]
    %v223 = vld [vmem:[%s5 + $0x34] sm:$0xf]
    %v224 = vld [vmem:[%s5 + $0x38] sm:$0xf]
    %v225 = vld [vmem:[%s5 + $0x3c] sm:$0xf]
    %v226 = vld [vmem:[%s5 + $0x40] sm:$0xf]
    %v227 = vld [vmem:[%s5 + $0x44] sm:$0xf]
    %v228 = vld [vmem:[%s5 + $0x48] sm:$0xf]
    %v229 = vld [vmem:[%s5 + $0x4c] sm:$0xf]
    %v230 = vld [vmem:[%s5 + $0x50] sm:$0xf]
    %v231 = vld [vmem:[%s5 + $0x54] sm:$0xf]
    %v232 = vld [vmem:[%s5 + $0x58] sm:$0xf]
    %v233 = vld [vmem:[%s5 + $0x5c] sm:$0xf]
    %v234 = vld [vmem:[%s5 + $0x60] sm:$0xf]
    %v235 = vld [vmem:[%s5 + $0x64] sm:$0xf]
    %v236 = vld [vmem:[%s5 + $0x68] sm:$0xf]
    %v237 = vld [vmem:[%s5 + $0x6c] sm:$0xf]
    %v238 = vld [vmem:[%s5 + $0x70] sm:$0xf]
    %v239 = vld [vmem:[%s5 + $0x74] sm:$0xf]
    %vm240 = vcmask 261120
    %v241 = vsel %vm240, %v202, 0.0
    %242 = vadd.xlane.f32.xlu0 %v241
    %v243 = vpop.xlane.xlu0 %242
    %v244 = vsel %vm240, %v203, 0.0
    %245 = vadd.xlane.f32.xlu0 %v244
    %v246 = vpop.xlane.xlu0 %245
    %v247 = vsel %vm240, %v204, 0.0
    %248 = vadd.xlane.f32.xlu0 %v247
    %v249 = vpop.xlane.xlu0 %248
    %v250 = vsel %vm240, %v205, 0.0
    %251 = vadd.xlane.f32.xlu0 %v250
    %v252 = vpop.xlane.xlu0 %251
    %v253 = vsel %vm240, %v206, 0.0
    %254 = vadd.xlane.f32.xlu0 %v253
    %v255 = vpop.xlane.xlu0 %254
    %v256 = vrcp.pop 32.0
    %v257 = vmul.f32 %v243, %v256
    %v258 = vmul.f32 %v246, %v256
    %v259 = vmul.f32 %v249, %v256
    %v260 = vmul.f32 %v252, %v256
    %v261 = vmul.f32 %v255, %v256
    %v262 = vsub.f32 %v202, %v257
    %v263 = vsub.f32 %v203, %v258
    %v264 = vsub.f32 %v204, %v259
    %v265 = vsub.f32 %v205, %v260
    %v266 = vsub.f32 %v206, %v261
    %v267 = vmul.f32 %v262, %v262
    %v268 = vmul.f32 %v263, %v263
    %v269 = vmul.f32 %v264, %v264
    %v270 = vmul.f32 %v265, %v265
    %v271 = vmul.f32 %v266, %v266
    %v272 = vsel %vm240, %v267, 0.0
    %273 = vadd.xlane.f32.xlu0 %v272
    %v274 = vpop.xlane.xlu0 %273
    %v275 = vsel %vm240, %v268, 0.0
    %276 = vadd.xlane.f32.xlu0 %v275
    %v277 = vpop.xlane.xlu0 %276
    %v278 = vsel %vm240, %v269, 0.0
    %279 = vadd.xlane.f32.xlu0 %v278
    %v280 = vpop.xlane.xlu0 %279
    %v281 = vsel %vm240, %v270, 0.0
    %282 = vadd.xlane.f32.xlu0 %v281
    %v283 = vpop.xlane.xlu0 %282
    %v284 = vsel %vm240, %v271, 0.0
    %285 = vadd.xlane.f32.xlu0 %v284
    %v286 = vpop.xlane.xlu0 %285
    %v287 = vmul.f32 %v274, %v256
    %v288 = vmul.f32 %v277, %v256
    %v289 = vmul.f32 %v280, %v256
    %v290 = vmul.f32 %v283, %v256
    %v291 = vmul.f32 %v286, %v256
    %v292 = vadd.f32 %v287, 1e-05
    %v293 = vadd.f32 %v288, 1e-05
    %v294 = vadd.f32 %v289, 1e-05
    %v295 = vadd.f32 %v290, 1e-05
    %v296 = vadd.f32 %v291, 1e-05
    %v297 = vrsqrt.pop %v292
    %v298 = vrsqrt.pop %v293
    %v299 = vrsqrt.pop %v294
    %v300 = vrsqrt.pop %v295
    %v301 = vrsqrt.pop %v296
    %v302 = vmul.f32 %v262, %v297
    %v303 = vmul.f32 %v263, %v298
    %v304 = vmul.f32 %v264, %v299
    %v305 = vmul.f32 %v265, %v300
    %v306 = vmul.f32 %v266, %v301
    %v307 = vlaneseq
    %v308 = vshrl.u32 %v307, 7
    %v309 = vsub.s32 1, %v308
    %v310 = vrot.slane %v99, %v309
    %v311 = vmul.f32 %v302, %v310
    %v312 = vmul.f32 %v303, %v310
    %v313 = vmul.f32 %v304, %v310
    %v314 = vmul.f32 %v305, %v310
    %v315 = vmul.f32 %v306, %v310
    %v316 = vlaneseq
    %v317 = vshrl.u32 %v316, 7
    %v318 = vsub.s32 2, %v317
    %v319 = vrot.slane %v99, %v318
    %v320 = vadd.f32 %v311, %v319
    %v321 = vadd.f32 %v312, %v319
    %v322 = vadd.f32 %v313, %v319
    %v323 = vadd.f32 %v314, %v319
    %v324 = vadd.f32 %v315, %v319
    %v325 = vpack.c.bf16 %v321, %v320
    %v326 = vpack.c.bf16 %v323, %v322
    %v327 = vpack.c.bf16 %v324, %v324
    %v328 = vlaneseq
    %v329 = vshrl.u32 %v328, 7
    %v330 = vsub.s32 3, %v329
    %v331 = vrot.slane %v99, %v330
    %v336 = vunpack.c.l.b16 %v212
    %v337 = vunpack.c.l.b16 %v213
    %v338 = vunpack.c.l.b16 %v214
    %v339 = vunpack.c.l.b16 %v215
    %v340 = vpack.c.b16 %v337, %v336
    %v341 = vpack.c.b16 %v339, %v338
    %v345 = vsel %vm240, %v325, 0
    %v348 = vsel %vm240, %v326, 0
    %v351 = vsel %vm240, %v327, 0
    %353 = vmatprep.subr.bf16.mxu0 0
    %354 = vmatpush1.bf16.msra.mxu0 %v340
    %355 = vmatprep.subr.bf16.mxu0 0
    %356 = vmatpush1.bf16.msra.mxu0 %v341
    %357 = vmatprep.subr.bf16.mxu0 0
    %358 = vmatpush1.bf16.msra.mxu0 0
    %359 = vmatprep.subr.bf16.mxu0 0
    %360 = vmatpush1.bf16.msra.mxu0 0
    %361 = vmatprep.subr.bf16.mxu0 0
    %362 = vmatpush1.bf16.msra.mxu0 0
    %363 = vmatprep.subr.bf16.mxu0 0
    %364 = vmatpush1.bf16.msra.mxu0 0
    %365 = vmatprep.subr.bf16.mxu0 0
    %366 = vmatpush1.bf16.msra.mxu0 0
    %367 = vmatprep.subr.bf16.mxu0 0
    %368 = vmatpush1.bf16.msra.mxu0 0
    %369 = vmatprep.subr.bf16.mxu0 0
    %370 = vmatpush1.bf16.msra.mxu0 0
    %371 = vmatprep.subr.bf16.mxu0 0
    %372 = vmatpush1.bf16.msra.mxu0 0
    %373 = vmatprep.subr.bf16.mxu0 0
    %374 = vmatpush1.bf16.msra.mxu0 0
    %375 = vmatprep.subr.bf16.mxu0 0
    %376 = vmatpush1.bf16.msra.mxu0 0
    %377 = vmatprep.subr.bf16.mxu0 0
    %378 = vmatpush1.bf16.msra.mxu0 0
    %379 = vmatprep.subr.bf16.mxu0 0
    %380 = vmatpush1.bf16.msra.mxu0 0
    %381 = vmatprep.subr.bf16.mxu0 0
    %382 = vmatpush1.bf16.msra.mxu0 0
    %383 = vmatprep.subr.bf16.mxu0 0
    %384 = vmatpush1.bf16.msra.mxu0 0
    %385 = vmatprep.mubr.bf16.mxu0 0
    %386 = vmatmul.mubr.bf16.gmra.mrb[0].mxu0 %v345
    %v387 = vpop.f32.mrb[0].mxu0
    %v388 = vadd.f32 %v331, %v387
    %v389 = vpop.f32.mrb[0].mxu0
    %v390 = vpop.f32.mrb[0].mxu0
    %v391 = vadd.f32 %v331, %v390
    %v392 = vpop.f32.mrb[0].mxu0
    %393 = vmatprep.mubr.bf16.mxu0 0
    %394 = vmatmul.mubr.bf16.gmra.mrb[0].mxu0 %v348
    %v395 = vpop.f32.mrb[0].mxu0
    %v396 = vadd.f32 %v331, %v395
    %v397 = vpop.f32.mrb[0].mxu0
    %v398 = vpop.f32.mrb[0].mxu0
    %v399 = vadd.f32 %v331, %v398
    %v400 = vpop.f32.mrb[0].mxu0
    %401 = vmatprep.mubr.bf16.mxu0 0
    %402 = vmatmul.mubr.bf16.gmra.mrb[0].mxu0 %v351
    %v403 = vpop.f32.mrb[0].mxu0
    %v404 = vadd.f32 %v331, %v403
    %v405 = vpop.f32.mrb[0].mxu0
    %v406 = vpop.f32.mrb[0].mxu0
    %v407 = vpop.f32.mrb[0].mxu0
    %408 = vdwg.mxu0
    %v409 = vpack.c.bf16 %v391, %v388
    %v410 = vpack.c.bf16 %v399, %v396
    %v411 = vpack.c.bf16 %v404, %v404
    %417 = vrot.lane.b32.xlu0 %v388, 96
    %v418 = vpop.permute.xlu0 %417
    %419 = vrot.lane.b32.xlu0 %v391, 96
    %v420 = vpop.permute.xlu0 %419
    %421 = vrot.lane.b32.xlu0 %v396, 96
    %v422 = vpop.permute.xlu0 %421
    %423 = vrot.lane.b32.xlu0 %v399, 96
    %v424 = vpop.permute.xlu0 %423
    %425 = vrot.lane.b32.xlu0 %v404, 96
    %v426 = vpop.permute.xlu0 %425
    %432 = vxpose.xlu0.b32.start [1/16] %v418, 128
    %433 = vxpose.xlu0.b32.cont [2/16] %v420, 128
    %434 = vxpose.xlu0.b32.cont [3/16] %v422, 128
    %435 = vxpose.xlu0.b32.cont [4/16] %v424, 128
    %436 = vxpose.xlu0.b32.cont [5/16] %v426, 128
    %437 = vxpose.xlu0.b32.cont [6/16] 0.0, 128
    %438 = vxpose.xlu0.b32.cont [7/16] 0.0, 128
    %439 = vxpose.xlu0.b32.cont [8/16] 0.0, 128
    %440 = vxpose.xlu0.b32.cont [9/16] 0.0, 128
    %441 = vxpose.xlu0.b32.cont [10/16] 0.0, 128
    %442 = vxpose.xlu0.b32.cont [11/16] 0.0, 128
    %443 = vxpose.xlu0.b32.cont [12/16] 0.0, 128
    %444 = vxpose.xlu0.b32.cont [13/16] 0.0, 128
    %445 = vxpose.xlu0.b32.cont [14/16] 0.0, 128
    %446 = vxpose.xlu0.b32.cont [15/16] 0.0, 128
    %447 = vxpose.xlu0.b32.end [16/16] 0.0, 128
    %v448 = vpop.trf.xlu0
    %v449 = vpop.trf.xlu0
    %v450 = vpop.trf.xlu0
    %v451 = vpop.trf.xlu0
    %v452 = vpop.trf.xlu0
    %v453 = vpop.trf.xlu0
    %v454 = vpop.trf.xlu0
    %v455 = vpop.trf.xlu0
    %v456 = vpop.trf.xlu0
    %v457 = vpop.trf.xlu0
    %v458 = vpop.trf.xlu0
    %v459 = vpop.trf.xlu0
    %v460 = vpop.trf.xlu0
    %v461 = vpop.trf.xlu0
    %v462 = vpop.trf.xlu0
    %v463 = vpop.trf.xlu0
    %v464 = vpack.c.bf16 %v448, %v448
    %vm465 = vcmask 64512
    %v467 = vsel %vm465, %v409, 0
    %v470 = vsel %vm465, %v410, 0
    %v473 = vsel %vm465, %v411, 0
    %vm475 = vcmask 1043456
    %v477 = vsel %vm475, %v464, 0
    %479 = vmatprep.subr.bf16.mxu0 0
    %480 = vmatpush1.bf16.msra.mxu0 %v477
    %481 = vmatprep.subr.bf16.mxu0 0
    %482 = vmatpush1.bf16.msra.mxu0 0
    %483 = vmatprep.subr.bf16.mxu0 0
    %484 = vmatpush1.bf16.msra.mxu0 0
    %485 = vmatprep.subr.bf16.mxu0 0
    %486 = vmatpush1.bf16.msra.mxu0 0
    %487 = vmatprep.subr.bf16.mxu0 0
    %488 = vmatpush1.bf16.msra.mxu0 0
    %489 = vmatprep.subr.bf16.mxu0 0
    %490 = vmatpush1.bf16.msra.mxu0 0
    %491 = vmatprep.subr.bf16.mxu0 0
    %492 = vmatpush1.bf16.msra.mxu0 0
    %493 = vmatprep.subr.bf16.mxu0 0
    %494 = vmatpush1.bf16.msra.mxu0 0
    %495 = vmatprep.subr.bf16.mxu0 0
    %496 = vmatpush1.bf16.msra.mxu0 0
    %497 = vmatprep.subr.bf16.mxu0 0
    %498 = vmatpush1.bf16.msra.mxu0 0
    %499 = vmatprep.subr.bf16.mxu0 0
    %500 = vmatpush1.bf16.msra.mxu0 0
    %501 = vmatprep.subr.bf16.mxu0 0
    %502 = vmatpush1.bf16.msra.mxu0 0
    %503 = vmatprep.subr.bf16.mxu0 0
    %504 = vmatpush1.bf16.msra.mxu0 0
    %505 = vmatprep.subr.bf16.mxu0 0
    %506 = vmatpush1.bf16.msra.mxu0 0
    %507 = vmatprep.subr.bf16.mxu0 0
    %508 = vmatpush1.bf16.msra.mxu0 0
    %509 = vmatprep.subr.bf16.mxu0 0
    %510 = vmatpush1.bf16.msra.mxu0 0
    %511 = vmatprep.mubr.bf16.mxu0 0
    %512 = vmatmul.mubr.bf16.gmra.mrb[0].mxu0 %v467
    %v513 = vpop.f32.mrb[0].mxu0
    %v514 = vadd.f32 0.0, %v513
    %v515 = vpop.f32.mrb[0].mxu0
    %v516 = vpop.f32.mrb[0].mxu0
    %v517 = vadd.f32 0.0, %v516
    %v518 = vpop.f32.mrb[0].mxu0
    %519 = vmatprep.mubr.bf16.mxu0 0
    %520 = vmatmul.mubr.bf16.gmra.mrb[0].mxu0 %v470
    %v521 = vpop.f32.mrb[0].mxu0
    %v522 = vadd.f32 0.0, %v521
    %v523 = vpop.f32.mrb[0].mxu0
    %v524 = vpop.f32.mrb[0].mxu0
    %v525 = vadd.f32 0.0, %v524
    %v526 = vpop.f32.mrb[0].mxu0
    %527 = vmatprep.mubr.bf16.mxu0 0
    %528 = vmatmul.mubr.bf16.gmra.mrb[0].mxu0 %v473
    %v529 = vpop.f32.mrb[0].mxu0
    %v530 = vadd.f32 0.0, %v529
    %v531 = vpop.f32.mrb[0].mxu0
    %v532 = vpop.f32.mrb[0].mxu0
    %v533 = vpop.f32.mrb[0].mxu0
    %534 = vdwg.mxu0
    %v535 = vmul.f32 %v514, 0.35355338
    %v536 = vmul.f32 %v517, 0.35355338
    %v537 = vmul.f32 %v522, 0.35355338
    %v538 = vmul.f32 %v525, 0.35355338
    %v539 = vmul.f32 %v530, 0.35355338
    %v540 = vadd.f32 %v535, %v207
    %v541 = vadd.f32 %v536, %v208
    %v542 = vadd.f32 %v537, %v209
    %v543 = vadd.f32 %v538, %v210
    %v544 = vadd.f32 %v539, %v211
    %vm545 = vcmask 326656
    %v546 = vsel %vm545, %v540, -inf
    %547 = vmax.xlane.f32.xlu0 %v546
    %v548 = vpop.xlane.xlu0 %547
    %v549 = vsel %vm545, %v541, -inf
    %550 = vmax.xlane.f32.xlu0 %v549
    %v551 = vpop.xlane.xlu0 %550
    %v552 = vsel %vm545, %v542, -inf
    %553 = vmax.xlane.f32.xlu0 %v552
    %v554 = vpop.xlane.xlu0 %553
    %v555 = vsel %vm545, %v543, -inf
    %556 = vmax.xlane.f32.xlu0 %v555
    %v557 = vpop.xlane.xlu0 %556
    %v558 = vsel %vm545, %v544, -inf
    %559 = vmax.xlane.f32.xlu0 %v558
    %v560 = vpop.xlane.xlu0 %559
    %v561 = vsub.f32 %v540, %v548
    %v562 = vsub.f32 %v541, %v551
    %v563 = vsub.f32 %v542, %v554
    %v564 = vsub.f32 %v543, %v557
    %v565 = vsub.f32 %v544, %v560
    %v566 = vmul.f32 %v561, 1.442695
    %v567 = vpow.pop %v566
    %v568 = vmul.f32 %v562, 1.442695
    %v569 = vpow.pop %v568
    %v570 = vmul.f32 %v563, 1.442695
    %v571 = vpow.pop %v570
    %v572 = vmul.f32 %v564, 1.442695
    %v573 = vpow.pop %v572
    %v574 = vmul.f32 %v565, 1.442695
    %v575 = vpow.pop %v574
    %v576 = vsel %vm545, %v567, 0.0
    %577 = vadd.xlane.f32.xlu0 %v576
    %v578 = vpop.xlane.xlu0 %577
    %v579 = vsel %vm545, %v569, 0.0
    %580 = vadd.xlane.f32.xlu0 %v579
    %v581 = vpop.xlane.xlu0 %580
    %v582 = vsel %vm545, %v571, 0.0
    %583 = vadd.xlane.f32.xlu0 %v582
    %v584 = vpop.xlane.xlu0 %583
    %v585 = vsel %vm545, %v573, 0.0
    %586 = vadd.xlane.f32.xlu0 %v585
    %v587 = vpop.xlane.xlu0 %586
    %v588 = vsel %vm545, %v575, 0.0
    %589 = vadd.xlane.f32.xlu0 %v588
    %v590 = vpop.xlane.xlu0 %589
    %v591 = vrcp.pop %v578
    %v592 = vrcp.pop %v581
    %v593 = vrcp.pop %v584
    %v594 = vrcp.pop %v587
    %v595 = vrcp.pop %v590
    %v596 = vmul.f32 %v567, %v591
    %v597 = vmul.f32 %v569, %v592
    %v598 = vmul.f32 %v571, %v593
    %v599 = vmul.f32 %v573, %v594
    %v600 = vmul.f32 %v575, %v595
    %v601 = vpack.c.bf16 %v597, %v596
    %v602 = vpack.c.bf16 %v599, %v598
    %v603 = vpack.c.bf16 %v600, %v600
    %607 = vrot.lane.b32.xlu0 %v409, 64
    %v608 = vpop.permute.xlu0 %607
    %609 = vrot.lane.b32.xlu0 %v410, 64
    %v610 = vpop.permute.xlu0 %609
    %611 = vrot.lane.b32.xlu0 %v411, 64
    %v612 = vpop.permute.xlu0 %611
    %v616 = vsel %vm545, %v601, 0
    %v619 = vsel %vm545, %v602, 0
    %v622 = vsel %vm545, %v603, 0
    %v625 = vsel %vm475, %v612, 0
    %627 = vmatprep.subr.bf16.mxu0 0
    %628 = vmatpush1.bf16.msra.mxu0 %v608
    %629 = vmatprep.subr.bf16.mxu0 0
    %630 = vmatpush1.bf16.msra.mxu0 %v610
    %631 = vmatprep.subr.bf16.mxu0 0
    %632 = vmatpush1.bf16.msra.mxu0 %v625
    %633 = vmatprep.subr.bf16.mxu0 0
    %634 = vmatpush1.bf16.msra.mxu0 0
    %635 = vmatprep.subr.bf16.mxu0 0
    %636 = vmatpush1.bf16.msra.mxu0 0
    %637 = vmatprep.subr.bf16.mxu0 0
    %638 = vmatpush1.bf16.msra.mxu0 0
    %639 = vmatprep.subr.bf16.mxu0 0
    %640 = vmatpush1.bf16.msra.mxu0 0
    %641 = vmatprep.subr.bf16.mxu0 0
    %642 = vmatpush1.bf16.msra.mxu0 0
    %643 = vmatprep.subr.bf16.mxu0 0
    %644 = vmatpush1.bf16.msra.mxu0 0
    %645 = vmatprep.subr.bf16.mxu0 0
    %646 = vmatpush1.bf16.msra.mxu0 0
    %647 = vmatprep.subr.bf16.mxu0 0
    %648 = vmatpush1.bf16.msra.mxu0 0
    %649 = vmatprep.subr.bf16.mxu0 0
    %650 = vmatpush1.bf16.msra.mxu0 0
    %651 = vmatprep.subr.bf16.mxu0 0
    %652 = vmatpush1.bf16.msra.mxu0 0
    %653 = vmatprep.subr.bf16.mxu0 0
    %654 = vmatpush1.bf16.msra.mxu0 0
    %655 = vmatprep.subr.bf16.mxu0 0
    %656 = vmatpush1.bf16.msra.mxu0 0
    %657 = vmatprep.subr.bf16.mxu0 0
    %658 = vmatpush1.bf16.msra.mxu0 0
    %659 = vmatprep.mubr.bf16.mxu0 0
    %660 = vmatmul.mubr.bf16.gmra.mrb[0].mxu0 %v616
    %v661 = vpop.f32.mrb[0].mxu0
    %v662 = vadd.f32 0.0, %v661
    %v663 = vpop.f32.mrb[0].mxu0
    %v664 = vpop.f32.mrb[0].mxu0
    %v665 = vadd.f32 0.0, %v664
    %v666 = vpop.f32.mrb[0].mxu0
    %667 = vmatprep.mubr.bf16.mxu0 0
    %668 = vmatmul.mubr.bf16.gmra.mrb[0].mxu0 %v619
    %v669 = vpop.f32.mrb[0].mxu0
    %v670 = vadd.f32 0.0, %v669
    %v671 = vpop.f32.mrb[0].mxu0
    %v672 = vpop.f32.mrb[0].mxu0
    %v673 = vadd.f32 0.0, %v672
    %v674 = vpop.f32.mrb[0].mxu0
    %675 = vmatprep.mubr.bf16.mxu0 0
    %676 = vmatmul.mubr.bf16.gmra.mrb[0].mxu0 %v622
    %v677 = vpop.f32.mrb[0].mxu0
    %v678 = vadd.f32 0.0, %v677
    %v679 = vpop.f32.mrb[0].mxu0
    %v680 = vpop.f32.mrb[0].mxu0
    %v681 = vpop.f32.mrb[0].mxu0
    %682 = vdwg.mxu0
    %683 = vrot.lane.b32.xlu0 %v388, 88
    %v684 = vpop.permute.xlu0 %683
    %685 = vrot.lane.b32.xlu0 %v391, 88
    %v686 = vpop.permute.xlu0 %685
    %687 = vrot.lane.b32.xlu0 %v396, 88
    %v688 = vpop.permute.xlu0 %687
    %689 = vrot.lane.b32.xlu0 %v399, 88
    %v690 = vpop.permute.xlu0 %689
    %691 = vrot.lane.b32.xlu0 %v404, 88
    %v692 = vpop.permute.xlu0 %691
    %698 = vxpose.xlu0.b32.start [1/16] %v684, 128
    %699 = vxpose.xlu0.b32.cont [2/16] %v686, 128
    %700 = vxpose.xlu0.b32.cont [3/16] %v688, 128
    %701 = vxpose.xlu0.b32.cont [4/16] %v690, 128
    %702 = vxpose.xlu0.b32.cont [5/16] %v692, 128
    %703 = vxpose.xlu0.b32.cont [6/16] 0.0, 128
    %704 = vxpose.xlu0.b32.cont [7/16] 0.0, 128
    %705 = vxpose.xlu0.b32.cont [8/16] 0.0, 128
    %706 = vxpose.xlu0.b32.cont [9/16] 0.0, 128
    %707 = vxpose.xlu0.b32.cont [10/16] 0.0, 128
    %708 = vxpose.xlu0.b32.cont [11/16] 0.0, 128
    %709 = vxpose.xlu0.b32.cont [12/16] 0.0, 128
    %710 = vxpose.xlu0.b32.cont [13/16] 0.0, 128
    %711 = vxpose.xlu0.b32.cont [14/16] 0.0, 128
    %712 = vxpose.xlu0.b32.cont [15/16] 0.0, 128
    %713 = vxpose.xlu0.b32.end [16/16] 0.0, 128
    %v714 = vpop.trf.xlu0
    %v715 = vpop.trf.xlu0
    %v716 = vpop.trf.xlu0
    %v717 = vpop.trf.xlu0
    %v718 = vpop.trf.xlu0
    %v719 = vpop.trf.xlu0
    %v720 = vpop.trf.xlu0
    %v721 = vpop.trf.xlu0
    %v722 = vpop.trf.xlu0
    %v723 = vpop.trf.xlu0
    %v724 = vpop.trf.xlu0
    %v725 = vpop.trf.xlu0
    %v726 = vpop.trf.xlu0
    %v727 = vpop.trf.xlu0
    %v728 = vpop.trf.xlu0
    %v729 = vpop.trf.xlu0
    %v730 = vpack.c.bf16 %v714, %v714
    %731 = vrot.lane.b32.xlu0 %v409, 120
    %v732 = vpop.permute.xlu0 %731
    %733 = vrot.lane.b32.xlu0 %v410, 120
    %v734 = vpop.permute.xlu0 %733
    %735 = vrot.lane.b32.xlu0 %v411, 120
    %v736 = vpop.permute.xlu0 %735
    %v738 = vsel %vm465, %v732, 0
    %v741 = vsel %vm465, %v734, 0
    %v744 = vsel %vm465, %v736, 0
    %v747 = vsel %vm475, %v730, 0
    %749 = vmatprep.subr.bf16.mxu0 0
    %750 = vmatpush1.bf16.msra.mxu0 %v747
    %751 = vmatprep.subr.bf16.mxu0 0
    %752 = vmatpush1.bf16.msra.mxu0 0
    %753 = vmatprep.subr.bf16.mxu0 0
    %754 = vmatpush1.bf16.msra.mxu0 0
    %755 = vmatprep.subr.bf16.mxu0 0
    %756 = vmatpush1.bf16.msra.mxu0 0
    %757 = vmatprep.subr.bf16.mxu0 0
    %758 = vmatpush1.bf16.msra.mxu0 0
    %759 = vmatprep.subr.bf16.mxu0 0
    %760 = vmatpush1.bf16.msra.mxu0 0
    %761 = vmatprep.subr.bf16.mxu0 0
    %762 = vmatpush1.bf16.msra.mxu0 0
    %763 = vmatprep.subr.bf16.mxu0 0
    %764 = vmatpush1.bf16.msra.mxu0 0
    %765 = vmatprep.subr.bf16.mxu0 0
    %766 = vmatpush1.bf16.msra.mxu0 0
    %767 = vmatprep.subr.bf16.mxu0 0
    %768 = vmatpush1.bf16.msra.mxu0 0
    %769 = vmatprep.subr.bf16.mxu0 0
    %770 = vmatpush1.bf16.msra.mxu0 0
    %771 = vmatprep.subr.bf16.mxu0 0
    %772 = vmatpush1.bf16.msra.mxu0 0
    %773 = vmatprep.subr.bf16.mxu0 0
    %774 = vmatpush1.bf16.msra.mxu0 0
    %775 = vmatprep.subr.bf16.mxu0 0
    %776 = vmatpush1.bf16.msra.mxu0 0
    %777 = vmatprep.subr.bf16.mxu0 0
    %778 = vmatpush1.bf16.msra.mxu0 0
    %779 = vmatprep.subr.bf16.mxu0 0
    %780 = vmatpush1.bf16.msra.mxu0 0
    %781 = vmatprep.mubr.bf16.mxu0 0
    %782 = vmatmul.mubr.bf16.gmra.mrb[0].mxu0 %v738
    %v783 = vpop.f32.mrb[0].mxu0
    %v784 = vadd.f32 0.0, %v783
    %v785 = vpop.f32.mrb[0].mxu0
    %v786 = vpop.f32.mrb[0].mxu0
    %v787 = vadd.f32 0.0, %v786
    %v788 = vpop.f32.mrb[0].mxu0
    %789 = vmatprep.mubr.bf16.mxu0 0
    %790 = vmatmul.mubr.bf16.gmra.mrb[0].mxu0 %v741
    %v791 = vpop.f32.mrb[0].mxu0
    %v792 = vadd.f32 0.0, %v791
    %v793 = vpop.f32.mrb[0].mxu0
    %v794 = vpop.f32.mrb[0].mxu0
    %v795 = vadd.f32 0.0, %v794
    %v796 = vpop.f32.mrb[0].mxu0
    %797 = vmatprep.mubr.bf16.mxu0 0
    %798 = vmatmul.mubr.bf16.gmra.mrb[0].mxu0 %v744
    %v799 = vpop.f32.mrb[0].mxu0
    %v800 = vadd.f32 0.0, %v799
    %v801 = vpop.f32.mrb[0].mxu0
    %v802 = vpop.f32.mrb[0].mxu0
    %v803 = vpop.f32.mrb[0].mxu0
    %804 = vdwg.mxu0
    %v805 = vmul.f32 %v784, 0.35355338
    %v806 = vmul.f32 %v787, 0.35355338
    %v807 = vmul.f32 %v792, 0.35355338
    %v808 = vmul.f32 %v795, 0.35355338
    %v809 = vmul.f32 %v800, 0.35355338
    %v810 = vadd.f32 %v805, %v207
    %v811 = vadd.f32 %v806, %v208
    %v812 = vadd.f32 %v807, %v209
    %v813 = vadd.f32 %v808, %v210
    %v814 = vadd.f32 %v809, %v211
    %v815 = vsel %vm545, %v810, -inf
    %816 = vmax.xlane.f32.xlu0 %v815
    %v817 = vpop.xlane.xlu0 %816
    %v818 = vsel %vm545, %v811, -inf
    %819 = vmax.xlane.f32.xlu0 %v818
    %v820 = vpop.xlane.xlu0 %819
    %v821 = vsel %vm545, %v812, -inf
    %822 = vmax.xlane.f32.xlu0 %v821
    %v823 = vpop.xlane.xlu0 %822
    %v824 = vsel %vm545, %v813, -inf
    %825 = vmax.xlane.f32.xlu0 %v824
    %v826 = vpop.xlane.xlu0 %825
    %v827 = vsel %vm545, %v814, -inf
    %828 = vmax.xlane.f32.xlu0 %v827
    %v829 = vpop.xlane.xlu0 %828
    %v830 = vsub.f32 %v810, %v817
    %v831 = vsub.f32 %v811, %v820
    %v832 = vsub.f32 %v812, %v823
    %v833 = vsub.f32 %v813, %v826
    %v834 = vsub.f32 %v814, %v829
    %v835 = vmul.f32 %v830, 1.442695
    %v836 = vpow.pop %v835
    %v837 = vmul.f32 %v831, 1.442695
    %v838 = vpow.pop %v837
    %v839 = vmul.f32 %v832, 1.442695
    %v840 = vpow.pop %v839
    %v841 = vmul.f32 %v833, 1.442695
    %v842 = vpow.pop %v841
    %v843 = vmul.f32 %v834, 1.442695
    %v844 = vpow.pop %v843
    %v845 = vsel %vm545, %v836, 0.0
    %846 = vadd.xlane.f32.xlu0 %v845
    %v847 = vpop.xlane.xlu0 %846
    %v848 = vsel %vm545, %v838, 0.0
    %849 = vadd.xlane.f32.xlu0 %v848
    %v850 = vpop.xlane.xlu0 %849
    %v851 = vsel %vm545, %v840, 0.0
    %852 = vadd.xlane.f32.xlu0 %v851
    %v853 = vpop.xlane.xlu0 %852
    %v854 = vsel %vm545, %v842, 0.0
    %855 = vadd.xlane.f32.xlu0 %v854
    %v856 = vpop.xlane.xlu0 %855
    %v857 = vsel %vm545, %v844, 0.0
    %858 = vadd.xlane.f32.xlu0 %v857
    %v859 = vpop.xlane.xlu0 %858
    %v860 = vrcp.pop %v847
    %v861 = vrcp.pop %v850
    %v862 = vrcp.pop %v853
    %v863 = vrcp.pop %v856
    %v864 = vrcp.pop %v859
    %v865 = vmul.f32 %v836, %v860
    %v866 = vmul.f32 %v838, %v861
    %v867 = vmul.f32 %v840, %v862
    %v868 = vmul.f32 %v842, %v863
    %v869 = vmul.f32 %v844, %v864
    %v870 = vpack.c.bf16 %v866, %v865
    %v871 = vpack.c.bf16 %v868, %v867
    %v872 = vpack.c.bf16 %v869, %v869
    %873 = vrot.lane.b32.xlu0 %v409, 56
    %v874 = vpop.permute.xlu0 %873
    %875 = vrot.lane.b32.xlu0 %v410, 56
    %v876 = vpop.permute.xlu0 %875
    %877 = vrot.lane.b32.xlu0 %v411, 56
    %v878 = vpop.permute.xlu0 %877
    %v882 = vsel %vm545, %v870, 0
    %v885 = vsel %vm545, %v871, 0
    %v888 = vsel %vm545, %v872, 0
    %v891 = vsel %vm475, %v878, 0
    %893 = vmatprep.subr.bf16.mxu0 0
    %894 = vmatpush1.bf16.msra.mxu0 %v874
    %895 = vmatprep.subr.bf16.mxu0 0
    %896 = vmatpush1.bf16.msra.mxu0 %v876
    %897 = vmatprep.subr.bf16.mxu0 0
    %898 = vmatpush1.bf16.msra.mxu0 %v891
    %899 = vmatprep.subr.bf16.mxu0 0
    %900 = vmatpush1.bf16.msra.mxu0 0
    %901 = vmatprep.subr.bf16.mxu0 0
    %902 = vmatpush1.bf16.msra.mxu0 0
    %903 = vmatprep.subr.bf16.mxu0 0
    %904 = vmatpush1.bf16.msra.mxu0 0
    %905 = vmatprep.subr.bf16.mxu0 0
    %906 = vmatpush1.bf16.msra.mxu0 0
    %907 = vmatprep.subr.bf16.mxu0 0
    %908 = vmatpush1.bf16.msra.mxu0 0
    %909 = vmatprep.subr.bf16.mxu0 0
    %910 = vmatpush1.bf16.msra.mxu0 0
    %911 = vmatprep.subr.bf16.mxu0 0
    %912 = vmatpush1.bf16.msra.mxu0 0
    %913 = vmatprep.subr.bf16.mxu0 0
    %914 = vmatpush1.bf16.msra.mxu0 0
    %915 = vmatprep.subr.bf16.mxu0 0
    %916 = vmatpush1.bf16.msra.mxu0 0
    %917 = vmatprep.subr.bf16.mxu0 0
    %918 = vmatpush1.bf16.msra.mxu0 0
    %919 = vmatprep.subr.bf16.mxu0 0
    %920 = vmatpush1.bf16.msra.mxu0 0
    %921 = vmatprep.subr.bf16.mxu0 0
    %922 = vmatpush1.bf16.msra.mxu0 0
    %923 = vmatprep.subr.bf16.mxu0 0
    %924 = vmatpush1.bf16.msra.mxu0 0
    %925 = vmatprep.mubr.bf16.mxu0 0
    %926 = vmatmul.mubr.bf16.gmra.mrb[0].mxu0 %v882
    %v927 = vpop.f32.mrb[0].mxu0
    %v928 = vadd.f32 0.0, %v927
    %v929 = vpop.f32.mrb[0].mxu0
    %v930 = vpop.f32.mrb[0].mxu0
    %v931 = vadd.f32 0.0, %v930
    %v932 = vpop.f32.mrb[0].mxu0
    %933 = vmatprep.mubr.bf16.mxu0 0
    %934 = vmatmul.mubr.bf16.gmra.mrb[0].mxu0 %v885
    %v935 = vpop.f32.mrb[0].mxu0
    %v936 = vadd.f32 0.0, %v935
    %v937 = vpop.f32.mrb[0].mxu0
    %v938 = vpop.f32.mrb[0].mxu0
    %v939 = vadd.f32 0.0, %v938
    %v940 = vpop.f32.mrb[0].mxu0
    %941 = vmatprep.mubr.bf16.mxu0 0
    %942 = vmatmul.mubr.bf16.gmra.mrb[0].mxu0 %v888
    %v943 = vpop.f32.mrb[0].mxu0
    %v944 = vadd.f32 0.0, %v943
    %v945 = vpop.f32.mrb[0].mxu0
    %v946 = vpop.f32.mrb[0].mxu0
    %v947 = vpop.f32.mrb[0].mxu0
    %948 = vdwg.mxu0
    %949 = vrot.lane.b32.xlu0 %v388, 80
    %v950 = vpop.permute.xlu0 %949
    %951 = vrot.lane.b32.xlu0 %v391, 80
    %v952 = vpop.permute.xlu0 %951
    %953 = vrot.lane.b32.xlu0 %v396, 80
    %v954 = vpop.permute.xlu0 %953
    %955 = vrot.lane.b32.xlu0 %v399, 80
    %v956 = vpop.permute.xlu0 %955
    %957 = vrot.lane.b32.xlu0 %v404, 80
    %v958 = vpop.permute.xlu0 %957
    %964 = vxpose.xlu0.b32.start [1/16] %v950, 128
    %965 = vxpose.xlu0.b32.cont [2/16] %v952, 128
    %966 = vxpose.xlu0.b32.cont [3/16] %v954, 128
    %967 = vxpose.xlu0.b32.cont [4/16] %v956, 128
    %968 = vxpose.xlu0.b32.cont [5/16] %v958, 128
    %969 = vxpose.xlu0.b32.cont [6/16] 0.0, 128
    %970 = vxpose.xlu0.b32.cont [7/16] 0.0, 128
    %971 = vxpose.xlu0.b32.cont [8/16] 0.0, 128
    %972 = vxpose.xlu0.b32.cont [9/16] 0.0, 128
    %973 = vxpose.xlu0.b32.cont [10/16] 0.0, 128
    %974 = vxpose.xlu0.b32.cont [11/16] 0.0, 128
    %975 = vxpose.xlu0.b32.cont [12/16] 0.0, 128
    %976 = vxpose.xlu0.b32.cont [13/16] 0.0, 128
    %977 = vxpose.xlu0.b32.cont [14/16] 0.0, 128
    %978 = vxpose.xlu0.b32.cont [15/16] 0.0, 128
    %979 = vxpose.xlu0.b32.end [16/16] 0.0, 128
    %v980 = vpop.trf.xlu0
    %v981 = vpop.trf.xlu0
    %v982 = vpop.trf.xlu0
    %v983 = vpop.trf.xlu0
    %v984 = vpop.trf.xlu0
    %v985 = vpop.trf.xlu0
    %v986 = vpop.trf.xlu0
    %v987 = vpop.trf.xlu0
    %v988 = vpop.trf.xlu0
    %v989 = vpop.trf.xlu0
    %v990 = vpop.trf.xlu0
    %v991 = vpop.trf.xlu0
    %v992 = vpop.trf.xlu0
    %v993 = vpop.trf.xlu0
    %v994 = vpop.trf.xlu0
    %v995 = vpop.trf.xlu0
    %v996 = vpack.c.bf16 %v980, %v980
    %997 = vrot.lane.b32.xlu0 %v409, 112
    %v998 = vpop.permute.xlu0 %997
    %999 = vrot.lane.b32.xlu0 %v410, 112
    %v1000 = vpop.permute.xlu0 %999
    %1001 = vrot.lane.b32.xlu0 %v411, 112
    %v1002 = vpop.permute.xlu0 %1001
    %v1004 = vsel %vm465, %v998, 0
    %v1007 = vsel %vm465, %v1000, 0
    %v1010 = vsel %vm465, %v1002, 0
    %v1013 = vsel %vm475, %v996, 0
    %1015 = vmatprep.subr.bf16.mxu0 0
    %1016 = vmatpush1.bf16.msra.mxu0 %v1013
    %1017 = vmatprep.subr.bf16.mxu0 0
    %1018 = vmatpush1.bf16.msra.mxu0 0
    %1019 = vmatprep.subr.bf16.mxu0 0
    %1020 = vmatpush1.bf16.msra.mxu0 0
    %1021 = vmatprep.subr.bf16.mxu0 0
    %1022 = vmatpush1.bf16.msra.mxu0 0
    %1023 = vmatprep.subr.bf16.mxu0 0
    %1024 = vmatpush1.bf16.msra.mxu0 0
    %1025 = vmatprep.subr.bf16.mxu0 0
    %1026 = vmatpush1.bf16.msra.mxu0 0
    %1027 = vmatprep.subr.bf16.mxu0 0
    %1028 = vmatpush1.bf16.msra.mxu0 0
    %1029 = vmatprep.subr.bf16.mxu0 0
    %1030 = vmatpush1.bf16.msra.mxu0 0
    %1031 = vmatprep.subr.bf16.mxu0 0
    %1032 = vmatpush1.bf16.msra.mxu0 0
    %1033 = vmatprep.subr.bf16.mxu0 0
    %1034 = vmatpush1.bf16.msra.mxu0 0
    %1035 = vmatprep.subr.bf16.mxu0 0
    %1036 = vmatpush1.bf16.msra.mxu0 0
    %1037 = vmatprep.subr.bf16.mxu0 0
    %1038 = vmatpush1.bf16.msra.mxu0 0
    %1039 = vmatprep.subr.bf16.mxu0 0
    %1040 = vmatpush1.bf16.msra.mxu0 0
    %1041 = vmatprep.subr.bf16.mxu0 0
    %1042 = vmatpush1.bf16.msra.mxu0 0
    %1043 = vmatprep.subr.bf16.mxu0 0
    %1044 = vmatpush1.bf16.msra.mxu0 0
    %1045 = vmatprep.subr.bf16.mxu0 0
    %1046 = vmatpush1.bf16.msra.mxu0 0
    %1047 = vmatprep.mubr.bf16.mxu0 0
    %1048 = vmatmul.mubr.bf16.gmra.mrb[0].mxu0 %v1004
    %v1049 = vpop.f32.mrb[0].mxu0
    %v1050 = vadd.f32 0.0, %v1049
    %v1051 = vpop.f32.mrb[0].mxu0
    %v1052 = vpop.f32.mrb[0].mxu0
    %v1053 = vadd.f32 0.0, %v1052
    %v1054 = vpop.f32.mrb[0].mxu0
    %1055 = vmatprep.mubr.bf16.mxu0 0
    %1056 = vmatmul.mubr.bf16.gmra.mrb[0].mxu0 %v1007
    %v1057 = vpop.f32.mrb[0].mxu0
    %v1058 = vadd.f32 0.0, %v1057
    %v1059 = vpop.f32.mrb[0].mxu0
    %v1060 = vpop.f32.mrb[0].mxu0
    %v1061 = vadd.f32 0.0, %v1060
    %v1062 = vpop.f32.mrb[0].mxu0
    %1063 = vmatprep.mubr.bf16.mxu0 0
    %1064 = vmatmul.mubr.bf16.gmra.mrb[0].mxu0 %v1010
    %v1065 = vpop.f32.mrb[0].mxu0
    %v1066 = vadd.f32 0.0, %v1065
    %v1067 = vpop.f32.mrb[0].mxu0
    %v1068 = vpop.f32.mrb[0].mxu0
    %v1069 = vpop.f32.mrb[0].mxu0
    %1070 = vdwg.mxu0
    %v1071 = vmul.f32 %v1050, 0.35355338
    %v1072 = vmul.f32 %v1053, 0.35355338
    %v1073 = vmul.f32 %v1058, 0.35355338
    %v1074 = vmul.f32 %v1061, 0.35355338
    %v1075 = vmul.f32 %v1066, 0.35355338
    %v1076 = vadd.f32 %v1071, %v207
    %v1077 = vadd.f32 %v1072, %v208
    %v1078 = vadd.f32 %v1073, %v209
    %v1079 = vadd.f32 %v1074, %v210
    %v1080 = vadd.f32 %v1075, %v211
    %v1081 = vsel %vm545, %v1076, -inf
    %1082 = vmax.xlane.f32.xlu0 %v1081
    %v1083 = vpop.xlane.xlu0 %1082
    %v1084 = vsel %vm545, %v1077, -inf
    %1085 = vmax.xlane.f32.xlu0 %v1084
    %v1086 = vpop.xlane.xlu0 %1085
    %v1087 = vsel %vm545, %v1078, -inf
    %1088 = vmax.xlane.f32.xlu0 %v1087
    %v1089 = vpop.xlane.xlu0 %1088
    %v1090 = vsel %vm545, %v1079, -inf
    %1091 = vmax.xlane.f32.xlu0 %v1090
    %v1092 = vpop.xlane.xlu0 %1091
    %v1093 = vsel %vm545, %v1080, -inf
    %1094 = vmax.xlane.f32.xlu0 %v1093
    %v1095 = vpop.xlane.xlu0 %1094
    %v1096 = vsub.f32 %v1076, %v1083
    %v1097 = vsub.f32 %v1077, %v1086
    %v1098 = vsub.f32 %v1078, %v1089
    %v1099 = vsub.f32 %v1079, %v1092
    %v1100 = vsub.f32 %v1080, %v1095
    %v1101 = vmul.f32 %v1096, 1.442695
    %v1102 = vpow.pop %v1101
    %v1103 = vmul.f32 %v1097, 1.442695
    %v1104 = vpow.pop %v1103
    %v1105 = vmul.f32 %v1098, 1.442695
    %v1106 = vpow.pop %v1105
    %v1107 = vmul.f32 %v1099, 1.442695
    %v1108 = vpow.pop %v1107
    %v1109 = vmul.f32 %v1100, 1.442695
    %v1110 = vpow.pop %v1109
    %v1111 = vsel %vm545, %v1102, 0.0
    %1112 = vadd.xlane.f32.xlu0 %v1111
    %v1113 = vpop.xlane.xlu0 %1112
    %v1114 = vsel %vm545, %v1104, 0.0
    %1115 = vadd.xlane.f32.xlu0 %v1114
    %v1116 = vpop.xlane.xlu0 %1115
    %v1117 = vsel %vm545, %v1106, 0.0
    %1118 = vadd.xlane.f32.xlu0 %v1117
    %v1119 = vpop.xlane.xlu0 %1118
    %v1120 = vsel %vm545, %v1108, 0.0
    %1121 = vadd.xlane.f32.xlu0 %v1120
    %v1122 = vpop.xlane.xlu0 %1121
    %v1123 = vsel %vm545, %v1110, 0.0
    %1124 = vadd.xlane.f32.xlu0 %v1123
    %v1125 = vpop.xlane.xlu0 %1124
    %v1126 = vrcp.pop %v1113
    %v1127 = vrcp.pop %v1116
    %v1128 = vrcp.pop %v1119
    %v1129 = vrcp.pop %v1122
    %v1130 = vrcp.pop %v1125
    %v1131 = vmul.f32 %v1102, %v1126
    %v1132 = vmul.f32 %v1104, %v1127
    %v1133 = vmul.f32 %v1106, %v1128
    %v1134 = vmul.f32 %v1108, %v1129
    %v1135 = vmul.f32 %v1110, %v1130
    %v1136 = vpack.c.bf16 %v1132, %v1131
    %v1137 = vpack.c.bf16 %v1134, %v1133
    %v1138 = vpack.c.bf16 %v1135, %v1135
    %1139 = vrot.lane.b32.xlu0 %v409, 48
    %v1140 = vpop.permute.xlu0 %1139
    %1141 = vrot.lane.b32.xlu0 %v410, 48
    %v1142 = vpop.permute.xlu0 %1141
    %1143 = vrot.lane.b32.xlu0 %v411, 48
    %v1144 = vpop.permute.xlu0 %1143
    %v1148 = vsel %vm545, %v1136, 0
    %v1151 = vsel %vm545, %v1137, 0
    %v1154 = vsel %vm545, %v1138, 0
    %v1157 = vsel %vm475, %v1144, 0
    %1159 = vmatprep.subr.bf16.mxu0 0
    %1160 = vmatpush1.bf16.msra.mxu0 %v1140
    %1161 = vmatprep.subr.bf16.mxu0 0
    %1162 = vmatpush1.bf16.msra.mxu0 %v1142
    %1163 = vmatprep.subr.bf16.mxu0 0
    %1164 = vmatpush1.bf16.msra.mxu0 %v1157
    %1165 = vmatprep.subr.bf16.mxu0 0
    %1166 = vmatpush1.bf16.msra.mxu0 0
    %1167 = vmatprep.subr.bf16.mxu0 0
    %1168 = vmatpush1.bf16.msra.mxu0 0
    %1169 = vmatprep.subr.bf16.mxu0 0
    %1170 = vmatpush1.bf16.msra.mxu0 0
    %1171 = vmatprep.subr.bf16.mxu0 0
    %1172 = vmatpush1.bf16.msra.mxu0 0
    %1173 = vmatprep.subr.bf16.mxu0 0
    %1174 = vmatpush1.bf16.msra.mxu0 0
    %1175 = vmatprep.subr.bf16.mxu0 0
    %1176 = vmatpush1.bf16.msra.mxu0 0
    %1177 = vmatprep.subr.bf16.mxu0 0
    %1178 = vmatpush1.bf16.msra.mxu0 0
    %1179 = vmatprep.subr.bf16.mxu0 0
    %1180 = vmatpush1.bf16.msra.mxu0 0
    %1181 = vmatprep.subr.bf16.mxu0 0
    %1182 = vmatpush1.bf16.msra.mxu0 0
    %1183 = vmatprep.subr.bf16.mxu0 0
    %1184 = vmatpush1.bf16.msra.mxu0 0
    %1185 = vmatprep.subr.bf16.mxu0 0
    %1186 = vmatpush1.bf16.msra.mxu0 0
    %1187 = vmatprep.subr.bf16.mxu0 0
    %1188 = vmatpush1.bf16.msra.mxu0 0
    %1189 = vmatprep.subr.bf16.mxu0 0
    %1190 = vmatpush1.bf16.msra.mxu0 0
    %1191 = vmatprep.mubr.bf16.mxu0 0
    %1192 = vmatmul.mubr.bf16.gmra.mrb[0].mxu0 %v1148
    %v1193 = vpop.f32.mrb[0].mxu0
    %v1194 = vadd.f32 0.0, %v1193
    %v1195 = vpop.f32.mrb[0].mxu0
    %v1196 = vpop.f32.mrb[0].mxu0
    %v1197 = vadd.f32 0.0, %v1196
    %v1198 = vpop.f32.mrb[0].mxu0
    %1199 = vmatprep.mubr.bf16.mxu0 0
    %1200 = vmatmul.mubr.bf16.gmra.mrb[0].mxu0 %v1151
    %v1201 = vpop.f32.mrb[0].mxu0
    %v1202 = vadd.f32 0.0, %v1201
    %v1203 = vpop.f32.mrb[0].mxu0
    %v1204 = vpop.f32.mrb[0].mxu0
    %v1205 = vadd.f32 0.0, %v1204
    %v1206 = vpop.f32.mrb[0].mxu0
    %1207 = vmatprep.mubr.bf16.mxu0 0
    %1208 = vmatmul.mubr.bf16.gmra.mrb[0].mxu0 %v1154
    %v1209 = vpop.f32.mrb[0].mxu0
    %v1210 = vadd.f32 0.0, %v1209
    %v1211 = vpop.f32.mrb[0].mxu0
    %v1212 = vpop.f32.mrb[0].mxu0
    %v1213 = vpop.f32.mrb[0].mxu0
    %1214 = vdwg.mxu0
    %1215 = vrot.lane.b32.xlu0 %v388, 72
    %v1216 = vpop.permute.xlu0 %1215
    %1217 = vrot.lane.b32.xlu0 %v391, 72
    %v1218 = vpop.permute.xlu0 %1217
    %1219 = vrot.lane.b32.xlu0 %v396, 72
    %v1220 = vpop.permute.xlu0 %1219
    %1221 = vrot.lane.b32.xlu0 %v399, 72
    %v1222 = vpop.permute.xlu0 %1221
    %1223 = vrot.lane.b32.xlu0 %v404, 72
    %v1224 = vpop.permute.xlu0 %1223
    %1230 = vxpose.xlu0.b32.start [1/16] %v1216, 128
    %1231 = vxpose.xlu0.b32.cont [2/16] %v1218, 128
    %1232 = vxpose.xlu0.b32.cont [3/16] %v1220, 128
    %1233 = vxpose.xlu0.b32.cont [4/16] %v1222, 128
    %1234 = vxpose.xlu0.b32.cont [5/16] %v1224, 128
    %1235 = vxpose.xlu0.b32.cont [6/16] 0.0, 128
    %1236 = vxpose.xlu0.b32.cont [7/16] 0.0, 128
    %1237 = vxpose.xlu0.b32.cont [8/16] 0.0, 128
    %1238 = vxpose.xlu0.b32.cont [9/16] 0.0, 128
    %1239 = vxpose.xlu0.b32.cont [10/16] 0.0, 128
    %1240 = vxpose.xlu0.b32.cont [11/16] 0.0, 128
    %1241 = vxpose.xlu0.b32.cont [12/16] 0.0, 128
    %1242 = vxpose.xlu0.b32.cont [13/16] 0.0, 128
    %1243 = vxpose.xlu0.b32.cont [14/16] 0.0, 128
    %1244 = vxpose.xlu0.b32.cont [15/16] 0.0, 128
    %1245 = vxpose.xlu0.b32.end [16/16] 0.0, 128
    %v1246 = vpop.trf.xlu0
    %v1247 = vpop.trf.xlu0
    %v1248 = vpop.trf.xlu0
    %v1249 = vpop.trf.xlu0
    %v1250 = vpop.trf.xlu0
    %v1251 = vpop.trf.xlu0
    %v1252 = vpop.trf.xlu0
    %v1253 = vpop.trf.xlu0
    %v1254 = vpop.trf.xlu0
    %v1255 = vpop.trf.xlu0
    %v1256 = vpop.trf.xlu0
    %v1257 = vpop.trf.xlu0
    %v1258 = vpop.trf.xlu0
    %v1259 = vpop.trf.xlu0
    %v1260 = vpop.trf.xlu0
    %v1261 = vpop.trf.xlu0
    %v1262 = vpack.c.bf16 %v1246, %v1246
    %1263 = vrot.lane.b32.xlu0 %v409, 104
    %v1264 = vpop.permute.xlu0 %1263
    %1265 = vrot.lane.b32.xlu0 %v410, 104
    %v1266 = vpop.permute.xlu0 %1265
    %1267 = vrot.lane.b32.xlu0 %v411, 104
    %v1268 = vpop.permute.xlu0 %1267
    %v1270 = vsel %vm465, %v1264, 0
    %v1273 = vsel %vm465, %v1266, 0
    %v1276 = vsel %vm465, %v1268, 0
    %v1279 = vsel %vm475, %v1262, 0
    %1281 = vmatprep.subr.bf16.mxu0 0
    %1282 = vmatpush1.bf16.msra.mxu0 %v1279
    %1283 = vmatprep.subr.bf16.mxu0 0
    %1284 = vmatpush1.bf16.msra.mxu0 0
    %1285 = vmatprep.subr.bf16.mxu0 0
    %1286 = vmatpush1.bf16.msra.mxu0 0
    %1287 = vmatprep.subr.bf16.mxu0 0
    %1288 = vmatpush1.bf16.msra.mxu0 0
    %1289 = vmatprep.subr.bf16.mxu0 0
    %1290 = vmatpush1.bf16.msra.mxu0 0
    %1291 = vmatprep.subr.bf16.mxu0 0
    %1292 = vmatpush1.bf16.msra.mxu0 0
    %1293 = vmatprep.subr.bf16.mxu0 0
    %1294 = vmatpush1.bf16.msra.mxu0 0
    %1295 = vmatprep.subr.bf16.mxu0 0
    %1296 = vmatpush1.bf16.msra.mxu0 0
    %1297 = vmatprep.subr.bf16.mxu0 0
    %1298 = vmatpush1.bf16.msra.mxu0 0
    %1299 = vmatprep.subr.bf16.mxu0 0
    %1300 = vmatpush1.bf16.msra.mxu0 0
    %1301 = vmatprep.subr.bf16.mxu0 0
    %1302 = vmatpush1.bf16.msra.mxu0 0
    %1303 = vmatprep.subr.bf16.mxu0 0
    %1304 = vmatpush1.bf16.msra.mxu0 0
    %1305 = vmatprep.subr.bf16.mxu0 0
    %1306 = vmatpush1.bf16.msra.mxu0 0
    %1307 = vmatprep.subr.bf16.mxu0 0
    %1308 = vmatpush1.bf16.msra.mxu0 0
    %1309 = vmatprep.subr.bf16.mxu0 0
    %1310 = vmatpush1.bf16.msra.mxu0 0
    %1311 = vmatprep.subr.bf16.mxu0 0
    %1312 = vmatpush1.bf16.msra.mxu0 0
    %1313 = vmatprep.mubr.bf16.mxu0 0
    %1314 = vmatmul.mubr.bf16.gmra.mrb[0].mxu0 %v1270
    %v1315 = vpop.f32.mrb[0].mxu0
    %v1316 = vadd.f32 0.0, %v1315
    %v1317 = vpop.f32.mrb[0].mxu0
    %v1318 = vpop.f32.mrb[0].mxu0
    %v1319 = vadd.f32 0.0, %v1318
    %v1320 = vpop.f32.mrb[0].mxu0
    %1321 = vmatprep.mubr.bf16.mxu0 0
    %1322 = vmatmul.mubr.bf16.gmra.mrb[0].mxu0 %v1273
    %v1323 = vpop.f32.mrb[0].mxu0
    %v1324 = vadd.f32 0.0, %v1323
    %v1325 = vpop.f32.mrb[0].mxu0
    %v1326 = vpop.f32.mrb[0].mxu0
    %v1327 = vadd.f32 0.0, %v1326
    %v1328 = vpop.f32.mrb[0].mxu0
    %1329 = vmatprep.mubr.bf16.mxu0 0
    %1330 = vmatmul.mubr.bf16.gmra.mrb[0].mxu0 %v1276
    %v1331 = vpop.f32.mrb[0].mxu0
    %v1332 = vadd.f32 0.0, %v1331
    %v1333 = vpop.f32.mrb[0].mxu0
    %v1334 = vpop.f32.mrb[0].mxu0
    %v1335 = vpop.f32.mrb[0].mxu0
    %1336 = vdwg.mxu0
    %v1337 = vmul.f32 %v1316, 0.35355338
    %v1338 = vmul.f32 %v1319, 0.35355338
    %v1339 = vmul.f32 %v1324, 0.35355338
    %v1340 = vmul.f32 %v1327, 0.35355338
    %v1341 = vmul.f32 %v1332, 0.35355338
    %v1342 = vadd.f32 %v1337, %v207
    %v1343 = vadd.f32 %v1338, %v208
    %v1344 = vadd.f32 %v1339, %v209
    %v1345 = vadd.f32 %v1340, %v210
    %v1346 = vadd.f32 %v1341, %v211
    %v1347 = vsel %vm545, %v1342, -inf
    %1348 = vmax.xlane.f32.xlu0 %v1347
    %v1349 = vpop.xlane.xlu0 %1348
    %v1350 = vsel %vm545, %v1343, -inf
    %1351 = vmax.xlane.f32.xlu0 %v1350
    %v1352 = vpop.xlane.xlu0 %1351
    %v1353 = vsel %vm545, %v1344, -inf
    %1354 = vmax.xlane.f32.xlu0 %v1353
    %v1355 = vpop.xlane.xlu0 %1354
    %v1356 = vsel %vm545, %v1345, -inf
    %1357 = vmax.xlane.f32.xlu0 %v1356
    %v1358 = vpop.xlane.xlu0 %1357
    %v1359 = vsel %vm545, %v1346, -inf
    %1360 = vmax.xlane.f32.xlu0 %v1359
    %v1361 = vpop.xlane.xlu0 %1360
    %v1362 = vsub.f32 %v1342, %v1349
    %v1363 = vsub.f32 %v1343, %v1352
    %v1364 = vsub.f32 %v1344, %v1355
    %v1365 = vsub.f32 %v1345, %v1358
    %v1366 = vsub.f32 %v1346, %v1361
    %v1367 = vmul.f32 %v1362, 1.442695
    %v1368 = vpow.pop %v1367
    %v1369 = vmul.f32 %v1363, 1.442695
    %v1370 = vpow.pop %v1369
    %v1371 = vmul.f32 %v1364, 1.442695
    %v1372 = vpow.pop %v1371
    %v1373 = vmul.f32 %v1365, 1.442695
    %v1374 = vpow.pop %v1373
    %v1375 = vmul.f32 %v1366, 1.442695
    %v1376 = vpow.pop %v1375
    %v1377 = vsel %vm545, %v1368, 0.0
    %1378 = vadd.xlane.f32.xlu0 %v1377
    %v1379 = vpop.xlane.xlu0 %1378
    %v1380 = vsel %vm545, %v1370, 0.0
    %1381 = vadd.xlane.f32.xlu0 %v1380
    %v1382 = vpop.xlane.xlu0 %1381
    %v1383 = vsel %vm545, %v1372, 0.0
    %1384 = vadd.xlane.f32.xlu0 %v1383
    %v1385 = vpop.xlane.xlu0 %1384
    %v1386 = vsel %vm545, %v1374, 0.0
    %1387 = vadd.xlane.f32.xlu0 %v1386
    %v1388 = vpop.xlane.xlu0 %1387
    %v1389 = vsel %vm545, %v1376, 0.0
    %1390 = vadd.xlane.f32.xlu0 %v1389
    %v1391 = vpop.xlane.xlu0 %1390
    %v1392 = vrcp.pop %v1379
    %v1393 = vrcp.pop %v1382
    %v1394 = vrcp.pop %v1385
    %v1395 = vrcp.pop %v1388
    %v1396 = vrcp.pop %v1391
    %v1397 = vmul.f32 %v1368, %v1392
    %v1398 = vmul.f32 %v1370, %v1393
    %v1399 = vmul.f32 %v1372, %v1394
    %v1400 = vmul.f32 %v1374, %v1395
    %v1401 = vmul.f32 %v1376, %v1396
    %v1402 = vpack.c.bf16 %v1398, %v1397
    %v1403 = vpack.c.bf16 %v1400, %v1399
    %v1404 = vpack.c.bf16 %v1401, %v1401
    %1405 = vrot.lane.b32.xlu0 %v409, 40
    %v1406 = vpop.permute.xlu0 %1405
    %1407 = vrot.lane.b32.xlu0 %v410, 40
    %v1408 = vpop.permute.xlu0 %1407
    %1409 = vrot.lane.b32.xlu0 %v411, 40
    %v1410 = vpop.permute.xlu0 %1409
    %v1414 = vsel %vm545, %v1402, 0
    %v1417 = vsel %vm545, %v1403, 0
    %v1420 = vsel %vm545, %v1404, 0
    %v1423 = vsel %vm475, %v1410, 0
    %1425 = vmatprep.subr.bf16.mxu0 0
    %1426 = vmatpush1.bf16.msra.mxu0 %v1406
    %1427 = vmatprep.subr.bf16.mxu0 0
    %1428 = vmatpush1.bf16.msra.mxu0 %v1408
    %1429 = vmatprep.subr.bf16.mxu0 0
    %1430 = vmatpush1.bf16.msra.mxu0 %v1423
    %1431 = vmatprep.subr.bf16.mxu0 0
    %1432 = vmatpush1.bf16.msra.mxu0 0
    %1433 = vmatprep.subr.bf16.mxu0 0
    %1434 = vmatpush1.bf16.msra.mxu0 0
    %1435 = vmatprep.subr.bf16.mxu0 0
    %1436 = vmatpush1.bf16.msra.mxu0 0
    %1437 = vmatprep.subr.bf16.mxu0 0
    %1438 = vmatpush1.bf16.msra.mxu0 0
    %1439 = vmatprep.subr.bf16.mxu0 0
    %1440 = vmatpush1.bf16.msra.mxu0 0
    %1441 = vmatprep.subr.bf16.mxu0 0
    %1442 = vmatpush1.bf16.msra.mxu0 0
    %1443 = vmatprep.subr.bf16.mxu0 0
    %1444 = vmatpush1.bf16.msra.mxu0 0
    %1445 = vmatprep.subr.bf16.mxu0 0
    %1446 = vmatpush1.bf16.msra.mxu0 0
    %1447 = vmatprep.subr.bf16.mxu0 0
    %1448 = vmatpush1.bf16.msra.mxu0 0
    %1449 = vmatprep.subr.bf16.mxu0 0
    %1450 = vmatpush1.bf16.msra.mxu0 0
    %1451 = vmatprep.subr.bf16.mxu0 0
    %1452 = vmatpush1.bf16.msra.mxu0 0
    %1453 = vmatprep.subr.bf16.mxu0 0
    %1454 = vmatpush1.bf16.msra.mxu0 0
    %1455 = vmatprep.subr.bf16.mxu0 0
    %1456 = vmatpush1.bf16.msra.mxu0 0
    %1457 = vmatprep.mubr.bf16.mxu0 0
    %1458 = vmatmul.mubr.bf16.gmra.mrb[0].mxu0 %v1414
    %v1459 = vpop.f32.mrb[0].mxu0
    %v1460 = vadd.f32 0.0, %v1459
    %v1461 = vpop.f32.mrb[0].mxu0
    %v1462 = vpop.f32.mrb[0].mxu0
    %v1463 = vadd.f32 0.0, %v1462
    %v1464 = vpop.f32.mrb[0].mxu0
    %1465 = vmatprep.mubr.bf16.mxu0 0
    %1466 = vmatmul.mubr.bf16.gmra.mrb[0].mxu0 %v1417
    %v1467 = vpop.f32.mrb[0].mxu0
    %v1468 = vadd.f32 0.0, %v1467
    %v1469 = vpop.f32.mrb[0].mxu0
    %v1470 = vpop.f32.mrb[0].mxu0
    %v1471 = vadd.f32 0.0, %v1470
    %v1472 = vpop.f32.mrb[0].mxu0
    %1473 = vmatprep.mubr.bf16.mxu0 0
    %1474 = vmatmul.mubr.bf16.gmra.mrb[0].mxu0 %v1420
    %v1475 = vpop.f32.mrb[0].mxu0
    %v1476 = vadd.f32 0.0, %v1475
    %v1477 = vpop.f32.mrb[0].mxu0
    %v1478 = vpop.f32.mrb[0].mxu0
    %v1479 = vpop.f32.mrb[0].mxu0
    %1480 = vdwg.mxu0
    %1486 = vrot.lane.b32.xlu0 %v928, 8
    %v1487 = vpop.permute.xlu0 %1486
    %1488 = vrot.lane.b32.xlu0 %v931, 8
    %v1489 = vpop.permute.xlu0 %1488
    %1490 = vrot.lane.b32.xlu0 %v936, 8
    %v1491 = vpop.permute.xlu0 %1490
    %1492 = vrot.lane.b32.xlu0 %v939, 8
    %v1493 = vpop.permute.xlu0 %1492
    %1494 = vrot.lane.b32.xlu0 %v944, 8
    %v1495 = vpop.permute.xlu0 %1494
    %1506 = vrot.lane.b32.xlu0 %v1194, 16
    %v1507 = vpop.permute.xlu0 %1506
    %1508 = vrot.lane.b32.xlu0 %v1197, 16
    %v1509 = vpop.permute.xlu0 %1508
    %1510 = vrot.lane.b32.xlu0 %v1202, 16
    %v1511 = vpop.permute.xlu0 %1510
    %1512 = vrot.lane.b32.xlu0 %v1205, 16
    %v1513 = vpop.permute.xlu0 %1512
    %1514 = vrot.lane.b32.xlu0 %v1210, 16
    %v1515 = vpop.permute.xlu0 %1514
    %1526 = vrot.lane.b32.xlu0 %v1460, 24
    %v1527 = vpop.permute.xlu0 %1526
    %1528 = vrot.lane.b32.xlu0 %v1463, 24
    %v1529 = vpop.permute.xlu0 %1528
    %1530 = vrot.lane.b32.xlu0 %v1468, 24
    %v1531 = vpop.permute.xlu0 %1530
    %1532 = vrot.lane.b32.xlu0 %v1471, 24
    %v1533 = vpop.permute.xlu0 %1532
    %1534 = vrot.lane.b32.xlu0 %v1476, 24
    %v1535 = vpop.permute.xlu0 %1534
    %v1541 = vsel %vm465, %v662, %v1487
    %v1542 = vsel %vm465, %v665, %v1489
    %v1543 = vsel %vm465, %v670, %v1491
    %v1544 = vsel %vm465, %v673, %v1493
    %v1545 = vsel %vm465, %v678, %v1495
    %v1546 = vsel %vm30, %v1541, %v1507
    %v1547 = vsel %vm30, %v1542, %v1509
    %v1548 = vsel %vm30, %v1543, %v1511
    %v1549 = vsel %vm30, %v1544, %v1513
    %v1550 = vsel %vm30, %v1545, %v1515
    %vm1551 = vcmask 195584
    %v1552 = vsel %vm1551, %v1546, %v1527
    %v1553 = vsel %vm1551, %v1547, %v1529
    %v1554 = vsel %vm1551, %v1548, %v1531
    %v1555 = vsel %vm1551, %v1549, %v1533
    %v1556 = vsel %vm1551, %v1550, %v1535
    %v1557 = vpack.c.bf16 %v1553, %v1552
    %v1558 = vpack.c.bf16 %v1555, %v1554
    %v1559 = vpack.c.bf16 %v1556, %v1556
    %v1560 = vlaneseq
    %v1561 = vshrl.u32 %v1560, 7
    %v1562 = vsub.s32 4, %v1561
    %v1563 = vrot.slane %v99, %v1562
    %v1568 = vunpack.c.l.b16 %v216
    %v1569 = vunpack.c.l.b16 %v217
    %v1570 = vunpack.c.l.b16 %v218
    %v1571 = vunpack.c.l.b16 %v219
    %v1572 = vpack.c.b16 %v1569, %v1568
    %v1573 = vpack.c.b16 %v1571, %v1570
    %v1577 = vsel %vm240, %v1557, 0
    %v1580 = vsel %vm240, %v1558, 0
    %v1583 = vsel %vm240, %v1559, 0
    %1585 = vmatprep.subr.bf16.mxu0 0
    %1586 = vmatpush1.bf16.msra.mxu0 %v1572
    %1587 = vmatprep.subr.bf16.mxu0 0
    %1588 = vmatpush1.bf16.msra.mxu0 %v1573
    %1589 = vmatprep.subr.bf16.mxu0 0
    %1590 = vmatpush1.bf16.msra.mxu0 0
    %1591 = vmatprep.subr.bf16.mxu0 0
    %1592 = vmatpush1.bf16.msra.mxu0 0
    %1593 = vmatprep.subr.bf16.mxu0 0
    %1594 = vmatpush1.bf16.msra.mxu0 0
    %1595 = vmatprep.subr.bf16.mxu0 0
    %1596 = vmatpush1.bf16.msra.mxu0 0
    %1597 = vmatprep.subr.bf16.mxu0 0
    %1598 = vmatpush1.bf16.msra.mxu0 0
    %1599 = vmatprep.subr.bf16.mxu0 0
    %1600 = vmatpush1.bf16.msra.mxu0 0
    %1601 = vmatprep.subr.bf16.mxu0 0
    %1602 = vmatpush1.bf16.msra.mxu0 0
    %1603 = vmatprep.subr.bf16.mxu0 0
    %1604 = vmatpush1.bf16.msra.mxu0 0
    %1605 = vmatprep.subr.bf16.mxu0 0
    %1606 = vmatpush1.bf16.msra.mxu0 0
    %1607 = vmatprep.subr.bf16.mxu0 0
    %1608 = vmatpush1.bf16.msra.mxu0 0
    %1609 = vmatprep.subr.bf16.mxu0 0
    %1610 = vmatpush1.bf16.msra.mxu0 0
    %1611 = vmatprep.subr.bf16.mxu0 0
    %1612 = vmatpush1.bf16.msra.mxu0 0
    %1613 = vmatprep.subr.bf16.mxu0 0
    %1614 = vmatpush1.bf16.msra.mxu0 0
    %1615 = vmatprep.subr.bf16.mxu0 0
    %1616 = vmatpush1.bf16.msra.mxu0 0
    %1617 = vmatprep.mubr.bf16.mxu0 0
    %1618 = vmatmul.mubr.bf16.gmra.mrb[0].mxu0 %v1577
    %v1619 = vpop.f32.mrb[0].mxu0
    %v1620 = vadd.f32 %v1563, %v1619
    %v1621 = vpop.f32.mrb[0].mxu0
    %v1622 = vpop.f32.mrb[0].mxu0
    %v1623 = vadd.f32 %v1563, %v1622
    %v1624 = vpop.f32.mrb[0].mxu0
    %1625 = vmatprep.mubr.bf16.mxu0 0
    %1626 = vmatmul.mubr.bf16.gmra.mrb[0].mxu0 %v1580
    %v1627 = vpop.f32.mrb[0].mxu0
    %v1628 = vadd.f32 %v1563, %v1627
    %v1629 = vpop.f32.mrb[0].mxu0
    %v1630 = vpop.f32.mrb[0].mxu0
    %v1631 = vadd.f32 %v1563, %v1630
    %v1632 = vpop.f32.mrb[0].mxu0
    %1633 = vmatprep.mubr.bf16.mxu0 0
    %1634 = vmatmul.mubr.bf16.gmra.mrb[0].mxu0 %v1583
    %v1635 = vpop.f32.mrb[0].mxu0
    %v1636 = vadd.f32 %v1563, %v1635
    %v1637 = vpop.f32.mrb[0].mxu0
    %v1638 = vpop.f32.mrb[0].mxu0
    %v1639 = vpop.f32.mrb[0].mxu0
    %1640 = vdwg.mxu0
    %v1641 = vadd.f32 %v202, %v1620
    %v1642 = vadd.f32 %v203, %v1623
    %v1643 = vadd.f32 %v204, %v1628
    %v1644 = vadd.f32 %v205, %v1631
    %v1645 = vadd.f32 %v206, %v1636
    %v1646 = vsel %vm240, %v1641, 0.0
    %1647 = vadd.xlane.f32.xlu0 %v1646
    %v1648 = vpop.xlane.xlu0 %1647
    %v1649 = vsel %vm240, %v1642, 0.0
    %1650 = vadd.xlane.f32.xlu0 %v1649
    %v1651 = vpop.xlane.xlu0 %1650
    %v1652 = vsel %vm240, %v1643, 0.0
    %1653 = vadd.xlane.f32.xlu0 %v1652
    %v1654 = vpop.xlane.xlu0 %1653
    %v1655 = vsel %vm240, %v1644, 0.0
    %1656 = vadd.xlane.f32.xlu0 %v1655
    %v1657 = vpop.xlane.xlu0 %1656
    %v1658 = vsel %vm240, %v1645, 0.0
    %1659 = vadd.xlane.f32.xlu0 %v1658
    %v1660 = vpop.xlane.xlu0 %1659
    %v1661 = vmul.f32 %v1648, %v256
    %v1662 = vmul.f32 %v1651, %v256
    %v1663 = vmul.f32 %v1654, %v256
    %v1664 = vmul.f32 %v1657, %v256
    %v1665 = vmul.f32 %v1660, %v256
    %v1666 = vsub.f32 %v1641, %v1661
    %v1667 = vsub.f32 %v1642, %v1662
    %v1668 = vsub.f32 %v1643, %v1663
    %v1669 = vsub.f32 %v1644, %v1664
    %v1670 = vsub.f32 %v1645, %v1665
    %v1671 = vmul.f32 %v1666, %v1666
    %v1672 = vmul.f32 %v1667, %v1667
    %v1673 = vmul.f32 %v1668, %v1668
    %v1674 = vmul.f32 %v1669, %v1669
    %v1675 = vmul.f32 %v1670, %v1670
    %v1676 = vsel %vm240, %v1671, 0.0
    %1677 = vadd.xlane.f32.xlu0 %v1676
    %v1678 = vpop.xlane.xlu0 %1677
    %v1679 = vsel %vm240, %v1672, 0.0
    %1680 = vadd.xlane.f32.xlu0 %v1679
    %v1681 = vpop.xlane.xlu0 %1680
    %v1682 = vsel %vm240, %v1673, 0.0
    %1683 = vadd.xlane.f32.xlu0 %v1682
    %v1684 = vpop.xlane.xlu0 %1683
    %v1685 = vsel %vm240, %v1674, 0.0
    %1686 = vadd.xlane.f32.xlu0 %v1685
    %v1687 = vpop.xlane.xlu0 %1686
    %v1688 = vsel %vm240, %v1675, 0.0
    %1689 = vadd.xlane.f32.xlu0 %v1688
    %v1690 = vpop.xlane.xlu0 %1689
    %v1691 = vmul.f32 %v1678, %v256
    %v1692 = vmul.f32 %v1681, %v256
    %v1693 = vmul.f32 %v1684, %v256
    %v1694 = vmul.f32 %v1687, %v256
    %v1695 = vmul.f32 %v1690, %v256
    %v1696 = vadd.f32 %v1691, 1e-05
    %v1697 = vadd.f32 %v1692, 1e-05
    %v1698 = vadd.f32 %v1693, 1e-05
    %v1699 = vadd.f32 %v1694, 1e-05
    %v1700 = vadd.f32 %v1695, 1e-05
    %v1701 = vrsqrt.pop %v1696
    %v1702 = vrsqrt.pop %v1697
    %v1703 = vrsqrt.pop %v1698
    %v1704 = vrsqrt.pop %v1699
    %v1705 = vrsqrt.pop %v1700
    %v1706 = vmul.f32 %v1666, %v1701
    %v1707 = vmul.f32 %v1667, %v1702
    %v1708 = vmul.f32 %v1668, %v1703
    %v1709 = vmul.f32 %v1669, %v1704
    %v1710 = vmul.f32 %v1670, %v1705
    %v1711 = vlaneseq
    %v1712 = vshrl.u32 %v1711, 7
    %v1713 = vsub.s32 5, %v1712
    %v1714 = vrot.slane %v99, %v1713
    %v1715 = vmul.f32 %v1706, %v1714
    %v1716 = vmul.f32 %v1707, %v1714
    %v1717 = vmul.f32 %v1708, %v1714
    %v1718 = vmul.f32 %v1709, %v1714
    %v1719 = vmul.f32 %v1710, %v1714
    %v1720 = vlaneseq
    %v1721 = vshrl.u32 %v1720, 7
    %v1722 = vsub.s32 6, %v1721
    %v1723 = vrot.slane %v99, %v1722
    %v1724 = vadd.f32 %v1715, %v1723
    %v1725 = vadd.f32 %v1716, %v1723
    %v1726 = vadd.f32 %v1717, %v1723
    %v1727 = vadd.f32 %v1718, %v1723
    %v1728 = vadd.f32 %v1719, %v1723
    %v1729 = vpack.c.bf16 %v1725, %v1724
    %v1730 = vpack.c.bf16 %v1727, %v1726
    %v1731 = vpack.c.bf16 %v1728, %v1728
    %v1732 = vlaneseq
    %v1733 = vshrl.u32 %v1732, 7
    %v1734 = vsub.s32 7, %v1733
    %v1735 = vrot.slane %v99, %v1734
    %v1740 = vunpack.c.l.b16 %v220
    %v1741 = vunpack.c.l.b16 %v221
    %v1742 = vunpack.c.l.b16 %v222
    %v1743 = vunpack.c.l.b16 %v223
    %v1744 = vpack.c.b16 %v1741, %v1740
    %v1745 = vpack.c.b16 %v1743, %v1742
    %v1749 = vsel %vm240, %v1729, 0
    %v1752 = vsel %vm240, %v1730, 0
    %v1755 = vsel %vm240, %v1731, 0
    %1757 = vmatprep.subr.bf16.mxu0 0
    %1758 = vmatpush1.bf16.msra.mxu0 %v1744
    %1759 = vmatprep.subr.bf16.mxu0 0
    %1760 = vmatpush1.bf16.msra.mxu0 %v1745
    %1761 = vmatprep.subr.bf16.mxu0 0
    %1762 = vmatpush1.bf16.msra.mxu0 0
    %1763 = vmatprep.subr.bf16.mxu0 0
    %1764 = vmatpush1.bf16.msra.mxu0 0
    %1765 = vmatprep.subr.bf16.mxu0 0
    %1766 = vmatpush1.bf16.msra.mxu0 0
    %1767 = vmatprep.subr.bf16.mxu0 0
    %1768 = vmatpush1.bf16.msra.mxu0 0
    %1769 = vmatprep.subr.bf16.mxu0 0
    %1770 = vmatpush1.bf16.msra.mxu0 0
    %1771 = vmatprep.subr.bf16.mxu0 0
    %1772 = vmatpush1.bf16.msra.mxu0 0
    %1773 = vmatprep.subr.bf16.mxu0 0
    %1774 = vmatpush1.bf16.msra.mxu0 0
    %1775 = vmatprep.subr.bf16.mxu0 0
    %1776 = vmatpush1.bf16.msra.mxu0 0
    %1777 = vmatprep.subr.bf16.mxu0 0
    %1778 = vmatpush1.bf16.msra.mxu0 0
    %1779 = vmatprep.subr.bf16.mxu0 0
    %1780 = vmatpush1.bf16.msra.mxu0 0
    %1781 = vmatprep.subr.bf16.mxu0 0
    %1782 = vmatpush1.bf16.msra.mxu0 0
    %1783 = vmatprep.subr.bf16.mxu0 0
    %1784 = vmatpush1.bf16.msra.mxu0 0
    %1785 = vmatprep.subr.bf16.mxu0 0
    %1786 = vmatpush1.bf16.msra.mxu0 0
    %1787 = vmatprep.subr.bf16.mxu0 0
    %1788 = vmatpush1.bf16.msra.mxu0 0
    %1789 = vmatprep.mubr.bf16.mxu0 0
    %1790 = vmatmul.mubr.bf16.gmra.mrb[0].mxu0 %v1749
    %v1791 = vpop.f32.mrb[0].mxu0
    %v1792 = vadd.f32 %v1735, %v1791
    %v1793 = vpop.f32.mrb[0].mxu0
    %v1794 = vpop.f32.mrb[0].mxu0
    %v1795 = vadd.f32 %v1735, %v1794
    %v1796 = vpop.f32.mrb[0].mxu0
    %1797 = vmatprep.mubr.bf16.mxu0 0
    %1798 = vmatmul.mubr.bf16.gmra.mrb[0].mxu0 %v1752
    %v1799 = vpop.f32.mrb[0].mxu0
    %v1800 = vadd.f32 %v1735, %v1799
    %v1801 = vpop.f32.mrb[0].mxu0
    %v1802 = vpop.f32.mrb[0].mxu0
    %v1803 = vadd.f32 %v1735, %v1802
    %v1804 = vpop.f32.mrb[0].mxu0
    %1805 = vmatprep.mubr.bf16.mxu0 0
    %1806 = vmatmul.mubr.bf16.gmra.mrb[0].mxu0 %v1755
    %v1807 = vpop.f32.mrb[0].mxu0
    %v1808 = vadd.f32 %v1735, %v1807
    %v1809 = vpop.f32.mrb[0].mxu0
    %v1810 = vpop.f32.mrb[0].mxu0
    %v1811 = vpop.f32.mrb[0].mxu0
    %1812 = vdwg.mxu0
    %v1813 = vmul.f32 %v1792, 0.5
    %v1814 = vmul.f32 %v1795, 0.5
    %v1815 = vmul.f32 %v1800, 0.5
    %v1816 = vmul.f32 %v1803, 0.5
    %v1817 = vmul.f32 %v1808, 0.5
    %v1818 = vmul.f32 %v1792, %v1792
    %v1819 = vmul.f32 %v1795, %v1795
    %v1820 = vmul.f32 %v1800, %v1800
    %v1821 = vmul.f32 %v1803, %v1803
    %v1822 = vmul.f32 %v1808, %v1808
    %v1823 = vmul.f32 %v1792, %v1818
    %v1824 = vmul.f32 %v1795, %v1819
    %v1825 = vmul.f32 %v1800, %v1820
    %v1826 = vmul.f32 %v1803, %v1821
    %v1827 = vmul.f32 %v1808, %v1822
    %v1828 = vmul.f32 %v1823, 0.044715
    %v1829 = vmul.f32 %v1824, 0.044715
    %v1830 = vmul.f32 %v1825, 0.044715
    %v1831 = vmul.f32 %v1826, 0.044715
    %v1832 = vmul.f32 %v1827, 0.044715
    %v1833 = vadd.f32 %v1792, %v1828
    %v1834 = vadd.f32 %v1795, %v1829
    %v1835 = vadd.f32 %v1800, %v1830
    %v1836 = vadd.f32 %v1803, %v1831
    %v1837 = vadd.f32 %v1808, %v1832
    %v1838 = vmul.f32 %v1833, 0.7978846
    %v1839 = vmul.f32 %v1834, 0.7978846
    %v1840 = vmul.f32 %v1835, 0.7978846
    %v1841 = vmul.f32 %v1836, 0.7978846
    %v1842 = vmul.f32 %v1837, 0.7978846
    %v1843 = vtanh.pop %v1838
    %v1844 = vtanh.pop %v1839
    %v1845 = vtanh.pop %v1840
    %v1846 = vtanh.pop %v1841
    %v1847 = vtanh.pop %v1842
    %v1848 = vadd.f32 %v1843, 1.0
    %v1849 = vadd.f32 %v1844, 1.0
    %v1850 = vadd.f32 %v1845, 1.0
    %v1851 = vadd.f32 %v1846, 1.0
    %v1852 = vadd.f32 %v1847, 1.0
    %v1853 = vmul.f32 %v1813, %v1848
    %v1854 = vmul.f32 %v1814, %v1849
    %v1855 = vmul.f32 %v1815, %v1850
    %v1856 = vmul.f32 %v1816, %v1851
    %v1857 = vmul.f32 %v1817, %v1852
    %v1858 = vpack.c.bf16 %v1854, %v1853
    %v1859 = vpack.c.bf16 %v1856, %v1855
    %v1860 = vpack.c.bf16 %v1857, %v1857
    %v1861 = vlaneseq
    %v1862 = vshrl.u32 %v1861, 7
    %v1863 = vsub.s32 0, %v1862
    %v1864 = vrot.slane %v100, %v1863
    %v1881 = vunpack.c.l.b16 %v224
    %v1882 = vunpack.c.l.b16 %v225
    %v1883 = vunpack.c.l.b16 %v226
    %v1884 = vunpack.c.l.b16 %v227
    %v1885 = vunpack.c.l.b16 %v228
    %v1886 = vunpack.c.l.b16 %v229
    %v1887 = vunpack.c.l.b16 %v230
    %v1888 = vunpack.c.l.b16 %v231
    %v1889 = vunpack.c.l.b16 %v232
    %v1890 = vunpack.c.l.b16 %v233
    %v1891 = vunpack.c.l.b16 %v234
    %v1892 = vunpack.c.l.b16 %v235
    %v1893 = vunpack.c.l.b16 %v236
    %v1894 = vunpack.c.l.b16 %v237
    %v1895 = vunpack.c.l.b16 %v238
    %v1896 = vunpack.c.l.b16 %v239
    %v1897 = vpack.c.b16 %v1882, %v1881
    %v1898 = vpack.c.b16 %v1884, %v1883
    %v1899 = vpack.c.b16 %v1886, %v1885
    %v1900 = vpack.c.b16 %v1888, %v1887
    %v1901 = vpack.c.b16 %v1890, %v1889
    %v1902 = vpack.c.b16 %v1892, %v1891
    %v1903 = vpack.c.b16 %v1894, %v1893
    %v1904 = vpack.c.b16 %v1896, %v1895
    %1913 = vmatprep.subr.bf16.mxu0 0
    %1914 = vmatpush1.bf16.msra.mxu0 %v1897
    %1915 = vmatprep.subr.bf16.mxu0 0
    %1916 = vmatpush1.bf16.msra.mxu0 %v1898
    %1917 = vmatprep.subr.bf16.mxu0 0
    %1918 = vmatpush1.bf16.msra.mxu0 %v1899
    %1919 = vmatprep.subr.bf16.mxu0 0
    %1920 = vmatpush1.bf16.msra.mxu0 %v1900
    %1921 = vmatprep.subr.bf16.mxu0 0
    %1922 = vmatpush1.bf16.msra.mxu0 %v1901
    %1923 = vmatprep.subr.bf16.mxu0 0
    %1924 = vmatpush1.bf16.msra.mxu0 %v1902
    %1925 = vmatprep.subr.bf16.mxu0 0
    %1926 = vmatpush1.bf16.msra.mxu0 %v1903
    %1927 = vmatprep.subr.bf16.mxu0 0
    %1928 = vmatpush1.bf16.msra.mxu0 %v1904
    %1929 = vmatprep.subr.bf16.mxu0 0
    %1930 = vmatpush1.bf16.msra.mxu0 0
    %1931 = vmatprep.subr.bf16.mxu0 0
    %1932 = vmatpush1.bf16.msra.mxu0 0
    %1933 = vmatprep.subr.bf16.mxu0 0
    %1934 = vmatpush1.bf16.msra.mxu0 0
    %1935 = vmatprep.subr.bf16.mxu0 0
    %1936 = vmatpush1.bf16.msra.mxu0 0
    %1937 = vmatprep.subr.bf16.mxu0 0
    %1938 = vmatpush1.bf16.msra.mxu0 0
    %1939 = vmatprep.subr.bf16.mxu0 0
    %1940 = vmatpush1.bf16.msra.mxu0 0
    %1941 = vmatprep.subr.bf16.mxu0 0
    %1942 = vmatpush1.bf16.msra.mxu0 0
    %1943 = vmatprep.subr.bf16.mxu0 0
    %1944 = vmatpush1.bf16.msra.mxu0 0
    %1945 = vmatprep.mubr.bf16.mxu0 0
    %1946 = vmatmul.mubr.bf16.gmra.mrb[0].mxu0 %v1858
    %v1947 = vpop.f32.mrb[0].mxu0
    %v1948 = vadd.f32 %v1864, %v1947
    %v1949 = vpop.f32.mrb[0].mxu0
    %v1950 = vpop.f32.mrb[0].mxu0
    %v1951 = vadd.f32 %v1864, %v1950
    %v1952 = vpop.f32.mrb[0].mxu0
    %1953 = vmatprep.mubr.bf16.mxu0 0
    %1954 = vmatmul.mubr.bf16.gmra.mrb[0].mxu0 %v1859
    %v1955 = vpop.f32.mrb[0].mxu0
    %v1956 = vadd.f32 %v1864, %v1955
    %v1957 = vpop.f32.mrb[0].mxu0
    %v1958 = vpop.f32.mrb[0].mxu0
    %v1959 = vadd.f32 %v1864, %v1958
    %v1960 = vpop.f32.mrb[0].mxu0
    %1961 = vmatprep.mubr.bf16.mxu0 0
    %1962 = vmatmul.mubr.bf16.gmra.mrb[0].mxu0 %v1860
    %v1963 = vpop.f32.mrb[0].mxu0
    %v1964 = vadd.f32 %v1864, %v1963
    %v1965 = vpop.f32.mrb[0].mxu0
    %v1966 = vpop.f32.mrb[0].mxu0
    %v1967 = vpop.f32.mrb[0].mxu0
    %1968 = vdwg.mxu0
    %v1969 = vadd.f32 %v1641, %v1948
    %v1970 = vadd.f32 %v1642, %v1951
    %v1971 = vadd.f32 %v1643, %v1956
    %v1972 = vadd.f32 %v1644, %v1959
    %v1973 = vadd.f32 %v1645, %v1964
    %v1974 = vld [vmem:[%s5 + $0x78] sm:$0xf]
    %v1975 = vld [vmem:[%s5 + $0x7c] sm:$0xf]
    %v1976 = vld [vmem:[%s5 + $0x80] sm:$0xf]
    %v1977 = vld [vmem:[%s5 + $0x84] sm:$0xf]
    %v1978 = vld [vmem:[%s5 + $0x88] sm:$0xf]
    %v1979 = vld [vmem:[%s5 + $0x8c] sm:$0xf]
    %v1980 = vld [vmem:[%s5 + $0x90] sm:$0xf]
    %v1981 = vld [vmem:[%s5 + $0x94] sm:$0xf]
    %v1982 = vld [vmem:[%s5 + $0x98] sm:$0xf]
    %v1983 = vld [vmem:[%s5 + $0x9c] sm:$0xf]
    %v1984 = vld [vmem:[%s5 + $0xa0] sm:$0xf]
    %v1985 = vld [vmem:[%s5 + $0xa4] sm:$0xf]
    %v1986 = vld [vmem:[%s5 + $0xa8] sm:$0xf]
    %v1987 = vld [vmem:[%s5 + $0xac] sm:$0xf]
    %v1988 = vld [vmem:[%s5 + $0xb0] sm:$0xf]
    %v1989 = vld [vmem:[%s5 + $0xb4] sm:$0xf]
    %v1990 = vld [vmem:[%s5 + $0xb8] sm:$0xf]
    %v1991 = vld [vmem:[%s5 + $0xbc] sm:$0xf]
    %v1992 = vld [vmem:[%s5 + $0xc0] sm:$0xf]
    %v1993 = vld [vmem:[%s5 + $0xc4] sm:$0xf]
    %v1994 = vld [vmem:[%s5 + $0xc8] sm:$0xf]
    %v1995 = vld [vmem:[%s5 + $0xcc] sm:$0xf]
    %v1996 = vld [vmem:[%s5 + $0xd0] sm:$0xf]
    %v1997 = vld [vmem:[%s5 + $0xd4] sm:$0xf]
    %v1998 = vld [vmem:[%s5 + $0xd8] sm:$0xf]
    %v1999 = vld [vmem:[%s5 + $0xdc] sm:$0xf]
    %v2000 = vld [vmem:[%s5 + $0xe0] sm:$0xf]
    %v2001 = vld [vmem:[%s5 + $0xe4] sm:$0xf]
    %v2002 = vsel %vm240, %v1969, 0.0
    %2003 = vadd.xlane.f32.xlu0 %v2002
    %v2004 = vpop.xlane.xlu0 %2003
    %v2005 = vsel %vm240, %v1970, 0.0
    %2006 = vadd.xlane.f32.xlu0 %v2005
    %v2007 = vpop.xlane.xlu0 %2006
    %v2008 = vsel %vm240, %v1971, 0.0
    %2009 = vadd.xlane.f32.xlu0 %v2008
    %v2010 = vpop.xlane.xlu0 %2009
    %v2011 = vsel %vm240, %v1972, 0.0
    %2012 = vadd.xlane.f32.xlu0 %v2011
    %v2013 = vpop.xlane.xlu0 %2012
    %v2014 = vsel %vm240, %v1973, 0.0
    %2015 = vadd.xlane.f32.xlu0 %v2014
    %v2016 = vpop.xlane.xlu0 %2015
    %v2017 = vmul.f32 %v2004, %v256
    %v2018 = vmul.f32 %v2007, %v256
    %v2019 = vmul.f32 %v2010, %v256
    %v2020 = vmul.f32 %v2013, %v256
    %v2021 = vmul.f32 %v2016, %v256
    %v2022 = vsub.f32 %v1969, %v2017
    %v2023 = vsub.f32 %v1970, %v2018
    %v2024 = vsub.f32 %v1971, %v2019
    %v2025 = vsub.f32 %v1972, %v2020
    %v2026 = vsub.f32 %v1973, %v2021
    %v2027 = vmul.f32 %v2022, %v2022
    %v2028 = vmul.f32 %v2023, %v2023
    %v2029 = vmul.f32 %v2024, %v2024
    %v2030 = vmul.f32 %v2025, %v2025
    %v2031 = vmul.f32 %v2026, %v2026
    %v2032 = vsel %vm240, %v2027, 0.0
    %2033 = vadd.xlane.f32.xlu0 %v2032
    %v2034 = vpop.xlane.xlu0 %2033
    %v2035 = vsel %vm240, %v2028, 0.0
    %2036 = vadd.xlane.f32.xlu0 %v2035
    %v2037 = vpop.xlane.xlu0 %2036
    %v2038 = vsel %vm240, %v2029, 0.0
    %2039 = vadd.xlane.f32.xlu0 %v2038
    %v2040 = vpop.xlane.xlu0 %2039
    %v2041 = vsel %vm240, %v2030, 0.0
    %2042 = vadd.xlane.f32.xlu0 %v2041
    %v2043 = vpop.xlane.xlu0 %2042
    %v2044 = vsel %vm240, %v2031, 0.0
    %2045 = vadd.xlane.f32.xlu0 %v2044
    %v2046 = vpop.xlane.xlu0 %2045
    %v2047 = vmul.f32 %v2034, %v256
    %v2048 = vmul.f32 %v2037, %v256
    %v2049 = vmul.f32 %v2040, %v256
    %v2050 = vmul.f32 %v2043, %v256
    %v2051 = vmul.f32 %v2046, %v256
    %v2052 = vadd.f32 %v2047, 1e-05
    %v2053 = vadd.f32 %v2048, 1e-05
    %v2054 = vadd.f32 %v2049, 1e-05
    %v2055 = vadd.f32 %v2050, 1e-05
    %v2056 = vadd.f32 %v2051, 1e-05
    %v2057 = vrsqrt.pop %v2052
    %v2058 = vrsqrt.pop %v2053
    %v2059 = vrsqrt.pop %v2054
    %v2060 = vrsqrt.pop %v2055
    %v2061 = vrsqrt.pop %v2056
    %v2062 = vmul.f32 %v2022, %v2057
    %v2063 = vmul.f32 %v2023, %v2058
    %v2064 = vmul.f32 %v2024, %v2059
    %v2065 = vmul.f32 %v2025, %v2060
    %v2066 = vmul.f32 %v2026, %v2061
    %v2067 = vlaneseq
    %v2068 = vshrl.u32 %v2067, 7
    %v2069 = vsub.s32 1, %v2068
    %v2070 = vrot.slane %v100, %v2069
    %v2071 = vmul.f32 %v2062, %v2070
    %v2072 = vmul.f32 %v2063, %v2070
    %v2073 = vmul.f32 %v2064, %v2070
    %v2074 = vmul.f32 %v2065, %v2070
    %v2075 = vmul.f32 %v2066, %v2070
    %v2076 = vlaneseq
    %v2077 = vshrl.u32 %v2076, 7
    %v2078 = vsub.s32 2, %v2077
    %v2079 = vrot.slane %v100, %v2078
    %v2080 = vadd.f32 %v2071, %v2079
    %v2081 = vadd.f32 %v2072, %v2079
    %v2082 = vadd.f32 %v2073, %v2079
    %v2083 = vadd.f32 %v2074, %v2079
    %v2084 = vadd.f32 %v2075, %v2079
    %v2085 = vpack.c.bf16 %v2081, %v2080
    %v2086 = vpack.c.bf16 %v2083, %v2082
    %v2087 = vpack.c.bf16 %v2084, %v2084
    %v2088 = vlaneseq
    %v2089 = vshrl.u32 %v2088, 7
    %v2090 = vsub.s32 3, %v2089
    %v2091 = vrot.slane %v100, %v2090
    %v2096 = vunpack.c.l.b16 %v1974
    %v2097 = vunpack.c.l.b16 %v1975
    %v2098 = vunpack.c.l.b16 %v1976
    %v2099 = vunpack.c.l.b16 %v1977
    %v2100 = vpack.c.b16 %v2097, %v2096
    %v2101 = vpack.c.b16 %v2099, %v2098
    %v2105 = vsel %vm240, %v2085, 0
    %v2108 = vsel %vm240, %v2086, 0
    %v2111 = vsel %vm240, %v2087, 0
    %2113 = vmatprep.subr.bf16.mxu0 0
    %2114 = vmatpush1.bf16.msra.mxu0 %v2100
    %2115 = vmatprep.subr.bf16.mxu0 0
    %2116 = vmatpush1.bf16.msra.mxu0 %v2101
    %2117 = vmatprep.subr.bf16.mxu0 0
    %2118 = vmatpush1.bf16.msra.mxu0 0
    %2119 = vmatprep.subr.bf16.mxu0 0
    %2120 = vmatpush1.bf16.msra.mxu0 0
    %2121 = vmatprep.subr.bf16.mxu0 0
    %2122 = vmatpush1.bf16.msra.mxu0 0
    %2123 = vmatprep.subr.bf16.mxu0 0
    %2124 = vmatpush1.bf16.msra.mxu0 0
    %2125 = vmatprep.subr.bf16.mxu0 0
    %2126 = vmatpush1.bf16.msra.mxu0 0
    %2127 = vmatprep.subr.bf16.mxu0 0
    %2128 = vmatpush1.bf16.msra.mxu0 0
    %2129 = vmatprep.subr.bf16.mxu0 0
    %2130 = vmatpush1.bf16.msra.mxu0 0
    %2131 = vmatprep.subr.bf16.mxu0 0
    %2132 = vmatpush1.bf16.msra.mxu0 0
    %2133 = vmatprep.subr.bf16.mxu0 0
    %2134 = vmatpush1.bf16.msra.mxu0 0
    %2135 = vmatprep.subr.bf16.mxu0 0
    %2136 = vmatpush1.bf16.msra.mxu0 0
    %2137 = vmatprep.subr.bf16.mxu0 0
    %2138 = vmatpush1.bf16.msra.mxu0 0
    %2139 = vmatprep.subr.bf16.mxu0 0
    %2140 = vmatpush1.bf16.msra.mxu0 0
    %2141 = vmatprep.subr.bf16.mxu0 0
    %2142 = vmatpush1.bf16.msra.mxu0 0
    %2143 = vmatprep.subr.bf16.mxu0 0
    %2144 = vmatpush1.bf16.msra.mxu0 0
    %2145 = vmatprep.mubr.bf16.mxu0 0
    %2146 = vmatmul.mubr.bf16.gmra.mrb[0].mxu0 %v2105
    %v2147 = vpop.f32.mrb[0].mxu0
    %v2148 = vadd.f32 %v2091, %v2147
    %v2149 = vpop.f32.mrb[0].mxu0
    %v2150 = vpop.f32.mrb[0].mxu0
    %v2151 = vadd.f32 %v2091, %v2150
    %v2152 = vpop.f32.mrb[0].mxu0
    %2153 = vmatprep.mubr.bf16.mxu0 0
    %2154 = vmatmul.mubr.bf16.gmra.mrb[0].mxu0 %v2108
    %v2155 = vpop.f32.mrb[0].mxu0
    %v2156 = vadd.f32 %v2091, %v2155
    %v2157 = vpop.f32.mrb[0].mxu0
    %v2158 = vpop.f32.mrb[0].mxu0
    %v2159 = vadd.f32 %v2091, %v2158
    %v2160 = vpop.f32.mrb[0].mxu0
    %2161 = vmatprep.mubr.bf16.mxu0 0
    %2162 = vmatmul.mubr.bf16.gmra.mrb[0].mxu0 %v2111
    %v2163 = vpop.f32.mrb[0].mxu0
    %v2164 = vadd.f32 %v2091, %v2163
    %v2165 = vpop.f32.mrb[0].mxu0
    %v2166 = vpop.f32.mrb[0].mxu0
    %v2167 = vpop.f32.mrb[0].mxu0
    %2168 = vdwg.mxu0
    %v2169 = vpack.c.bf16 %v2151, %v2148
    %v2170 = vpack.c.bf16 %v2159, %v2156
    %v2171 = vpack.c.bf16 %v2164, %v2164
    %2177 = vrot.lane.b32.xlu0 %v2148, 96
    %v2178 = vpop.permute.xlu0 %2177
    %2179 = vrot.lane.b32.xlu0 %v2151, 96
    %v2180 = vpop.permute.xlu0 %2179
    %2181 = vrot.lane.b32.xlu0 %v2156, 96
    %v2182 = vpop.permute.xlu0 %2181
    %2183 = vrot.lane.b32.xlu0 %v2159, 96
    %v2184 = vpop.permute.xlu0 %2183
    %2185 = vrot.lane.b32.xlu0 %v2164, 96
    %v2186 = vpop.permute.xlu0 %2185
    %2192 = vxpose.xlu0.b32.start [1/16] %v2178, 128
    %2193 = vxpose.xlu0.b32.cont [2/16] %v2180, 128
    %2194 = vxpose.xlu0.b32.cont [3/16] %v2182, 128
    %2195 = vxpose.xlu0.b32.cont [4/16] %v2184, 128
    %2196 = vxpose.xlu0.b32.cont [5/16] %v2186, 128
    %2197 = vxpose.xlu0.b32.cont [6/16] 0.0, 128
    %2198 = vxpose.xlu0.b32.cont [7/16] 0.0, 128
    %2199 = vxpose.xlu0.b32.cont [8/16] 0.0, 128
    %2200 = vxpose.xlu0.b32.cont [9/16] 0.0, 128
    %2201 = vxpose.xlu0.b32.cont [10/16] 0.0, 128
    %2202 = vxpose.xlu0.b32.cont [11/16] 0.0, 128
    %2203 = vxpose.xlu0.b32.cont [12/16] 0.0, 128
    %2204 = vxpose.xlu0.b32.cont [13/16] 0.0, 128
    %2205 = vxpose.xlu0.b32.cont [14/16] 0.0, 128
    %2206 = vxpose.xlu0.b32.cont [15/16] 0.0, 128
    %2207 = vxpose.xlu0.b32.end [16/16] 0.0, 128
    %v2208 = vpop.trf.xlu0
    %v2209 = vpop.trf.xlu0
    %v2210 = vpop.trf.xlu0
    %v2211 = vpop.trf.xlu0
    %v2212 = vpop.trf.xlu0
    %v2213 = vpop.trf.xlu0
    %v2214 = vpop.trf.xlu0
    %v2215 = vpop.trf.xlu0
    %v2216 = vpop.trf.xlu0
    %v2217 = vpop.trf.xlu0
    %v2218 = vpop.trf.xlu0
    %v2219 = vpop.trf.xlu0
    %v2220 = vpop.trf.xlu0
    %v2221 = vpop.trf.xlu0
    %v2222 = vpop.trf.xlu0
    %v2223 = vpop.trf.xlu0
    %v2224 = vpack.c.bf16 %v2208, %v2208
    %v2226 = vsel %vm465, %v2169, 0
    %v2229 = vsel %vm465, %v2170, 0
    %v2232 = vsel %vm465, %v2171, 0
    %v2235 = vsel %vm475, %v2224, 0
    %2237 = vmatprep.subr.bf16.mxu0 0
    %2238 = vmatpush1.bf16.msra.mxu0 %v2235
    %2239 = vmatprep.subr.bf16.mxu0 0
    %2240 = vmatpush1.bf16.msra.mxu0 0
    %2241 = vmatprep.subr.bf16.mxu0 0
    %2242 = vmatpush1.bf16.msra.mxu0 0
    %2243 = vmatprep.subr.bf16.mxu0 0
    %2244 = vmatpush1.bf16.msra.mxu0 0
    %2245 = vmatprep.subr.bf16.mxu0 0
    %2246 = vmatpush1.bf16.msra.mxu0 0
    %2247 = vmatprep.subr.bf16.mxu0 0
    %2248 = vmatpush1.bf16.msra.mxu0 0
    %2249 = vmatprep.subr.bf16.mxu0 0
    %2250 = vmatpush1.bf16.msra.mxu0 0
    %2251 = vmatprep.subr.bf16.mxu0 0
    %2252 = vmatpush1.bf16.msra.mxu0 0
    %2253 = vmatprep.subr.bf16.mxu0 0
    %2254 = vmatpush1.bf16.msra.mxu0 0
    %2255 = vmatprep.subr.bf16.mxu0 0
    %2256 = vmatpush1.bf16.msra.mxu0 0
    %2257 = vmatprep.subr.bf16.mxu0 0
    %2258 = vmatpush1.bf16.msra.mxu0 0
    %2259 = vmatprep.subr.bf16.mxu0 0
    %2260 = vmatpush1.bf16.msra.mxu0 0
    %2261 = vmatprep.subr.bf16.mxu0 0
    %2262 = vmatpush1.bf16.msra.mxu0 0
    %2263 = vmatprep.subr.bf16.mxu0 0
    %2264 = vmatpush1.bf16.msra.mxu0 0
    %2265 = vmatprep.subr.bf16.mxu0 0
    %2266 = vmatpush1.bf16.msra.mxu0 0
    %2267 = vmatprep.subr.bf16.mxu0 0
    %2268 = vmatpush1.bf16.msra.mxu0 0
    %2269 = vmatprep.mubr.bf16.mxu0 0
    %2270 = vmatmul.mubr.bf16.gmra.mrb[0].mxu0 %v2226
    %v2271 = vpop.f32.mrb[0].mxu0
    %v2272 = vadd.f32 0.0, %v2271
    %v2273 = vpop.f32.mrb[0].mxu0
    %v2274 = vpop.f32.mrb[0].mxu0
    %v2275 = vadd.f32 0.0, %v2274
    %v2276 = vpop.f32.mrb[0].mxu0
    %2277 = vmatprep.mubr.bf16.mxu0 0
    %2278 = vmatmul.mubr.bf16.gmra.mrb[0].mxu0 %v2229
    %v2279 = vpop.f32.mrb[0].mxu0
    %v2280 = vadd.f32 0.0, %v2279
    %v2281 = vpop.f32.mrb[0].mxu0
    %v2282 = vpop.f32.mrb[0].mxu0
    %v2283 = vadd.f32 0.0, %v2282
    %v2284 = vpop.f32.mrb[0].mxu0
    %2285 = vmatprep.mubr.bf16.mxu0 0
    %2286 = vmatmul.mubr.bf16.gmra.mrb[0].mxu0 %v2232
    %v2287 = vpop.f32.mrb[0].mxu0
    %v2288 = vadd.f32 0.0, %v2287
    %v2289 = vpop.f32.mrb[0].mxu0
    %v2290 = vpop.f32.mrb[0].mxu0
    %v2291 = vpop.f32.mrb[0].mxu0
    %2292 = vdwg.mxu0
    %v2293 = vmul.f32 %v2272, 0.35355338
    %v2294 = vmul.f32 %v2275, 0.35355338
    %v2295 = vmul.f32 %v2280, 0.35355338
    %v2296 = vmul.f32 %v2283, 0.35355338
    %v2297 = vmul.f32 %v2288, 0.35355338
    %v2298 = vadd.f32 %v2293, %v207
    %v2299 = vadd.f32 %v2294, %v208
    %v2300 = vadd.f32 %v2295, %v209
    %v2301 = vadd.f32 %v2296, %v210
    %v2302 = vadd.f32 %v2297, %v211
    %v2303 = vsel %vm545, %v2298, -inf
    %2304 = vmax.xlane.f32.xlu0 %v2303
    %v2305 = vpop.xlane.xlu0 %2304
    %v2306 = vsel %vm545, %v2299, -inf
    %2307 = vmax.xlane.f32.xlu0 %v2306
    %v2308 = vpop.xlane.xlu0 %2307
    %v2309 = vsel %vm545, %v2300, -inf
    %2310 = vmax.xlane.f32.xlu0 %v2309
    %v2311 = vpop.xlane.xlu0 %2310
    %v2312 = vsel %vm545, %v2301, -inf
    %2313 = vmax.xlane.f32.xlu0 %v2312
    %v2314 = vpop.xlane.xlu0 %2313
    %v2315 = vsel %vm545, %v2302, -inf
    %2316 = vmax.xlane.f32.xlu0 %v2315
    %v2317 = vpop.xlane.xlu0 %2316
    %v2318 = vsub.f32 %v2298, %v2305
    %v2319 = vsub.f32 %v2299, %v2308
    %v2320 = vsub.f32 %v2300, %v2311
    %v2321 = vsub.f32 %v2301, %v2314
    %v2322 = vsub.f32 %v2302, %v2317
    %v2323 = vmul.f32 %v2318, 1.442695
    %v2324 = vpow.pop %v2323
    %v2325 = vmul.f32 %v2319, 1.442695
    %v2326 = vpow.pop %v2325
    %v2327 = vmul.f32 %v2320, 1.442695
    %v2328 = vpow.pop %v2327
    %v2329 = vmul.f32 %v2321, 1.442695
    %v2330 = vpow.pop %v2329
    %v2331 = vmul.f32 %v2322, 1.442695
    %v2332 = vpow.pop %v2331
    %v2333 = vsel %vm545, %v2324, 0.0
    %2334 = vadd.xlane.f32.xlu0 %v2333
    %v2335 = vpop.xlane.xlu0 %2334
    %v2336 = vsel %vm545, %v2326, 0.0
    %2337 = vadd.xlane.f32.xlu0 %v2336
    %v2338 = vpop.xlane.xlu0 %2337
    %v2339 = vsel %vm545, %v2328, 0.0
    %2340 = vadd.xlane.f32.xlu0 %v2339
    %v2341 = vpop.xlane.xlu0 %2340
    %v2342 = vsel %vm545, %v2330, 0.0
    %2343 = vadd.xlane.f32.xlu0 %v2342
    %v2344 = vpop.xlane.xlu0 %2343
    %v2345 = vsel %vm545, %v2332, 0.0
    %2346 = vadd.xlane.f32.xlu0 %v2345
    %v2347 = vpop.xlane.xlu0 %2346
    %v2348 = vrcp.pop %v2335
    %v2349 = vrcp.pop %v2338
    %v2350 = vrcp.pop %v2341
    %v2351 = vrcp.pop %v2344
    %v2352 = vrcp.pop %v2347
    %v2353 = vmul.f32 %v2324, %v2348
    %v2354 = vmul.f32 %v2326, %v2349
    %v2355 = vmul.f32 %v2328, %v2350
    %v2356 = vmul.f32 %v2330, %v2351
    %v2357 = vmul.f32 %v2332, %v2352
    %v2358 = vpack.c.bf16 %v2354, %v2353
    %v2359 = vpack.c.bf16 %v2356, %v2355
    %v2360 = vpack.c.bf16 %v2357, %v2357
    %2364 = vrot.lane.b32.xlu0 %v2169, 64
    %v2365 = vpop.permute.xlu0 %2364
    %2366 = vrot.lane.b32.xlu0 %v2170, 64
    %v2367 = vpop.permute.xlu0 %2366
    %2368 = vrot.lane.b32.xlu0 %v2171, 64
    %v2369 = vpop.permute.xlu0 %2368
    %v2373 = vsel %vm545, %v2358, 0
    %v2376 = vsel %vm545, %v2359, 0
    %v2379 = vsel %vm545, %v2360, 0
    %v2382 = vsel %vm475, %v2369, 0
    %2384 = vmatprep.subr.bf16.mxu0 0
    %2385 = vmatpush1.bf16.msra.mxu0 %v2365
    %2386 = vmatprep.subr.bf16.mxu0 0
    %2387 = vmatpush1.bf16.msra.mxu0 %v2367
    %2388 = vmatprep.subr.bf16.mxu0 0
    %2389 = vmatpush1.bf16.msra.mxu0 %v2382
    %2390 = vmatprep.subr.bf16.mxu0 0
    %2391 = vmatpush1.bf16.msra.mxu0 0
    %2392 = vmatprep.subr.bf16.mxu0 0
    %2393 = vmatpush1.bf16.msra.mxu0 0
    %2394 = vmatprep.subr.bf16.mxu0 0
    %2395 = vmatpush1.bf16.msra.mxu0 0
    %2396 = vmatprep.subr.bf16.mxu0 0
    %2397 = vmatpush1.bf16.msra.mxu0 0
    %2398 = vmatprep.subr.bf16.mxu0 0
    %2399 = vmatpush1.bf16.msra.mxu0 0
    %2400 = vmatprep.subr.bf16.mxu0 0
    %2401 = vmatpush1.bf16.msra.mxu0 0
    %2402 = vmatprep.subr.bf16.mxu0 0
    %2403 = vmatpush1.bf16.msra.mxu0 0
    %2404 = vmatprep.subr.bf16.mxu0 0
    %2405 = vmatpush1.bf16.msra.mxu0 0
    %2406 = vmatprep.subr.bf16.mxu0 0
    %2407 = vmatpush1.bf16.msra.mxu0 0
    %2408 = vmatprep.subr.bf16.mxu0 0
    %2409 = vmatpush1.bf16.msra.mxu0 0
    %2410 = vmatprep.subr.bf16.mxu0 0
    %2411 = vmatpush1.bf16.msra.mxu0 0
    %2412 = vmatprep.subr.bf16.mxu0 0
    %2413 = vmatpush1.bf16.msra.mxu0 0
    %2414 = vmatprep.subr.bf16.mxu0 0
    %2415 = vmatpush1.bf16.msra.mxu0 0
    %2416 = vmatprep.mubr.bf16.mxu0 0
    %2417 = vmatmul.mubr.bf16.gmra.mrb[0].mxu0 %v2373
    %v2418 = vpop.f32.mrb[0].mxu0
    %v2419 = vadd.f32 0.0, %v2418
    %v2420 = vpop.f32.mrb[0].mxu0
    %v2421 = vpop.f32.mrb[0].mxu0
    %v2422 = vadd.f32 0.0, %v2421
    %v2423 = vpop.f32.mrb[0].mxu0
    %2424 = vmatprep.mubr.bf16.mxu0 0
    %2425 = vmatmul.mubr.bf16.gmra.mrb[0].mxu0 %v2376
    %v2426 = vpop.f32.mrb[0].mxu0
    %v2427 = vadd.f32 0.0, %v2426
    %v2428 = vpop.f32.mrb[0].mxu0
    %v2429 = vpop.f32.mrb[0].mxu0
    %v2430 = vadd.f32 0.0, %v2429
    %v2431 = vpop.f32.mrb[0].mxu0
    %2432 = vmatprep.mubr.bf16.mxu0 0
    %2433 = vmatmul.mubr.bf16.gmra.mrb[0].mxu0 %v2379
    %v2434 = vpop.f32.mrb[0].mxu0
    %v2435 = vadd.f32 0.0, %v2434
    %v2436 = vpop.f32.mrb[0].mxu0
    %v2437 = vpop.f32.mrb[0].mxu0
    %v2438 = vpop.f32.mrb[0].mxu0
    %2439 = vdwg.mxu0
    %2440 = vrot.lane.b32.xlu0 %v2148, 88
    %v2441 = vpop.permute.xlu0 %2440
    %2442 = vrot.lane.b32.xlu0 %v2151, 88
    %v2443 = vpop.permute.xlu0 %2442
    %2444 = vrot.lane.b32.xlu0 %v2156, 88
    %v2445 = vpop.permute.xlu0 %2444
    %2446 = vrot.lane.b32.xlu0 %v2159, 88
    %v2447 = vpop.permute.xlu0 %2446
    %2448 = vrot.lane.b32.xlu0 %v2164, 88
    %v2449 = vpop.permute.xlu0 %2448
    %2455 = vxpose.xlu0.b32.start [1/16] %v2441, 128
    %2456 = vxpose.xlu0.b32.cont [2/16] %v2443, 128
    %2457 = vxpose.xlu0.b32.cont [3/16] %v2445, 128
    %2458 = vxpose.xlu0.b32.cont [4/16] %v2447, 128
    %2459 = vxpose.xlu0.b32.cont [5/16] %v2449, 128
    %2460 = vxpose.xlu0.b32.cont [6/16] 0.0, 128
    %2461 = vxpose.xlu0.b32.cont [7/16] 0.0, 128
    %2462 = vxpose.xlu0.b32.cont [8/16] 0.0, 128
    %2463 = vxpose.xlu0.b32.cont [9/16] 0.0, 128
    %2464 = vxpose.xlu0.b32.cont [10/16] 0.0, 128
    %2465 = vxpose.xlu0.b32.cont [11/16] 0.0, 128
    %2466 = vxpose.xlu0.b32.cont [12/16] 0.0, 128
    %2467 = vxpose.xlu0.b32.cont [13/16] 0.0, 128
    %2468 = vxpose.xlu0.b32.cont [14/16] 0.0, 128
    %2469 = vxpose.xlu0.b32.cont [15/16] 0.0, 128
    %2470 = vxpose.xlu0.b32.end [16/16] 0.0, 128
    %v2471 = vpop.trf.xlu0
    %v2472 = vpop.trf.xlu0
    %v2473 = vpop.trf.xlu0
    %v2474 = vpop.trf.xlu0
    %v2475 = vpop.trf.xlu0
    %v2476 = vpop.trf.xlu0
    %v2477 = vpop.trf.xlu0
    %v2478 = vpop.trf.xlu0
    %v2479 = vpop.trf.xlu0
    %v2480 = vpop.trf.xlu0
    %v2481 = vpop.trf.xlu0
    %v2482 = vpop.trf.xlu0
    %v2483 = vpop.trf.xlu0
    %v2484 = vpop.trf.xlu0
    %v2485 = vpop.trf.xlu0
    %v2486 = vpop.trf.xlu0
    %v2487 = vpack.c.bf16 %v2471, %v2471
    %2488 = vrot.lane.b32.xlu0 %v2169, 120
    %v2489 = vpop.permute.xlu0 %2488
    %2490 = vrot.lane.b32.xlu0 %v2170, 120
    %v2491 = vpop.permute.xlu0 %2490
    %2492 = vrot.lane.b32.xlu0 %v2171, 120
    %v2493 = vpop.permute.xlu0 %2492
    %v2495 = vsel %vm465, %v2489, 0
    %v2498 = vsel %vm465, %v2491, 0
    %v2501 = vsel %vm465, %v2493, 0
    %v2504 = vsel %vm475, %v2487, 0
    %2506 = vmatprep.subr.bf16.mxu0 0
    %2507 = vmatpush1.bf16.msra.mxu0 %v2504
    %2508 = vmatprep.subr.bf16.mxu0 0
    %2509 = vmatpush1.bf16.msra.mxu0 0
    %2510 = vmatprep.subr.bf16.mxu0 0
    %2511 = vmatpush1.bf16.msra.mxu0 0
    %2512 = vmatprep.subr.bf16.mxu0 0
    %2513 = vmatpush1.bf16.msra.mxu0 0
    %2514 = vmatprep.subr.bf16.mxu0 0
    %2515 = vmatpush1.bf16.msra.mxu0 0
    %2516 = vmatprep.subr.bf16.mxu0 0
    %2517 = vmatpush1.bf16.msra.mxu0 0
    %2518 = vmatprep.subr.bf16.mxu0 0
    %2519 = vmatpush1.bf16.msra.mxu0 0
    %2520 = vmatprep.subr.bf16.mxu0 0
    %2521 = vmatpush1.bf16.msra.mxu0 0
    %2522 = vmatprep.subr.bf16.mxu0 0
    %2523 = vmatpush1.bf16.msra.mxu0 0
    %2524 = vmatprep.subr.bf16.mxu0 0
    %2525 = vmatpush1.bf16.msra.mxu0 0
    %2526 = vmatprep.subr.bf16.mxu0 0
    %2527 = vmatpush1.bf16.msra.mxu0 0
    %2528 = vmatprep.subr.bf16.mxu0 0
    %2529 = vmatpush1.bf16.msra.mxu0 0
    %2530 = vmatprep.subr.bf16.mxu0 0
    %2531 = vmatpush1.bf16.msra.mxu0 0
    %2532 = vmatprep.subr.bf16.mxu0 0
    %2533 = vmatpush1.bf16.msra.mxu0 0
    %2534 = vmatprep.subr.bf16.mxu0 0
    %2535 = vmatpush1.bf16.msra.mxu0 0
    %2536 = vmatprep.subr.bf16.mxu0 0
    %2537 = vmatpush1.bf16.msra.mxu0 0
    %2538 = vmatprep.mubr.bf16.mxu0 0
    %2539 = vmatmul.mubr.bf16.gmra.mrb[0].mxu0 %v2495
    %v2540 = vpop.f32.mrb[0].mxu0
    %v2541 = vadd.f32 0.0, %v2540
    %v2542 = vpop.f32.mrb[0].mxu0
    %v2543 = vpop.f32.mrb[0].mxu0
    %v2544 = vadd.f32 0.0, %v2543
    %v2545 = vpop.f32.mrb[0].mxu0
    %2546 = vmatprep.mubr.bf16.mxu0 0
    %2547 = vmatmul.mubr.bf16.gmra.mrb[0].mxu0 %v2498
    %v2548 = vpop.f32.mrb[0].mxu0
    %v2549 = vadd.f32 0.0, %v2548
    %v2550 = vpop.f32.mrb[0].mxu0
    %v2551 = vpop.f32.mrb[0].mxu0
    %v2552 = vadd.f32 0.0, %v2551
    %v2553 = vpop.f32.mrb[0].mxu0
    %2554 = vmatprep.mubr.bf16.mxu0 0
    %2555 = vmatmul.mubr.bf16.gmra.mrb[0].mxu0 %v2501
    %v2556 = vpop.f32.mrb[0].mxu0
    %v2557 = vadd.f32 0.0, %v2556
    %v2558 = vpop.f32.mrb[0].mxu0
    %v2559 = vpop.f32.mrb[0].mxu0
    %v2560 = vpop.f32.mrb[0].mxu0
    %2561 = vdwg.mxu0
    %v2562 = vmul.f32 %v2541, 0.35355338
    %v2563 = vmul.f32 %v2544, 0.35355338
    %v2564 = vmul.f32 %v2549, 0.35355338
    %v2565 = vmul.f32 %v2552, 0.35355338
    %v2566 = vmul.f32 %v2557, 0.35355338
    %v2567 = vadd.f32 %v2562, %v207
    %v2568 = vadd.f32 %v2563, %v208
    %v2569 = vadd.f32 %v2564, %v209
    %v2570 = vadd.f32 %v2565, %v210
    %v2571 = vadd.f32 %v2566, %v211
    %v2572 = vsel %vm545, %v2567, -inf
    %2573 = vmax.xlane.f32.xlu0 %v2572
    %v2574 = vpop.xlane.xlu0 %2573
    %v2575 = vsel %vm545, %v2568, -inf
    %2576 = vmax.xlane.f32.xlu0 %v2575
    %v2577 = vpop.xlane.xlu0 %2576
    %v2578 = vsel %vm545, %v2569, -inf
    %2579 = vmax.xlane.f32.xlu0 %v2578
    %v2580 = vpop.xlane.xlu0 %2579
    %v2581 = vsel %vm545, %v2570, -inf
    %2582 = vmax.xlane.f32.xlu0 %v2581
    %v2583 = vpop.xlane.xlu0 %2582
    %v2584 = vsel %vm545, %v2571, -inf
    %2585 = vmax.xlane.f32.xlu0 %v2584
    %v2586 = vpop.xlane.xlu0 %2585
    %v2587 = vsub.f32 %v2567, %v2574
    %v2588 = vsub.f32 %v2568, %v2577
    %v2589 = vsub.f32 %v2569, %v2580
    %v2590 = vsub.f32 %v2570, %v2583
    %v2591 = vsub.f32 %v2571, %v2586
    %v2592 = vmul.f32 %v2587, 1.442695
    %v2593 = vpow.pop %v2592
    %v2594 = vmul.f32 %v2588, 1.442695
    %v2595 = vpow.pop %v2594
    %v2596 = vmul.f32 %v2589, 1.442695
    %v2597 = vpow.pop %v2596
    %v2598 = vmul.f32 %v2590, 1.442695
    %v2599 = vpow.pop %v2598
    %v2600 = vmul.f32 %v2591, 1.442695
    %v2601 = vpow.pop %v2600
    %v2602 = vsel %vm545, %v2593, 0.0
    %2603 = vadd.xlane.f32.xlu0 %v2602
    %v2604 = vpop.xlane.xlu0 %2603
    %v2605 = vsel %vm545, %v2595, 0.0
    %2606 = vadd.xlane.f32.xlu0 %v2605
    %v2607 = vpop.xlane.xlu0 %2606
    %v2608 = vsel %vm545, %v2597, 0.0
    %2609 = vadd.xlane.f32.xlu0 %v2608
    %v2610 = vpop.xlane.xlu0 %2609
    %v2611 = vsel %vm545, %v2599, 0.0
    %2612 = vadd.xlane.f32.xlu0 %v2611
    %v2613 = vpop.xlane.xlu0 %2612
    %v2614 = vsel %vm545, %v2601, 0.0
    %2615 = vadd.xlane.f32.xlu0 %v2614
    %v2616 = vpop.xlane.xlu0 %2615
    %v2617 = vrcp.pop %v2604
    %v2618 = vrcp.pop %v2607
    %v2619 = vrcp.pop %v2610
    %v2620 = vrcp.pop %v2613
    %v2621 = vrcp.pop %v2616
    %v2622 = vmul.f32 %v2593, %v2617
    %v2623 = vmul.f32 %v2595, %v2618
    %v2624 = vmul.f32 %v2597, %v2619
    %v2625 = vmul.f32 %v2599, %v2620
    %v2626 = vmul.f32 %v2601, %v2621
    %v2627 = vpack.c.bf16 %v2623, %v2622
    %v2628 = vpack.c.bf16 %v2625, %v2624
    %v2629 = vpack.c.bf16 %v2626, %v2626
    %2630 = vrot.lane.b32.xlu0 %v2169, 56
    %v2631 = vpop.permute.xlu0 %2630
    %2632 = vrot.lane.b32.xlu0 %v2170, 56
    %v2633 = vpop.permute.xlu0 %2632
    %2634 = vrot.lane.b32.xlu0 %v2171, 56
    %v2635 = vpop.permute.xlu0 %2634
    %v2639 = vsel %vm545, %v2627, 0
    %v2642 = vsel %vm545, %v2628, 0
    %v2645 = vsel %vm545, %v2629, 0
    %v2648 = vsel %vm475, %v2635, 0
    %2650 = vmatprep.subr.bf16.mxu0 0
    %2651 = vmatpush1.bf16.msra.mxu0 %v2631
    %2652 = vmatprep.subr.bf16.mxu0 0
    %2653 = vmatpush1.bf16.msra.mxu0 %v2633
    %2654 = vmatprep.subr.bf16.mxu0 0
    %2655 = vmatpush1.bf16.msra.mxu0 %v2648
    %2656 = vmatprep.subr.bf16.mxu0 0
    %2657 = vmatpush1.bf16.msra.mxu0 0
    %2658 = vmatprep.subr.bf16.mxu0 0
    %2659 = vmatpush1.bf16.msra.mxu0 0
    %2660 = vmatprep.subr.bf16.mxu0 0
    %2661 = vmatpush1.bf16.msra.mxu0 0
    %2662 = vmatprep.subr.bf16.mxu0 0
    %2663 = vmatpush1.bf16.msra.mxu0 0
    %2664 = vmatprep.subr.bf16.mxu0 0
    %2665 = vmatpush1.bf16.msra.mxu0 0
    %2666 = vmatprep.subr.bf16.mxu0 0
    %2667 = vmatpush1.bf16.msra.mxu0 0
    %2668 = vmatprep.subr.bf16.mxu0 0
    %2669 = vmatpush1.bf16.msra.mxu0 0
    %2670 = vmatprep.subr.bf16.mxu0 0
    %2671 = vmatpush1.bf16.msra.mxu0 0
    %2672 = vmatprep.subr.bf16.mxu0 0
    %2673 = vmatpush1.bf16.msra.mxu0 0
    %2674 = vmatprep.subr.bf16.mxu0 0
    %2675 = vmatpush1.bf16.msra.mxu0 0
    %2676 = vmatprep.subr.bf16.mxu0 0
    %2677 = vmatpush1.bf16.msra.mxu0 0
    %2678 = vmatprep.subr.bf16.mxu0 0
    %2679 = vmatpush1.bf16.msra.mxu0 0
    %2680 = vmatprep.subr.bf16.mxu0 0
    %2681 = vmatpush1.bf16.msra.mxu0 0
    %2682 = vmatprep.mubr.bf16.mxu0 0
    %2683 = vmatmul.mubr.bf16.gmra.mrb[0].mxu0 %v2639
    %v2684 = vpop.f32.mrb[0].mxu0
    %v2685 = vadd.f32 0.0, %v2684
    %v2686 = vpop.f32.mrb[0].mxu0
    %v2687 = vpop.f32.mrb[0].mxu0
    %v2688 = vadd.f32 0.0, %v2687
    %v2689 = vpop.f32.mrb[0].mxu0
    %2690 = vmatprep.mubr.bf16.mxu0 0
    %2691 = vmatmul.mubr.bf16.gmra.mrb[0].mxu0 %v2642
    %v2692 = vpop.f32.mrb[0].mxu0
    %v2693 = vadd.f32 0.0, %v2692
    %v2694 = vpop.f32.mrb[0].mxu0
    %v2695 = vpop.f32.mrb[0].mxu0
    %v2696 = vadd.f32 0.0, %v2695
    %v2697 = vpop.f32.mrb[0].mxu0
    %2698 = vmatprep.mubr.bf16.mxu0 0
    %2699 = vmatmul.mubr.bf16.gmra.mrb[0].mxu0 %v2645
    %v2700 = vpop.f32.mrb[0].mxu0
    %v2701 = vadd.f32 0.0, %v2700
    %v2702 = vpop.f32.mrb[0].mxu0
    %v2703 = vpop.f32.mrb[0].mxu0
    %v2704 = vpop.f32.mrb[0].mxu0
    %2705 = vdwg.mxu0
    %2706 = vrot.lane.b32.xlu0 %v2148, 80
    %v2707 = vpop.permute.xlu0 %2706
    %2708 = vrot.lane.b32.xlu0 %v2151, 80
    %v2709 = vpop.permute.xlu0 %2708
    %2710 = vrot.lane.b32.xlu0 %v2156, 80
    %v2711 = vpop.permute.xlu0 %2710
    %2712 = vrot.lane.b32.xlu0 %v2159, 80
    %v2713 = vpop.permute.xlu0 %2712
    %2714 = vrot.lane.b32.xlu0 %v2164, 80
    %v2715 = vpop.permute.xlu0 %2714
    %2721 = vxpose.xlu0.b32.start [1/16] %v2707, 128
    %2722 = vxpose.xlu0.b32.cont [2/16] %v2709, 128
    %2723 = vxpose.xlu0.b32.cont [3/16] %v2711, 128
    %2724 = vxpose.xlu0.b32.cont [4/16] %v2713, 128
    %2725 = vxpose.xlu0.b32.cont [5/16] %v2715, 128
    %2726 = vxpose.xlu0.b32.cont [6/16] 0.0, 128
    %2727 = vxpose.xlu0.b32.cont [7/16] 0.0, 128
    %2728 = vxpose.xlu0.b32.cont [8/16] 0.0, 128
    %2729 = vxpose.xlu0.b32.cont [9/16] 0.0, 128
    %2730 = vxpose.xlu0.b32.cont [10/16] 0.0, 128
    %2731 = vxpose.xlu0.b32.cont [11/16] 0.0, 128
    %2732 = vxpose.xlu0.b32.cont [12/16] 0.0, 128
    %2733 = vxpose.xlu0.b32.cont [13/16] 0.0, 128
    %2734 = vxpose.xlu0.b32.cont [14/16] 0.0, 128
    %2735 = vxpose.xlu0.b32.cont [15/16] 0.0, 128
    %2736 = vxpose.xlu0.b32.end [16/16] 0.0, 128
    %v2737 = vpop.trf.xlu0
    %v2738 = vpop.trf.xlu0
    %v2739 = vpop.trf.xlu0
    %v2740 = vpop.trf.xlu0
    %v2741 = vpop.trf.xlu0
    %v2742 = vpop.trf.xlu0
    %v2743 = vpop.trf.xlu0
    %v2744 = vpop.trf.xlu0
    %v2745 = vpop.trf.xlu0
    %v2746 = vpop.trf.xlu0
    %v2747 = vpop.trf.xlu0
    %v2748 = vpop.trf.xlu0
    %v2749 = vpop.trf.xlu0
    %v2750 = vpop.trf.xlu0
    %v2751 = vpop.trf.xlu0
    %v2752 = vpop.trf.xlu0
    %v2753 = vpack.c.bf16 %v2737, %v2737
    %2754 = vrot.lane.b32.xlu0 %v2169, 112
    %v2755 = vpop.permute.xlu0 %2754
    %2756 = vrot.lane.b32.xlu0 %v2170, 112
    %v2757 = vpop.permute.xlu0 %2756
    %2758 = vrot.lane.b32.xlu0 %v2171, 112
    %v2759 = vpop.permute.xlu0 %2758
    %v2761 = vsel %vm465, %v2755, 0
    %v2764 = vsel %vm465, %v2757, 0
    %v2767 = vsel %vm465, %v2759, 0
    %v2770 = vsel %vm475, %v2753, 0
    %2772 = vmatprep.subr.bf16.mxu0 0
    %2773 = vmatpush1.bf16.msra.mxu0 %v2770
    %2774 = vmatprep.subr.bf16.mxu0 0
    %2775 = vmatpush1.bf16.msra.mxu0 0
    %2776 = vmatprep.subr.bf16.mxu0 0
    %2777 = vmatpush1.bf16.msra.mxu0 0
    %2778 = vmatprep.subr.bf16.mxu0 0
    %2779 = vmatpush1.bf16.msra.mxu0 0
    %2780 = vmatprep.subr.bf16.mxu0 0
    %2781 = vmatpush1.bf16.msra.mxu0 0
    %2782 = vmatprep.subr.bf16.mxu0 0
    %2783 = vmatpush1.bf16.msra.mxu0 0
    %2784 = vmatprep.subr.bf16.mxu0 0
    %2785 = vmatpush1.bf16.msra.mxu0 0
    %2786 = vmatprep.subr.bf16.mxu0 0
    %2787 = vmatpush1.bf16.msra.mxu0 0
    %2788 = vmatprep.subr.bf16.mxu0 0
    %2789 = vmatpush1.bf16.msra.mxu0 0
    %2790 = vmatprep.subr.bf16.mxu0 0
    %2791 = vmatpush1.bf16.msra.mxu0 0
    %2792 = vmatprep.subr.bf16.mxu0 0
    %2793 = vmatpush1.bf16.msra.mxu0 0
    %2794 = vmatprep.subr.bf16.mxu0 0
    %2795 = vmatpush1.bf16.msra.mxu0 0
    %2796 = vmatprep.subr.bf16.mxu0 0
    %2797 = vmatpush1.bf16.msra.mxu0 0
    %2798 = vmatprep.subr.bf16.mxu0 0
    %2799 = vmatpush1.bf16.msra.mxu0 0
    %2800 = vmatprep.subr.bf16.mxu0 0
    %2801 = vmatpush1.bf16.msra.mxu0 0
    %2802 = vmatprep.subr.bf16.mxu0 0
    %2803 = vmatpush1.bf16.msra.mxu0 0
    %2804 = vmatprep.mubr.bf16.mxu0 0
    %2805 = vmatmul.mubr.bf16.gmra.mrb[0].mxu0 %v2761
    %v2806 = vpop.f32.mrb[0].mxu0
    %v2807 = vadd.f32 0.0, %v2806
    %v2808 = vpop.f32.mrb[0].mxu0
    %v2809 = vpop.f32.mrb[0].mxu0
    %v2810 = vadd.f32 0.0, %v2809
    %v2811 = vpop.f32.mrb[0].mxu0
    %2812 = vmatprep.mubr.bf16.mxu0 0
    %2813 = vmatmul.mubr.bf16.gmra.mrb[0].mxu0 %v2764
    %v2814 = vpop.f32.mrb[0].mxu0
    %v2815 = vadd.f32 0.0, %v2814
    %v2816 = vpop.f32.mrb[0].mxu0
    %v2817 = vpop.f32.mrb[0].mxu0
    %v2818 = vadd.f32 0.0, %v2817
    %v2819 = vpop.f32.mrb[0].mxu0
    %2820 = vmatprep.mubr.bf16.mxu0 0
    %2821 = vmatmul.mubr.bf16.gmra.mrb[0].mxu0 %v2767
    %v2822 = vpop.f32.mrb[0].mxu0
    %v2823 = vadd.f32 0.0, %v2822
    %v2824 = vpop.f32.mrb[0].mxu0
    %v2825 = vpop.f32.mrb[0].mxu0
    %v2826 = vpop.f32.mrb[0].mxu0
    %2827 = vdwg.mxu0
    %v2828 = vmul.f32 %v2807, 0.35355338
    %v2829 = vmul.f32 %v2810, 0.35355338
    %v2830 = vmul.f32 %v2815, 0.35355338
    %v2831 = vmul.f32 %v2818, 0.35355338
    %v2832 = vmul.f32 %v2823, 0.35355338
    %v2833 = vadd.f32 %v2828, %v207
    %v2834 = vadd.f32 %v2829, %v208
    %v2835 = vadd.f32 %v2830, %v209
    %v2836 = vadd.f32 %v2831, %v210
    %v2837 = vadd.f32 %v2832, %v211
    %v2838 = vsel %vm545, %v2833, -inf
    %2839 = vmax.xlane.f32.xlu0 %v2838
    %v2840 = vpop.xlane.xlu0 %2839
    %v2841 = vsel %vm545, %v2834, -inf
    %2842 = vmax.xlane.f32.xlu0 %v2841
    %v2843 = vpop.xlane.xlu0 %2842
    %v2844 = vsel %vm545, %v2835, -inf
    %2845 = vmax.xlane.f32.xlu0 %v2844
    %v2846 = vpop.xlane.xlu0 %2845
    %v2847 = vsel %vm545, %v2836, -inf
    %2848 = vmax.xlane.f32.xlu0 %v2847
    %v2849 = vpop.xlane.xlu0 %2848
    %v2850 = vsel %vm545, %v2837, -inf
    %2851 = vmax.xlane.f32.xlu0 %v2850
    %v2852 = vpop.xlane.xlu0 %2851
    %v2853 = vsub.f32 %v2833, %v2840
    %v2854 = vsub.f32 %v2834, %v2843
    %v2855 = vsub.f32 %v2835, %v2846
    %v2856 = vsub.f32 %v2836, %v2849
    %v2857 = vsub.f32 %v2837, %v2852
    %v2858 = vmul.f32 %v2853, 1.442695
    %v2859 = vpow.pop %v2858
    %v2860 = vmul.f32 %v2854, 1.442695
    %v2861 = vpow.pop %v2860
    %v2862 = vmul.f32 %v2855, 1.442695
    %v2863 = vpow.pop %v2862
    %v2864 = vmul.f32 %v2856, 1.442695
    %v2865 = vpow.pop %v2864
    %v2866 = vmul.f32 %v2857, 1.442695
    %v2867 = vpow.pop %v2866
    %v2868 = vsel %vm545, %v2859, 0.0
    %2869 = vadd.xlane.f32.xlu0 %v2868
    %v2870 = vpop.xlane.xlu0 %2869
    %v2871 = vsel %vm545, %v2861, 0.0
    %2872 = vadd.xlane.f32.xlu0 %v2871
    %v2873 = vpop.xlane.xlu0 %2872
    %v2874 = vsel %vm545, %v2863, 0.0
    %2875 = vadd.xlane.f32.xlu0 %v2874
    %v2876 = vpop.xlane.xlu0 %2875
    %v2877 = vsel %vm545, %v2865, 0.0
    %2878 = vadd.xlane.f32.xlu0 %v2877
    %v2879 = vpop.xlane.xlu0 %2878
    %v2880 = vsel %vm545, %v2867, 0.0
    %2881 = vadd.xlane.f32.xlu0 %v2880
    %v2882 = vpop.xlane.xlu0 %2881
    %v2883 = vrcp.pop %v2870
    %v2884 = vrcp.pop %v2873
    %v2885 = vrcp.pop %v2876
    %v2886 = vrcp.pop %v2879
    %v2887 = vrcp.pop %v2882
    %v2888 = vmul.f32 %v2859, %v2883
    %v2889 = vmul.f32 %v2861, %v2884
    %v2890 = vmul.f32 %v2863, %v2885
    %v2891 = vmul.f32 %v2865, %v2886
    %v2892 = vmul.f32 %v2867, %v2887
    %v2893 = vpack.c.bf16 %v2889, %v2888
    %v2894 = vpack.c.bf16 %v2891, %v2890
    %v2895 = vpack.c.bf16 %v2892, %v2892
    %2896 = vrot.lane.b32.xlu0 %v2169, 48
    %v2897 = vpop.permute.xlu0 %2896
    %2898 = vrot.lane.b32.xlu0 %v2170, 48
    %v2899 = vpop.permute.xlu0 %2898
    %2900 = vrot.lane.b32.xlu0 %v2171, 48
    %v2901 = vpop.permute.xlu0 %2900
    %v2905 = vsel %vm545, %v2893, 0
    %v2908 = vsel %vm545, %v2894, 0
    %v2911 = vsel %vm545, %v2895, 0
    %v2914 = vsel %vm475, %v2901, 0
    %2916 = vmatprep.subr.bf16.mxu0 0
    %2917 = vmatpush1.bf16.msra.mxu0 %v2897
    %2918 = vmatprep.subr.bf16.mxu0 0
    %2919 = vmatpush1.bf16.msra.mxu0 %v2899
    %2920 = vmatprep.subr.bf16.mxu0 0
    %2921 = vmatpush1.bf16.msra.mxu0 %v2914
    %2922 = vmatprep.subr.bf16.mxu0 0
    %2923 = vmatpush1.bf16.msra.mxu0 0
    %2924 = vmatprep.subr.bf16.mxu0 0
    %2925 = vmatpush1.bf16.msra.mxu0 0
    %2926 = vmatprep.subr.bf16.mxu0 0
    %2927 = vmatpush1.bf16.msra.mxu0 0
    %2928 = vmatprep.subr.bf16.mxu0 0
    %2929 = vmatpush1.bf16.msra.mxu0 0
    %2930 = vmatprep.subr.bf16.mxu0 0
    %2931 = vmatpush1.bf16.msra.mxu0 0
    %2932 = vmatprep.subr.bf16.mxu0 0
    %2933 = vmatpush1.bf16.msra.mxu0 0
    %2934 = vmatprep.subr.bf16.mxu0 0
    %2935 = vmatpush1.bf16.msra.mxu0 0
    %2936 = vmatprep.subr.bf16.mxu0 0
    %2937 = vmatpush1.bf16.msra.mxu0 0
    %2938 = vmatprep.subr.bf16.mxu0 0
    %2939 = vmatpush1.bf16.msra.mxu0 0
    %2940 = vmatprep.subr.bf16.mxu0 0
    %2941 = vmatpush1.bf16.msra.mxu0 0
    %2942 = vmatprep.subr.bf16.mxu0 0
    %2943 = vmatpush1.bf16.msra.mxu0 0
    %2944 = vmatprep.subr.bf16.mxu0 0
    %2945 = vmatpush1.bf16.msra.mxu0 0
    %2946 = vmatprep.subr.bf16.mxu0 0
    %2947 = vmatpush1.bf16.msra.mxu0 0
    %2948 = vmatprep.mubr.bf16.mxu0 0
    %2949 = vmatmul.mubr.bf16.gmra.mrb[0].mxu0 %v2905
    %v2950 = vpop.f32.mrb[0].mxu0
    %v2951 = vadd.f32 0.0, %v2950
    %v2952 = vpop.f32.mrb[0].mxu0
    %v2953 = vpop.f32.mrb[0].mxu0
    %v2954 = vadd.f32 0.0, %v2953
    %v2955 = vpop.f32.mrb[0].mxu0
    %2956 = vmatprep.mubr.bf16.mxu0 0
    %2957 = vmatmul.mubr.bf16.gmra.mrb[0].mxu0 %v2908
    %v2958 = vpop.f32.mrb[0].mxu0
    %v2959 = vadd.f32 0.0, %v2958
    %v2960 = vpop.f32.mrb[0].mxu0
    %v2961 = vpop.f32.mrb[0].mxu0
    %v2962 = vadd.f32 0.0, %v2961
    %v2963 = vpop.f32.mrb[0].mxu0
    %2964 = vmatprep.mubr.bf16.mxu0 0
    %2965 = vmatmul.mubr.bf16.gmra.mrb[0].mxu0 %v2911
    %v2966 = vpop.f32.mrb[0].mxu0
    %v2967 = vadd.f32 0.0, %v2966
    %v2968 = vpop.f32.mrb[0].mxu0
    %v2969 = vpop.f32.mrb[0].mxu0
    %v2970 = vpop.f32.mrb[0].mxu0
    %2971 = vdwg.mxu0
    %2972 = vrot.lane.b32.xlu0 %v2148, 72
    %v2973 = vpop.permute.xlu0 %2972
    %2974 = vrot.lane.b32.xlu0 %v2151, 72
    %v2975 = vpop.permute.xlu0 %2974
    %2976 = vrot.lane.b32.xlu0 %v2156, 72
    %v2977 = vpop.permute.xlu0 %2976
    %2978 = vrot.lane.b32.xlu0 %v2159, 72
    %v2979 = vpop.permute.xlu0 %2978
    %2980 = vrot.lane.b32.xlu0 %v2164, 72
    %v2981 = vpop.permute.xlu0 %2980
    %2987 = vxpose.xlu0.b32.start [1/16] %v2973, 128
    %2988 = vxpose.xlu0.b32.cont [2/16] %v2975, 128
    %2989 = vxpose.xlu0.b32.cont [3/16] %v2977, 128
    %2990 = vxpose.xlu0.b32.cont [4/16] %v2979, 128
    %2991 = vxpose.xlu0.b32.cont [5/16] %v2981, 128
    %2992 = vxpose.xlu0.b32.cont [6/16] 0.0, 128
    %2993 = vxpose.xlu0.b32.cont [7/16] 0.0, 128
    %2994 = vxpose.xlu0.b32.cont [8/16] 0.0, 128
    %2995 = vxpose.xlu0.b32.cont [9/16] 0.0, 128
    %2996 = vxpose.xlu0.b32.cont [10/16] 0.0, 128
    %2997 = vxpose.xlu0.b32.cont [11/16] 0.0, 128
    %2998 = vxpose.xlu0.b32.cont [12/16] 0.0, 128
    %2999 = vxpose.xlu0.b32.cont [13/16] 0.0, 128
    %3000 = vxpose.xlu0.b32.cont [14/16] 0.0, 128
    %3001 = vxpose.xlu0.b32.cont [15/16] 0.0, 128
    %3002 = vxpose.xlu0.b32.end [16/16] 0.0, 128
    %v3003 = vpop.trf.xlu0
    %v3004 = vpop.trf.xlu0
    %v3005 = vpop.trf.xlu0
    %v3006 = vpop.trf.xlu0
    %v3007 = vpop.trf.xlu0
    %v3008 = vpop.trf.xlu0
    %v3009 = vpop.trf.xlu0
    %v3010 = vpop.trf.xlu0
    %v3011 = vpop.trf.xlu0
    %v3012 = vpop.trf.xlu0
    %v3013 = vpop.trf.xlu0
    %v3014 = vpop.trf.xlu0
    %v3015 = vpop.trf.xlu0
    %v3016 = vpop.trf.xlu0
    %v3017 = vpop.trf.xlu0
    %v3018 = vpop.trf.xlu0
    %v3019 = vpack.c.bf16 %v3003, %v3003
    %3020 = vrot.lane.b32.xlu0 %v2169, 104
    %v3021 = vpop.permute.xlu0 %3020
    %3022 = vrot.lane.b32.xlu0 %v2170, 104
    %v3023 = vpop.permute.xlu0 %3022
    %3024 = vrot.lane.b32.xlu0 %v2171, 104
    %v3025 = vpop.permute.xlu0 %3024
    %v3027 = vsel %vm465, %v3021, 0
    %v3030 = vsel %vm465, %v3023, 0
    %v3033 = vsel %vm465, %v3025, 0
    %v3036 = vsel %vm475, %v3019, 0
    %3038 = vmatprep.subr.bf16.mxu0 0
    %3039 = vmatpush1.bf16.msra.mxu0 %v3036
    %3040 = vmatprep.subr.bf16.mxu0 0
    %3041 = vmatpush1.bf16.msra.mxu0 0
    %3042 = vmatprep.subr.bf16.mxu0 0
    %3043 = vmatpush1.bf16.msra.mxu0 0
    %3044 = vmatprep.subr.bf16.mxu0 0
    %3045 = vmatpush1.bf16.msra.mxu0 0
    %3046 = vmatprep.subr.bf16.mxu0 0
    %3047 = vmatpush1.bf16.msra.mxu0 0
    %3048 = vmatprep.subr.bf16.mxu0 0
    %3049 = vmatpush1.bf16.msra.mxu0 0
    %3050 = vmatprep.subr.bf16.mxu0 0
    %3051 = vmatpush1.bf16.msra.mxu0 0
    %3052 = vmatprep.subr.bf16.mxu0 0
    %3053 = vmatpush1.bf16.msra.mxu0 0
    %3054 = vmatprep.subr.bf16.mxu0 0
    %3055 = vmatpush1.bf16.msra.mxu0 0
    %3056 = vmatprep.subr.bf16.mxu0 0
    %3057 = vmatpush1.bf16.msra.mxu0 0
    %3058 = vmatprep.subr.bf16.mxu0 0
    %3059 = vmatpush1.bf16.msra.mxu0 0
    %3060 = vmatprep.subr.bf16.mxu0 0
    %3061 = vmatpush1.bf16.msra.mxu0 0
    %3062 = vmatprep.subr.bf16.mxu0 0
    %3063 = vmatpush1.bf16.msra.mxu0 0
    %3064 = vmatprep.subr.bf16.mxu0 0
    %3065 = vmatpush1.bf16.msra.mxu0 0
    %3066 = vmatprep.subr.bf16.mxu0 0
    %3067 = vmatpush1.bf16.msra.mxu0 0
    %3068 = vmatprep.subr.bf16.mxu0 0
    %3069 = vmatpush1.bf16.msra.mxu0 0
    %3070 = vmatprep.mubr.bf16.mxu0 0
    %3071 = vmatmul.mubr.bf16.gmra.mrb[0].mxu0 %v3027
    %v3072 = vpop.f32.mrb[0].mxu0
    %v3073 = vadd.f32 0.0, %v3072
    %v3074 = vpop.f32.mrb[0].mxu0
    %v3075 = vpop.f32.mrb[0].mxu0
    %v3076 = vadd.f32 0.0, %v3075
    %v3077 = vpop.f32.mrb[0].mxu0
    %3078 = vmatprep.mubr.bf16.mxu0 0
    %3079 = vmatmul.mubr.bf16.gmra.mrb[0].mxu0 %v3030
    %v3080 = vpop.f32.mrb[0].mxu0
    %v3081 = vadd.f32 0.0, %v3080
    %v3082 = vpop.f32.mrb[0].mxu0
    %v3083 = vpop.f32.mrb[0].mxu0
    %v3084 = vadd.f32 0.0, %v3083
    %v3085 = vpop.f32.mrb[0].mxu0
    %3086 = vmatprep.mubr.bf16.mxu0 0
    %3087 = vmatmul.mubr.bf16.gmra.mrb[0].mxu0 %v3033
    %v3088 = vpop.f32.mrb[0].mxu0
    %v3089 = vadd.f32 0.0, %v3088
    %v3090 = vpop.f32.mrb[0].mxu0
    %v3091 = vpop.f32.mrb[0].mxu0
    %v3092 = vpop.f32.mrb[0].mxu0
    %3093 = vdwg.mxu0
    %v3094 = vmul.f32 %v3073, 0.35355338
    %v3095 = vmul.f32 %v3076, 0.35355338
    %v3096 = vmul.f32 %v3081, 0.35355338
    %v3097 = vmul.f32 %v3084, 0.35355338
    %v3098 = vmul.f32 %v3089, 0.35355338
    %v3099 = vadd.f32 %v3094, %v207
    %v3100 = vadd.f32 %v3095, %v208
    %v3101 = vadd.f32 %v3096, %v209
    %v3102 = vadd.f32 %v3097, %v210
    %v3103 = vadd.f32 %v3098, %v211
    %v3104 = vsel %vm545, %v3099, -inf
    %3105 = vmax.xlane.f32.xlu0 %v3104
    %v3106 = vpop.xlane.xlu0 %3105
    %v3107 = vsel %vm545, %v3100, -inf
    %3108 = vmax.xlane.f32.xlu0 %v3107
    %v3109 = vpop.xlane.xlu0 %3108
    %v3110 = vsel %vm545, %v3101, -inf
    %3111 = vmax.xlane.f32.xlu0 %v3110
    %v3112 = vpop.xlane.xlu0 %3111
    %v3113 = vsel %vm545, %v3102, -inf
    %3114 = vmax.xlane.f32.xlu0 %v3113
    %v3115 = vpop.xlane.xlu0 %3114
    %v3116 = vsel %vm545, %v3103, -inf
    %3117 = vmax.xlane.f32.xlu0 %v3116
    %v3118 = vpop.xlane.xlu0 %3117
    %v3119 = vsub.f32 %v3099, %v3106
    %v3120 = vsub.f32 %v3100, %v3109
    %v3121 = vsub.f32 %v3101, %v3112
    %v3122 = vsub.f32 %v3102, %v3115
    %v3123 = vsub.f32 %v3103, %v3118
    %v3124 = vmul.f32 %v3119, 1.442695
    %v3125 = vpow.pop %v3124
    %v3126 = vmul.f32 %v3120, 1.442695
    %v3127 = vpow.pop %v3126
    %v3128 = vmul.f32 %v3121, 1.442695
    %v3129 = vpow.pop %v3128
    %v3130 = vmul.f32 %v3122, 1.442695
    %v3131 = vpow.pop %v3130
    %v3132 = vmul.f32 %v3123, 1.442695
    %v3133 = vpow.pop %v3132
    %v3134 = vsel %vm545, %v3125, 0.0
    %3135 = vadd.xlane.f32.xlu0 %v3134
    %v3136 = vpop.xlane.xlu0 %3135
    %v3137 = vsel %vm545, %v3127, 0.0
    %3138 = vadd.xlane.f32.xlu0 %v3137
    %v3139 = vpop.xlane.xlu0 %3138
    %v3140 = vsel %vm545, %v3129, 0.0
    %3141 = vadd.xlane.f32.xlu0 %v3140
    %v3142 = vpop.xlane.xlu0 %3141
    %v3143 = vsel %vm545, %v3131, 0.0
    %3144 = vadd.xlane.f32.xlu0 %v3143
    %v3145 = vpop.xlane.xlu0 %3144
    %v3146 = vsel %vm545, %v3133, 0.0
    %3147 = vadd.xlane.f32.xlu0 %v3146
    %v3148 = vpop.xlane.xlu0 %3147
    %v3149 = vrcp.pop %v3136
    %v3150 = vrcp.pop %v3139
    %v3151 = vrcp.pop %v3142
    %v3152 = vrcp.pop %v3145
    %v3153 = vrcp.pop %v3148
    %v3154 = vmul.f32 %v3125, %v3149
    %v3155 = vmul.f32 %v3127, %v3150
    %v3156 = vmul.f32 %v3129, %v3151
    %v3157 = vmul.f32 %v3131, %v3152
    %v3158 = vmul.f32 %v3133, %v3153
    %v3159 = vpack.c.bf16 %v3155, %v3154
    %v3160 = vpack.c.bf16 %v3157, %v3156
    %v3161 = vpack.c.bf16 %v3158, %v3158
    %3162 = vrot.lane.b32.xlu0 %v2169, 40
    %v3163 = vpop.permute.xlu0 %3162
    %3164 = vrot.lane.b32.xlu0 %v2170, 40
    %v3165 = vpop.permute.xlu0 %3164
    %3166 = vrot.lane.b32.xlu0 %v2171, 40
    %v3167 = vpop.permute.xlu0 %3166
    %v3171 = vsel %vm545, %v3159, 0
    %v3174 = vsel %vm545, %v3160, 0
    %v3177 = vsel %vm545, %v3161, 0
    %v3180 = vsel %vm475, %v3167, 0
    %3182 = vmatprep.subr.bf16.mxu0 0
    %3183 = vmatpush1.bf16.msra.mxu0 %v3163
    %3184 = vmatprep.subr.bf16.mxu0 0
    %3185 = vmatpush1.bf16.msra.mxu0 %v3165
    %3186 = vmatprep.subr.bf16.mxu0 0
    %3187 = vmatpush1.bf16.msra.mxu0 %v3180
    %3188 = vmatprep.subr.bf16.mxu0 0
    %3189 = vmatpush1.bf16.msra.mxu0 0
    %3190 = vmatprep.subr.bf16.mxu0 0
    %3191 = vmatpush1.bf16.msra.mxu0 0
    %3192 = vmatprep.subr.bf16.mxu0 0
    %3193 = vmatpush1.bf16.msra.mxu0 0
    %3194 = vmatprep.subr.bf16.mxu0 0
    %3195 = vmatpush1.bf16.msra.mxu0 0
    %3196 = vmatprep.subr.bf16.mxu0 0
    %3197 = vmatpush1.bf16.msra.mxu0 0
    %3198 = vmatprep.subr.bf16.mxu0 0
    %3199 = vmatpush1.bf16.msra.mxu0 0
    %3200 = vmatprep.subr.bf16.mxu0 0
    %3201 = vmatpush1.bf16.msra.mxu0 0
    %3202 = vmatprep.subr.bf16.mxu0 0
    %3203 = vmatpush1.bf16.msra.mxu0 0
    %3204 = vmatprep.subr.bf16.mxu0 0
    %3205 = vmatpush1.bf16.msra.mxu0 0
    %3206 = vmatprep.subr.bf16.mxu0 0
    %3207 = vmatpush1.bf16.msra.mxu0 0
    %3208 = vmatprep.subr.bf16.mxu0 0
    %3209 = vmatpush1.bf16.msra.mxu0 0
    %3210 = vmatprep.subr.bf16.mxu0 0
    %3211 = vmatpush1.bf16.msra.mxu0 0
    %3212 = vmatprep.subr.bf16.mxu0 0
    %3213 = vmatpush1.bf16.msra.mxu0 0
    %3214 = vmatprep.mubr.bf16.mxu0 0
    %3215 = vmatmul.mubr.bf16.gmra.mrb[0].mxu0 %v3171
    %v3216 = vpop.f32.mrb[0].mxu0
    %v3217 = vadd.f32 0.0, %v3216
    %v3218 = vpop.f32.mrb[0].mxu0
    %v3219 = vpop.f32.mrb[0].mxu0
    %v3220 = vadd.f32 0.0, %v3219
    %v3221 = vpop.f32.mrb[0].mxu0
    %3222 = vmatprep.mubr.bf16.mxu0 0
    %3223 = vmatmul.mubr.bf16.gmra.mrb[0].mxu0 %v3174
    %v3224 = vpop.f32.mrb[0].mxu0
    %v3225 = vadd.f32 0.0, %v3224
    %v3226 = vpop.f32.mrb[0].mxu0
    %v3227 = vpop.f32.mrb[0].mxu0
    %v3228 = vadd.f32 0.0, %v3227
    %v3229 = vpop.f32.mrb[0].mxu0
    %3230 = vmatprep.mubr.bf16.mxu0 0
    %3231 = vmatmul.mubr.bf16.gmra.mrb[0].mxu0 %v3177
    %v3232 = vpop.f32.mrb[0].mxu0
    %v3233 = vadd.f32 0.0, %v3232
    %v3234 = vpop.f32.mrb[0].mxu0
    %v3235 = vpop.f32.mrb[0].mxu0
    %v3236 = vpop.f32.mrb[0].mxu0
    %3237 = vdwg.mxu0
    %3243 = vrot.lane.b32.xlu0 %v2685, 8
    %v3244 = vpop.permute.xlu0 %3243
    %3245 = vrot.lane.b32.xlu0 %v2688, 8
    %v3246 = vpop.permute.xlu0 %3245
    %3247 = vrot.lane.b32.xlu0 %v2693, 8
    %v3248 = vpop.permute.xlu0 %3247
    %3249 = vrot.lane.b32.xlu0 %v2696, 8
    %v3250 = vpop.permute.xlu0 %3249
    %3251 = vrot.lane.b32.xlu0 %v2701, 8
    %v3252 = vpop.permute.xlu0 %3251
    %3263 = vrot.lane.b32.xlu0 %v2951, 16
    %v3264 = vpop.permute.xlu0 %3263
    %3265 = vrot.lane.b32.xlu0 %v2954, 16
    %v3266 = vpop.permute.xlu0 %3265
    %3267 = vrot.lane.b32.xlu0 %v2959, 16
    %v3268 = vpop.permute.xlu0 %3267
    %3269 = vrot.lane.b32.xlu0 %v2962, 16
    %v3270 = vpop.permute.xlu0 %3269
    %3271 = vrot.lane.b32.xlu0 %v2967, 16
    %v3272 = vpop.permute.xlu0 %3271
    %3283 = vrot.lane.b32.xlu0 %v3217, 24
    %v3284 = vpop.permute.xlu0 %3283
    %3285 = vrot.lane.b32.xlu0 %v3220, 24
    %v3286 = vpop.permute.xlu0 %3285
    %3287 = vrot.lane.b32.xlu0 %v3225, 24
    %v3288 = vpop.permute.xlu0 %3287
    %3289 = vrot.lane.b32.xlu0 %v3228, 24
    %v3290 = vpop.permute.xlu0 %3289
    %3291 = vrot.lane.b32.xlu0 %v3233, 24
    %v3292 = vpop.permute.xlu0 %3291
    %v3298 = vsel %vm465, %v2419, %v3244
    %v3299 = vsel %vm465, %v2422, %v3246
    %v3300 = vsel %vm465, %v2427, %v3248
    %v3301 = vsel %vm465, %v2430, %v3250
    %v3302 = vsel %vm465, %v2435, %v3252
    %v3303 = vsel %vm30, %v3298, %v3264
    %v3304 = vsel %vm30, %v3299, %v3266
    %v3305 = vsel %vm30, %v3300, %v3268
    %v3306 = vsel %vm30, %v3301, %v3270
    %v3307 = vsel %vm30, %v3302, %v3272
    %v3308 = vsel %vm1551, %v3303, %v3284
    %v3309 = vsel %vm1551, %v3304, %v3286
    %v3310 = vsel %vm1551, %v3305, %v3288
    %v3311 = vsel %vm1551, %v3306, %v3290
    %v3312 = vsel %vm1551, %v3307, %v3292
    %v3313 = vpack.c.bf16 %v3309, %v3308
    %v3314 = vpack.c.bf16 %v3311, %v3310
    %v3315 = vpack.c.bf16 %v3312, %v3312
    %v3316 = vlaneseq
    %v3317 = vshrl.u32 %v3316, 7
    %v3318 = vsub.s32 4, %v3317
    %v3319 = vrot.slane %v100, %v3318
    %v3324 = vunpack.c.l.b16 %v1978
    %v3325 = vunpack.c.l.b16 %v1979
    %v3326 = vunpack.c.l.b16 %v1980
    %v3327 = vunpack.c.l.b16 %v1981
    %v3328 = vpack.c.b16 %v3325, %v3324
    %v3329 = vpack.c.b16 %v3327, %v3326
    %v3333 = vsel %vm240, %v3313, 0
    %v3336 = vsel %vm240, %v3314, 0
    %v3339 = vsel %vm240, %v3315, 0
    %3341 = vmatprep.subr.bf16.mxu0 0
    %3342 = vmatpush1.bf16.msra.mxu0 %v3328
    %3343 = vmatprep.subr.bf16.mxu0 0
    %3344 = vmatpush1.bf16.msra.mxu0 %v3329
    %3345 = vmatprep.subr.bf16.mxu0 0
    %3346 = vmatpush1.bf16.msra.mxu0 0
    %3347 = vmatprep.subr.bf16.mxu0 0
    %3348 = vmatpush1.bf16.msra.mxu0 0
    %3349 = vmatprep.subr.bf16.mxu0 0
    %3350 = vmatpush1.bf16.msra.mxu0 0
    %3351 = vmatprep.subr.bf16.mxu0 0
    %3352 = vmatpush1.bf16.msra.mxu0 0
    %3353 = vmatprep.subr.bf16.mxu0 0
    %3354 = vmatpush1.bf16.msra.mxu0 0
    %3355 = vmatprep.subr.bf16.mxu0 0
    %3356 = vmatpush1.bf16.msra.mxu0 0
    %3357 = vmatprep.subr.bf16.mxu0 0
    %3358 = vmatpush1.bf16.msra.mxu0 0
    %3359 = vmatprep.subr.bf16.mxu0 0
    %3360 = vmatpush1.bf16.msra.mxu0 0
    %3361 = vmatprep.subr.bf16.mxu0 0
    %3362 = vmatpush1.bf16.msra.mxu0 0
    %3363 = vmatprep.subr.bf16.mxu0 0
    %3364 = vmatpush1.bf16.msra.mxu0 0
    %3365 = vmatprep.subr.bf16.mxu0 0
    %3366 = vmatpush1.bf16.msra.mxu0 0
    %3367 = vmatprep.subr.bf16.mxu0 0
    %3368 = vmatpush1.bf16.msra.mxu0 0
    %3369 = vmatprep.subr.bf16.mxu0 0
    %3370 = vmatpush1.bf16.msra.mxu0 0
    %3371 = vmatprep.subr.bf16.mxu0 0
    %3372 = vmatpush1.bf16.msra.mxu0 0
    %3373 = vmatprep.mubr.bf16.mxu0 0
    %3374 = vmatmul.mubr.bf16.gmra.mrb[0].mxu0 %v3333
    %v3375 = vpop.f32.mrb[0].mxu0
    %v3376 = vadd.f32 %v3319, %v3375
    %v3377 = vpop.f32.mrb[0].mxu0
    %v3378 = vpop.f32.mrb[0].mxu0
    %v3379 = vadd.f32 %v3319, %v3378
    %v3380 = vpop.f32.mrb[0].mxu0
    %3381 = vmatprep.mubr.bf16.mxu0 0
    %3382 = vmatmul.mubr.bf16.gmra.mrb[0].mxu0 %v3336
    %v3383 = vpop.f32.mrb[0].mxu0
    %v3384 = vadd.f32 %v3319, %v3383
    %v3385 = vpop.f32.mrb[0].mxu0
    %v3386 = vpop.f32.mrb[0].mxu0
    %v3387 = vadd.f32 %v3319, %v3386
    %v3388 = vpop.f32.mrb[0].mxu0
    %3389 = vmatprep.mubr.bf16.mxu0 0
    %3390 = vmatmul.mubr.bf16.gmra.mrb[0].mxu0 %v3339
    %v3391 = vpop.f32.mrb[0].mxu0
    %v3392 = vadd.f32 %v3319, %v3391
    %v3393 = vpop.f32.mrb[0].mxu0
    %v3394 = vpop.f32.mrb[0].mxu0
    %v3395 = vpop.f32.mrb[0].mxu0
    %3396 = vdwg.mxu0
    %v3397 = vadd.f32 %v1969, %v3376
    %v3398 = vadd.f32 %v1970, %v3379
    %v3399 = vadd.f32 %v1971, %v3384
    %v3400 = vadd.f32 %v1972, %v3387
    %v3401 = vadd.f32 %v1973, %v3392
    %v3402 = vsel %vm240, %v3397, 0.0
    %3403 = vadd.xlane.f32.xlu0 %v3402
    %v3404 = vpop.xlane.xlu0 %3403
    %v3405 = vsel %vm240, %v3398, 0.0
    %3406 = vadd.xlane.f32.xlu0 %v3405
    %v3407 = vpop.xlane.xlu0 %3406
    %v3408 = vsel %vm240, %v3399, 0.0
    %3409 = vadd.xlane.f32.xlu0 %v3408
    %v3410 = vpop.xlane.xlu0 %3409
    %v3411 = vsel %vm240, %v3400, 0.0
    %3412 = vadd.xlane.f32.xlu0 %v3411
    %v3413 = vpop.xlane.xlu0 %3412
    %v3414 = vsel %vm240, %v3401, 0.0
    %3415 = vadd.xlane.f32.xlu0 %v3414
    %v3416 = vpop.xlane.xlu0 %3415
    %v3417 = vmul.f32 %v3404, %v256
    %v3418 = vmul.f32 %v3407, %v256
    %v3419 = vmul.f32 %v3410, %v256
    %v3420 = vmul.f32 %v3413, %v256
    %v3421 = vmul.f32 %v3416, %v256
    %v3422 = vsub.f32 %v3397, %v3417
    %v3423 = vsub.f32 %v3398, %v3418
    %v3424 = vsub.f32 %v3399, %v3419
    %v3425 = vsub.f32 %v3400, %v3420
    %v3426 = vsub.f32 %v3401, %v3421
    %v3427 = vmul.f32 %v3422, %v3422
    %v3428 = vmul.f32 %v3423, %v3423
    %v3429 = vmul.f32 %v3424, %v3424
    %v3430 = vmul.f32 %v3425, %v3425
    %v3431 = vmul.f32 %v3426, %v3426
    %v3432 = vsel %vm240, %v3427, 0.0
    %3433 = vadd.xlane.f32.xlu0 %v3432
    %v3434 = vpop.xlane.xlu0 %3433
    %v3435 = vsel %vm240, %v3428, 0.0
    %3436 = vadd.xlane.f32.xlu0 %v3435
    %v3437 = vpop.xlane.xlu0 %3436
    %v3438 = vsel %vm240, %v3429, 0.0
    %3439 = vadd.xlane.f32.xlu0 %v3438
    %v3440 = vpop.xlane.xlu0 %3439
    %v3441 = vsel %vm240, %v3430, 0.0
    %3442 = vadd.xlane.f32.xlu0 %v3441
    %v3443 = vpop.xlane.xlu0 %3442
    %v3444 = vsel %vm240, %v3431, 0.0
    %3445 = vadd.xlane.f32.xlu0 %v3444
    %v3446 = vpop.xlane.xlu0 %3445
    %v3447 = vmul.f32 %v3434, %v256
    %v3448 = vmul.f32 %v3437, %v256
    %v3449 = vmul.f32 %v3440, %v256
    %v3450 = vmul.f32 %v3443, %v256
    %v3451 = vmul.f32 %v3446, %v256
    %v3452 = vadd.f32 %v3447, 1e-05
    %v3453 = vadd.f32 %v3448, 1e-05
    %v3454 = vadd.f32 %v3449, 1e-05
    %v3455 = vadd.f32 %v3450, 1e-05
    %v3456 = vadd.f32 %v3451, 1e-05
    %v3457 = vrsqrt.pop %v3452
    %v3458 = vrsqrt.pop %v3453
    %v3459 = vrsqrt.pop %v3454
    %v3460 = vrsqrt.pop %v3455
    %v3461 = vrsqrt.pop %v3456
    %v3462 = vmul.f32 %v3422, %v3457
    %v3463 = vmul.f32 %v3423, %v3458
    %v3464 = vmul.f32 %v3424, %v3459
    %v3465 = vmul.f32 %v3425, %v3460
    %v3466 = vmul.f32 %v3426, %v3461
    %v3467 = vlaneseq
    %v3468 = vshrl.u32 %v3467, 7
    %v3469 = vsub.s32 5, %v3468
    %v3470 = vrot.slane %v100, %v3469
    %v3471 = vmul.f32 %v3462, %v3470
    %v3472 = vmul.f32 %v3463, %v3470
    %v3473 = vmul.f32 %v3464, %v3470
    %v3474 = vmul.f32 %v3465, %v3470
    %v3475 = vmul.f32 %v3466, %v3470
    %v3476 = vlaneseq
    %v3477 = vshrl.u32 %v3476, 7
    %v3478 = vsub.s32 6, %v3477
    %v3479 = vrot.slane %v100, %v3478
    %v3480 = vadd.f32 %v3471, %v3479
    %v3481 = vadd.f32 %v3472, %v3479
    %v3482 = vadd.f32 %v3473, %v3479
    %v3483 = vadd.f32 %v3474, %v3479
    %v3484 = vadd.f32 %v3475, %v3479
    %v3485 = vpack.c.bf16 %v3481, %v3480
    %v3486 = vpack.c.bf16 %v3483, %v3482
    %v3487 = vpack.c.bf16 %v3484, %v3484
    %v3488 = vlaneseq
    %v3489 = vshrl.u32 %v3488, 7
    %v3490 = vsub.s32 7, %v3489
    %v3491 = vrot.slane %v100, %v3490
    %v3496 = vunpack.c.l.b16 %v1982
    %v3497 = vunpack.c.l.b16 %v1983
    %v3498 = vunpack.c.l.b16 %v1984
    %v3499 = vunpack.c.l.b16 %v1985
    %v3500 = vpack.c.b16 %v3497, %v3496
    %v3501 = vpack.c.b16 %v3499, %v3498
    %v3505 = vsel %vm240, %v3485, 0
    %v3508 = vsel %vm240, %v3486, 0
    %v3511 = vsel %vm240, %v3487, 0
    %3513 = vmatprep.subr.bf16.mxu0 0
    %3514 = vmatpush1.bf16.msra.mxu0 %v3500
    %3515 = vmatprep.subr.bf16.mxu0 0
    %3516 = vmatpush1.bf16.msra.mxu0 %v3501
    %3517 = vmatprep.subr.bf16.mxu0 0
    %3518 = vmatpush1.bf16.msra.mxu0 0
    %3519 = vmatprep.subr.bf16.mxu0 0
    %3520 = vmatpush1.bf16.msra.mxu0 0
    %3521 = vmatprep.subr.bf16.mxu0 0
    %3522 = vmatpush1.bf16.msra.mxu0 0
    %3523 = vmatprep.subr.bf16.mxu0 0
    %3524 = vmatpush1.bf16.msra.mxu0 0
    %3525 = vmatprep.subr.bf16.mxu0 0
    %3526 = vmatpush1.bf16.msra.mxu0 0
    %3527 = vmatprep.subr.bf16.mxu0 0
    %3528 = vmatpush1.bf16.msra.mxu0 0
    %3529 = vmatprep.subr.bf16.mxu0 0
    %3530 = vmatpush1.bf16.msra.mxu0 0
    %3531 = vmatprep.subr.bf16.mxu0 0
    %3532 = vmatpush1.bf16.msra.mxu0 0
    %3533 = vmatprep.subr.bf16.mxu0 0
    %3534 = vmatpush1.bf16.msra.mxu0 0
    %3535 = vmatprep.subr.bf16.mxu0 0
    %3536 = vmatpush1.bf16.msra.mxu0 0
    %3537 = vmatprep.subr.bf16.mxu0 0
    %3538 = vmatpush1.bf16.msra.mxu0 0
    %3539 = vmatprep.subr.bf16.mxu0 0
    %3540 = vmatpush1.bf16.msra.mxu0 0
    %3541 = vmatprep.subr.bf16.mxu0 0
    %3542 = vmatpush1.bf16.msra.mxu0 0
    %3543 = vmatprep.subr.bf16.mxu0 0
    %3544 = vmatpush1.bf16.msra.mxu0 0
    %3545 = vmatprep.mubr.bf16.mxu0 0
    %3546 = vmatmul.mubr.bf16.gmra.mrb[0].mxu0 %v3505
    %v3547 = vpop.f32.mrb[0].mxu0
    %v3548 = vadd.f32 %v3491, %v3547
    %v3549 = vpop.f32.mrb[0].mxu0
    %v3550 = vpop.f32.mrb[0].mxu0
    %v3551 = vadd.f32 %v3491, %v3550
    %v3552 = vpop.f32.mrb[0].mxu0
    %3553 = vmatprep.mubr.bf16.mxu0 0
    %3554 = vmatmul.mubr.bf16.gmra.mrb[0].mxu0 %v3508
    %v3555 = vpop.f32.mrb[0].mxu0
    %v3556 = vadd.f32 %v3491, %v3555
    %v3557 = vpop.f32.mrb[0].mxu0
    %v3558 = vpop.f32.mrb[0].mxu0
    %v3559 = vadd.f32 %v3491, %v3558
    %v3560 = vpop.f32.mrb[0].mxu0
    %3561 = vmatprep.mubr.bf16.mxu0 0
    %3562 = vmatmul.mubr.bf16.gmra.mrb[0].mxu0 %v3511
    %v3563 = vpop.f32.mrb[0].mxu0
    %v3564 = vadd.f32 %v3491, %v3563
    %v3565 = vpop.f32.mrb[0].mxu0
    %v3566 = vpop.f32.mrb[0].mxu0
    %v3567 = vpop.f32.mrb[0].mxu0
    %3568 = vdwg.mxu0
    %v3569 = vmul.f32 %v3548, 0.5
    %v3570 = vmul.f32 %v3551, 0.5
    %v3571 = vmul.f32 %v3556, 0.5
    %v3572 = vmul.f32 %v3559, 0.5
    %v3573 = vmul.f32 %v3564, 0.5
    %v3574 = vmul.f32 %v3548, %v3548
    %v3575 = vmul.f32 %v3551, %v3551
    %v3576 = vmul.f32 %v3556, %v3556
    %v3577 = vmul.f32 %v3559, %v3559
    %v3578 = vmul.f32 %v3564, %v3564
    %v3579 = vmul.f32 %v3548, %v3574
    %v3580 = vmul.f32 %v3551, %v3575
    %v3581 = vmul.f32 %v3556, %v3576
    %v3582 = vmul.f32 %v3559, %v3577
    %v3583 = vmul.f32 %v3564, %v3578
    %v3584 = vmul.f32 %v3579, 0.044715
    %v3585 = vmul.f32 %v3580, 0.044715
    %v3586 = vmul.f32 %v3581, 0.044715
    %v3587 = vmul.f32 %v3582, 0.044715
    %v3588 = vmul.f32 %v3583, 0.044715
    %v3589 = vadd.f32 %v3548, %v3584
    %v3590 = vadd.f32 %v3551, %v3585
    %v3591 = vadd.f32 %v3556, %v3586
    %v3592 = vadd.f32 %v3559, %v3587
    %v3593 = vadd.f32 %v3564, %v3588
    %v3594 = vmul.f32 %v3589, 0.7978846
    %v3595 = vmul.f32 %v3590, 0.7978846
    %v3596 = vmul.f32 %v3591, 0.7978846
    %v3597 = vmul.f32 %v3592, 0.7978846
    %v3598 = vmul.f32 %v3593, 0.7978846
    %v3599 = vtanh.pop %v3594
    %v3600 = vtanh.pop %v3595
    %v3601 = vtanh.pop %v3596
    %v3602 = vtanh.pop %v3597
    %v3603 = vtanh.pop %v3598
    %v3604 = vadd.f32 %v3599, 1.0
    %v3605 = vadd.f32 %v3600, 1.0
    %v3606 = vadd.f32 %v3601, 1.0
    %v3607 = vadd.f32 %v3602, 1.0
    %v3608 = vadd.f32 %v3603, 1.0
    %v3609 = vmul.f32 %v3569, %v3604
    %v3610 = vmul.f32 %v3570, %v3605
    %v3611 = vmul.f32 %v3571, %v3606
    %v3612 = vmul.f32 %v3572, %v3607
    %v3613 = vmul.f32 %v3573, %v3608
    %v3614 = vpack.c.bf16 %v3610, %v3609
    %v3615 = vpack.c.bf16 %v3612, %v3611
    %v3616 = vpack.c.bf16 %v3613, %v3613
    %v3617 = vlaneseq
    %v3618 = vshrl.u32 %v3617, 7
    %v3619 = vsub.s32 0, %v3618
    %v3620 = vrot.slane %v101, %v3619
    %v3637 = vunpack.c.l.b16 %v1986
    %v3638 = vunpack.c.l.b16 %v1987
    %v3639 = vunpack.c.l.b16 %v1988
    %v3640 = vunpack.c.l.b16 %v1989
    %v3641 = vunpack.c.l.b16 %v1990
    %v3642 = vunpack.c.l.b16 %v1991
    %v3643 = vunpack.c.l.b16 %v1992
    %v3644 = vunpack.c.l.b16 %v1993
    %v3645 = vunpack.c.l.b16 %v1994
    %v3646 = vunpack.c.l.b16 %v1995
    %v3647 = vunpack.c.l.b16 %v1996
    %v3648 = vunpack.c.l.b16 %v1997
    %v3649 = vunpack.c.l.b16 %v1998
    %v3650 = vunpack.c.l.b16 %v1999
    %v3651 = vunpack.c.l.b16 %v2000
    %v3652 = vunpack.c.l.b16 %v2001
    %v3653 = vpack.c.b16 %v3638, %v3637
    %v3654 = vpack.c.b16 %v3640, %v3639
    %v3655 = vpack.c.b16 %v3642, %v3641
    %v3656 = vpack.c.b16 %v3644, %v3643
    %v3657 = vpack.c.b16 %v3646, %v3645
    %v3658 = vpack.c.b16 %v3648, %v3647
    %v3659 = vpack.c.b16 %v3650, %v3649
    %v3660 = vpack.c.b16 %v3652, %v3651
    %3669 = vmatprep.subr.bf16.mxu0 0
    %3670 = vmatpush1.bf16.msra.mxu0 %v3653
    %3671 = vmatprep.subr.bf16.mxu0 0
    %3672 = vmatpush1.bf16.msra.mxu0 %v3654
    %3673 = vmatprep.subr.bf16.mxu0 0
    %3674 = vmatpush1.bf16.msra.mxu0 %v3655
    %3675 = vmatprep.subr.bf16.mxu0 0
    %3676 = vmatpush1.bf16.msra.mxu0 %v3656
    %3677 = vmatprep.subr.bf16.mxu0 0
    %3678 = vmatpush1.bf16.msra.mxu0 %v3657
    %3679 = vmatprep.subr.bf16.mxu0 0
    %3680 = vmatpush1.bf16.msra.mxu0 %v3658
    %3681 = vmatprep.subr.bf16.mxu0 0
    %3682 = vmatpush1.bf16.msra.mxu0 %v3659
    %3683 = vmatprep.subr.bf16.mxu0 0
    %3684 = vmatpush1.bf16.msra.mxu0 %v3660
    %3685 = vmatprep.subr.bf16.mxu0 0
    %3686 = vmatpush1.bf16.msra.mxu0 0
    %3687 = vmatprep.subr.bf16.mxu0 0
    %3688 = vmatpush1.bf16.msra.mxu0 0
    %3689 = vmatprep.subr.bf16.mxu0 0
    %3690 = vmatpush1.bf16.msra.mxu0 0
    %3691 = vmatprep.subr.bf16.mxu0 0
    %3692 = vmatpush1.bf16.msra.mxu0 0
    %3693 = vmatprep.subr.bf16.mxu0 0
    %3694 = vmatpush1.bf16.msra.mxu0 0
    %3695 = vmatprep.subr.bf16.mxu0 0
    %3696 = vmatpush1.bf16.msra.mxu0 0
    %3697 = vmatprep.subr.bf16.mxu0 0
    %3698 = vmatpush1.bf16.msra.mxu0 0
    %3699 = vmatprep.subr.bf16.mxu0 0
    %3700 = vmatpush1.bf16.msra.mxu0 0
    %3701 = vmatprep.mubr.bf16.mxu0 0
    %3702 = vmatmul.mubr.bf16.gmra.mrb[0].mxu0 %v3614
    %v3703 = vpop.f32.mrb[0].mxu0
    %v3704 = vadd.f32 %v3620, %v3703
    %v3705 = vpop.f32.mrb[0].mxu0
    %v3706 = vpop.f32.mrb[0].mxu0
    %v3707 = vadd.f32 %v3620, %v3706
    %v3708 = vpop.f32.mrb[0].mxu0
    %3709 = vmatprep.mubr.bf16.mxu0 0
    %3710 = vmatmul.mubr.bf16.gmra.mrb[0].mxu0 %v3615
    %v3711 = vpop.f32.mrb[0].mxu0
    %v3712 = vadd.f32 %v3620, %v3711
    %v3713 = vpop.f32.mrb[0].mxu0
    %v3714 = vpop.f32.mrb[0].mxu0
    %v3715 = vadd.f32 %v3620, %v3714
    %v3716 = vpop.f32.mrb[0].mxu0
    %3717 = vmatprep.mubr.bf16.mxu0 0
    %3718 = vmatmul.mubr.bf16.gmra.mrb[0].mxu0 %v3616
    %v3719 = vpop.f32.mrb[0].mxu0
    %v3720 = vadd.f32 %v3620, %v3719
    %v3721 = vpop.f32.mrb[0].mxu0
    %v3722 = vpop.f32.mrb[0].mxu0
    %v3723 = vpop.f32.mrb[0].mxu0
    %3724 = vdwg.mxu0
    %v3725 = vadd.f32 %v3397, %v3704
    %v3726 = vadd.f32 %v3398, %v3707
    %v3727 = vadd.f32 %v3399, %v3712
    %v3728 = vadd.f32 %v3400, %v3715
    %v3729 = vadd.f32 %v3401, %v3720
    %v3730 = vsel %vm240, %v3725, 0.0
    %3731 = vadd.xlane.f32.xlu0 %v3730
    %v3732 = vpop.xlane.xlu0 %3731
    %v3733 = vsel %vm240, %v3726, 0.0
    %3734 = vadd.xlane.f32.xlu0 %v3733
    %v3735 = vpop.xlane.xlu0 %3734
    %v3736 = vsel %vm240, %v3727, 0.0
    %3737 = vadd.xlane.f32.xlu0 %v3736
    %v3738 = vpop.xlane.xlu0 %3737
    %v3739 = vsel %vm240, %v3728, 0.0
    %3740 = vadd.xlane.f32.xlu0 %v3739
    %v3741 = vpop.xlane.xlu0 %3740
    %v3742 = vsel %vm240, %v3729, 0.0
    %3743 = vadd.xlane.f32.xlu0 %v3742
    %v3744 = vpop.xlane.xlu0 %3743
    %v3745 = vmul.f32 %v3732, %v256
    %v3746 = vmul.f32 %v3735, %v256
    %v3747 = vmul.f32 %v3738, %v256
    %v3748 = vmul.f32 %v3741, %v256
    %v3749 = vmul.f32 %v3744, %v256
    %v3750 = vsub.f32 %v3725, %v3745
    %v3751 = vsub.f32 %v3726, %v3746
    %v3752 = vsub.f32 %v3727, %v3747
    %v3753 = vsub.f32 %v3728, %v3748
    %v3754 = vsub.f32 %v3729, %v3749
    %v3755 = vmul.f32 %v3750, %v3750
    %v3756 = vmul.f32 %v3751, %v3751
    %v3757 = vmul.f32 %v3752, %v3752
    %v3758 = vmul.f32 %v3753, %v3753
    %v3759 = vmul.f32 %v3754, %v3754
    %v3760 = vsel %vm240, %v3755, 0.0
    %3761 = vadd.xlane.f32.xlu0 %v3760
    %v3762 = vpop.xlane.xlu0 %3761
    %v3763 = vsel %vm240, %v3756, 0.0
    %3764 = vadd.xlane.f32.xlu0 %v3763
    %v3765 = vpop.xlane.xlu0 %3764
    %v3766 = vsel %vm240, %v3757, 0.0
    %3767 = vadd.xlane.f32.xlu0 %v3766
    %v3768 = vpop.xlane.xlu0 %3767
    %v3769 = vsel %vm240, %v3758, 0.0
    %3770 = vadd.xlane.f32.xlu0 %v3769
    %v3771 = vpop.xlane.xlu0 %3770
    %v3772 = vsel %vm240, %v3759, 0.0
    %3773 = vadd.xlane.f32.xlu0 %v3772
    %v3774 = vpop.xlane.xlu0 %3773
    %v3775 = vmul.f32 %v3762, %v256
    %v3776 = vmul.f32 %v3765, %v256
    %v3777 = vmul.f32 %v3768, %v256
    %v3778 = vmul.f32 %v3771, %v256
    %v3779 = vmul.f32 %v3774, %v256
    %v3780 = vadd.f32 %v3775, 1e-05
    %v3781 = vadd.f32 %v3776, 1e-05
    %v3782 = vadd.f32 %v3777, 1e-05
    %v3783 = vadd.f32 %v3778, 1e-05
    %v3784 = vadd.f32 %v3779, 1e-05
    %v3785 = vrsqrt.pop %v3780
    %v3786 = vrsqrt.pop %v3781
    %v3787 = vrsqrt.pop %v3782
    %v3788 = vrsqrt.pop %v3783
    %v3789 = vrsqrt.pop %v3784
    %v3790 = vmul.f32 %v3750, %v3785
    %v3791 = vmul.f32 %v3751, %v3786
    %v3792 = vmul.f32 %v3752, %v3787
    %v3793 = vmul.f32 %v3753, %v3788
    %v3794 = vmul.f32 %v3754, %v3789
    %v3795 = vlaneseq
    %v3796 = vshrl.u32 %v3795, 7
    %v3797 = vsub.s32 1, %v3796
    %v3798 = vrot.slane %v101, %v3797
    %v3799 = vmul.f32 %v3790, %v3798
    %v3800 = vmul.f32 %v3791, %v3798
    %v3801 = vmul.f32 %v3792, %v3798
    %v3802 = vmul.f32 %v3793, %v3798
    %v3803 = vmul.f32 %v3794, %v3798
    %v3804 = vlaneseq
    %v3805 = vshrl.u32 %v3804, 7
    %v3806 = vsub.s32 2, %v3805
    %v3807 = vrot.slane %v101, %v3806
    %v3808 = vadd.f32 %v3799, %v3807
    %v3809 = vadd.f32 %v3800, %v3807
    %v3810 = vadd.f32 %v3801, %v3807
    %v3811 = vadd.f32 %v3802, %v3807
    %v3812 = vadd.f32 %v3803, %v3807
    %v3813 = vld [vmem:[%s5 + $0xe8] sm:$0xf]
    %v3814 = vld [vmem:[%s5 + $0xec] sm:$0xf]
    %v3815 = vld [vmem:[%s5 + $0xf0] sm:$0xf]
    %v3816 = vld [vmem:[%s5 + $0xf4] sm:$0xf]
    %v3817 = vpack.c.bf16 %v3808, %v3808
    %v3818 = vld [vmem:[%s5 + $0xf8] sm:$0xf]
    %v3819 = vld [vmem:[%s5 + $0xfc] sm:$0xf]
    %v3820 = vld [vmem:[%s5 + $0x100] sm:$0xf]
    %v3821 = vld [vmem:[%s5 + $0x104] sm:$0xf]
    %v3822 = vpack.c.bf16 %v3809, %v3809
    %v3827 = vunpack.c.l.b16 %v3818
    %v3828 = vunpack.c.l.b16 %v3819
    %v3829 = vunpack.c.l.b16 %v3820
    %v3830 = vunpack.c.l.b16 %v3821
    %v3831 = vpack.c.b16 %v3828, %v3827
    %v3832 = vpack.c.b16 %v3830, %v3829
    %v3836 = vsel %vm240, %v3822, 0
    %3838 = vmatprep.subr.bf16.mxu0 0
    %3839 = vmatpush1.bf16.msra.mxu0 %v3831
    %3840 = vmatprep.subr.bf16.mxu0 0
    %3841 = vmatpush1.bf16.msra.mxu0 %v3832
    %3842 = vmatprep.subr.bf16.mxu0 0
    %3843 = vmatpush1.bf16.msra.mxu0 0
    %3844 = vmatprep.subr.bf16.mxu0 0
    %3845 = vmatpush1.bf16.msra.mxu0 0
    %3846 = vmatprep.subr.bf16.mxu0 0
    %3847 = vmatpush1.bf16.msra.mxu0 0
    %3848 = vmatprep.subr.bf16.mxu0 0
    %3849 = vmatpush1.bf16.msra.mxu0 0
    %3850 = vmatprep.subr.bf16.mxu0 0
    %3851 = vmatpush1.bf16.msra.mxu0 0
    %3852 = vmatprep.subr.bf16.mxu0 0
    %3853 = vmatpush1.bf16.msra.mxu0 0
    %3854 = vmatprep.subr.bf16.mxu0 0
    %3855 = vmatpush1.bf16.msra.mxu0 0
    %3856 = vmatprep.subr.bf16.mxu0 0
    %3857 = vmatpush1.bf16.msra.mxu0 0
    %3858 = vmatprep.subr.bf16.mxu0 0
    %3859 = vmatpush1.bf16.msra.mxu0 0
    %3860 = vmatprep.subr.bf16.mxu0 0
    %3861 = vmatpush1.bf16.msra.mxu0 0
    %3862 = vmatprep.subr.bf16.mxu0 0
    %3863 = vmatpush1.bf16.msra.mxu0 0
    %3864 = vmatprep.subr.bf16.mxu0 0
    %3865 = vmatpush1.bf16.msra.mxu0 0
    %3866 = vmatprep.subr.bf16.mxu0 0
    %3867 = vmatpush1.bf16.msra.mxu0 0
    %3868 = vmatprep.subr.bf16.mxu0 0
    %3869 = vmatpush1.bf16.msra.mxu0 0
    %3870 = vmatprep.mubr.bf16.mxu0 0
    %3871 = vmatmul.mubr.bf16.gmra.mrb[0].mxu0 %v3836
    %v3872 = vpop.f32.mrb[0].mxu0
    %v3873 = vadd.f32 0.0, %v3872
    %v3874 = vpop.f32.mrb[0].mxu0
    %v3875 = vpop.f32.mrb[0].mxu0
    %v3876 = vpop.f32.mrb[0].mxu0
    %3877 = vdwg.mxu0
    %v3882 = vunpack.c.l.b16 %v3813
    %v3883 = vunpack.c.l.b16 %v3814
    %v3884 = vunpack.c.l.b16 %v3815
    %v3885 = vunpack.c.l.b16 %v3816
    %v3886 = vpack.c.b16 %v3883, %v3882
    %v3887 = vpack.c.b16 %v3885, %v3884
    %v3891 = vsel %vm240, %v3817, 0
    %3893 = vmatprep.subr.bf16.mxu0 0
    %3894 = vmatpush1.bf16.msra.mxu0 %v3886
    %3895 = vmatprep.subr.bf16.mxu0 0
    %3896 = vmatpush1.bf16.msra.mxu0 %v3887
    %3897 = vmatprep.subr.bf16.mxu0 0
    %3898 = vmatpush1.bf16.msra.mxu0 0
    %3899 = vmatprep.subr.bf16.mxu0 0
    %3900 = vmatpush1.bf16.msra.mxu0 0
    %3901 = vmatprep.subr.bf16.mxu0 0
    %3902 = vmatpush1.bf16.msra.mxu0 0
    %3903 = vmatprep.subr.bf16.mxu0 0
    %3904 = vmatpush1.bf16.msra.mxu0 0
    %3905 = vmatprep.subr.bf16.mxu0 0
    %3906 = vmatpush1.bf16.msra.mxu0 0
    %3907 = vmatprep.subr.bf16.mxu0 0
    %3908 = vmatpush1.bf16.msra.mxu0 0
    %3909 = vmatprep.subr.bf16.mxu0 0
    %3910 = vmatpush1.bf16.msra.mxu0 0
    %3911 = vmatprep.subr.bf16.mxu0 0
    %3912 = vmatpush1.bf16.msra.mxu0 0
    %3913 = vmatprep.subr.bf16.mxu0 0
    %3914 = vmatpush1.bf16.msra.mxu0 0
    %3915 = vmatprep.subr.bf16.mxu0 0
    %3916 = vmatpush1.bf16.msra.mxu0 0
    %3917 = vmatprep.subr.bf16.mxu0 0
    %3918 = vmatpush1.bf16.msra.mxu0 0
    %3919 = vmatprep.subr.bf16.mxu0 0
    %3920 = vmatpush1.bf16.msra.mxu0 0
    %3921 = vmatprep.subr.bf16.mxu0 0
    %3922 = vmatpush1.bf16.msra.mxu0 0
    %3923 = vmatprep.subr.bf16.mxu0 0
    %3924 = vmatpush1.bf16.msra.mxu0 0
    %3925 = vmatprep.mubr.bf16.mxu0 0
    %3926 = vmatmul.mubr.bf16.gmra.mrb[0].mxu0 %v3891
    %v3927 = vpop.f32.mrb[0].mxu0
    %v3928 = vadd.f32 %v3873, %v3927
    %v3929 = vpop.f32.mrb[0].mxu0
    %v3930 = vpop.f32.mrb[0].mxu0
    %v3931 = vpop.f32.mrb[0].mxu0
    %3932 = vdwg.mxu0
    %v3933 = vld [vmem:[%s5 + $0x108] sm:$0xf]
    %v3934 = vld [vmem:[%s5 + $0x10c] sm:$0xf]
    %v3935 = vld [vmem:[%s5 + $0x110] sm:$0xf]
    %v3936 = vld [vmem:[%s5 + $0x114] sm:$0xf]
    %v3937 = vpack.c.bf16 %v3810, %v3810
    %v3942 = vunpack.c.l.b16 %v3933
    %v3943 = vunpack.c.l.b16 %v3934
    %v3944 = vunpack.c.l.b16 %v3935
    %v3945 = vunpack.c.l.b16 %v3936
    %v3946 = vpack.c.b16 %v3943, %v3942
    %v3947 = vpack.c.b16 %v3945, %v3944
    %v3951 = vsel %vm240, %v3937, 0
    %3953 = vmatprep.subr.bf16.mxu0 0
    %3954 = vmatpush1.bf16.msra.mxu0 %v3946
    %3955 = vmatprep.subr.bf16.mxu0 0
    %3956 = vmatpush1.bf16.msra.mxu0 %v3947
    %3957 = vmatprep.subr.bf16.mxu0 0
    %3958 = vmatpush1.bf16.msra.mxu0 0
    %3959 = vmatprep.subr.bf16.mxu0 0
    %3960 = vmatpush1.bf16.msra.mxu0 0
    %3961 = vmatprep.subr.bf16.mxu0 0
    %3962 = vmatpush1.bf16.msra.mxu0 0
    %3963 = vmatprep.subr.bf16.mxu0 0
    %3964 = vmatpush1.bf16.msra.mxu0 0
    %3965 = vmatprep.subr.bf16.mxu0 0
    %3966 = vmatpush1.bf16.msra.mxu0 0
    %3967 = vmatprep.subr.bf16.mxu0 0
    %3968 = vmatpush1.bf16.msra.mxu0 0
    %3969 = vmatprep.subr.bf16.mxu0 0
    %3970 = vmatpush1.bf16.msra.mxu0 0
    %3971 = vmatprep.subr.bf16.mxu0 0
    %3972 = vmatpush1.bf16.msra.mxu0 0
    %3973 = vmatprep.subr.bf16.mxu0 0
    %3974 = vmatpush1.bf16.msra.mxu0 0
    %3975 = vmatprep.subr.bf16.mxu0 0
    %3976 = vmatpush1.bf16.msra.mxu0 0
    %3977 = vmatprep.subr.bf16.mxu0 0
    %3978 = vmatpush1.bf16.msra.mxu0 0
    %3979 = vmatprep.subr.bf16.mxu0 0
    %3980 = vmatpush1.bf16.msra.mxu0 0
    %3981 = vmatprep.subr.bf16.mxu0 0
    %3982 = vmatpush1.bf16.msra.mxu0 0
    %3983 = vmatprep.subr.bf16.mxu0 0
    %3984 = vmatpush1.bf16.msra.mxu0 0
    %3985 = vmatprep.mubr.bf16.mxu0 0
    %3986 = vmatmul.mubr.bf16.gmra.mrb[0].mxu0 %v3951
    %v3987 = vpop.f32.mrb[0].mxu0
    %v3988 = vadd.f32 0.0, %v3987
    %v3989 = vpop.f32.mrb[0].mxu0
    %v3990 = vpop.f32.mrb[0].mxu0
    %v3991 = vpop.f32.mrb[0].mxu0
    %3992 = vdwg.mxu0
    %v3993 = vadd.f32 %v3928, %v3988
    %v3994 = vld [vmem:[%s5 + $0x118] sm:$0xf]
    %v3995 = vld [vmem:[%s5 + $0x11c] sm:$0xf]
    %v3996 = vld [vmem:[%s5 + $0x120] sm:$0xf]
    %v3997 = vld [vmem:[%s5 + $0x124] sm:$0xf]
    %v3998 = vpack.c.bf16 %v3811, %v3811
    %v4003 = vunpack.c.l.b16 %v3994
    %v4004 = vunpack.c.l.b16 %v3995
    %v4005 = vunpack.c.l.b16 %v3996
    %v4006 = vunpack.c.l.b16 %v3997
    %v4007 = vpack.c.b16 %v4004, %v4003
    %v4008 = vpack.c.b16 %v4006, %v4005
    %v4012 = vsel %vm240, %v3998, 0
    %4014 = vmatprep.subr.bf16.mxu0 0
    %4015 = vmatpush1.bf16.msra.mxu0 %v4007
    %4016 = vmatprep.subr.bf16.mxu0 0
    %4017 = vmatpush1.bf16.msra.mxu0 %v4008
    %4018 = vmatprep.subr.bf16.mxu0 0
    %4019 = vmatpush1.bf16.msra.mxu0 0
    %4020 = vmatprep.subr.bf16.mxu0 0
    %4021 = vmatpush1.bf16.msra.mxu0 0
    %4022 = vmatprep.subr.bf16.mxu0 0
    %4023 = vmatpush1.bf16.msra.mxu0 0
    %4024 = vmatprep.subr.bf16.mxu0 0
    %4025 = vmatpush1.bf16.msra.mxu0 0
    %4026 = vmatprep.subr.bf16.mxu0 0
    %4027 = vmatpush1.bf16.msra.mxu0 0
    %4028 = vmatprep.subr.bf16.mxu0 0
    %4029 = vmatpush1.bf16.msra.mxu0 0
    %4030 = vmatprep.subr.bf16.mxu0 0
    %4031 = vmatpush1.bf16.msra.mxu0 0
    %4032 = vmatprep.subr.bf16.mxu0 0
    %4033 = vmatpush1.bf16.msra.mxu0 0
    %4034 = vmatprep.subr.bf16.mxu0 0
    %4035 = vmatpush1.bf16.msra.mxu0 0
    %4036 = vmatprep.subr.bf16.mxu0 0
    %4037 = vmatpush1.bf16.msra.mxu0 0
    %4038 = vmatprep.subr.bf16.mxu0 0
    %4039 = vmatpush1.bf16.msra.mxu0 0
    %4040 = vmatprep.subr.bf16.mxu0 0
    %4041 = vmatpush1.bf16.msra.mxu0 0
    %4042 = vmatprep.subr.bf16.mxu0 0
    %4043 = vmatpush1.bf16.msra.mxu0 0
    %4044 = vmatprep.subr.bf16.mxu0 0
    %4045 = vmatpush1.bf16.msra.mxu0 0
    %4046 = vmatprep.mubr.bf16.mxu0 0
    %4047 = vmatmul.mubr.bf16.gmra.mrb[0].mxu0 %v4012
    %v4048 = vpop.f32.mrb[0].mxu0
    %v4049 = vadd.f32 0.0, %v4048
    %v4050 = vpop.f32.mrb[0].mxu0
    %v4051 = vpop.f32.mrb[0].mxu0
    %v4052 = vpop.f32.mrb[0].mxu0
    %4053 = vdwg.mxu0
    %v4054 = vadd.f32 %v3993, %v4049
    %v4055 = vld [vmem:[%s5 + $0x128] sm:$0xf]
    %v4056 = vld [vmem:[%s5 + $0x12c] sm:$0xf]
    %v4057 = vld [vmem:[%s5 + $0x130] sm:$0xf]
    %v4058 = vld [vmem:[%s5 + $0x134] sm:$0xf]
    %v4059 = vpack.c.bf16 %v3812, %v3812
    %v4064 = vunpack.c.l.b16 %v4055
    %v4065 = vunpack.c.l.b16 %v4056
    %v4066 = vunpack.c.l.b16 %v4057
    %v4067 = vunpack.c.l.b16 %v4058
    %v4068 = vpack.c.b16 %v4065, %v4064
    %v4069 = vpack.c.b16 %v4067, %v4066
    %v4073 = vsel %vm240, %v4059, 0
    %4075 = vmatprep.subr.bf16.mxu0 0
    %4076 = vmatpush1.bf16.msra.mxu0 %v4068
    %4077 = vmatprep.subr.bf16.mxu0 0
    %4078 = vmatpush1.bf16.msra.mxu0 %v4069
    %4079 = vmatprep.subr.bf16.mxu0 0
    %4080 = vmatpush1.bf16.msra.mxu0 0
    %4081 = vmatprep.subr.bf16.mxu0 0
    %4082 = vmatpush1.bf16.msra.mxu0 0
    %4083 = vmatprep.subr.bf16.mxu0 0
    %4084 = vmatpush1.bf16.msra.mxu0 0
    %4085 = vmatprep.subr.bf16.mxu0 0
    %4086 = vmatpush1.bf16.msra.mxu0 0
    %4087 = vmatprep.subr.bf16.mxu0 0
    %4088 = vmatpush1.bf16.msra.mxu0 0
    %4089 = vmatprep.subr.bf16.mxu0 0
    %4090 = vmatpush1.bf16.msra.mxu0 0
    %4091 = vmatprep.subr.bf16.mxu0 0
    %4092 = vmatpush1.bf16.msra.mxu0 0
    %4093 = vmatprep.subr.bf16.mxu0 0
    %4094 = vmatpush1.bf16.msra.mxu0 0
    %4095 = vmatprep.subr.bf16.mxu0 0
    %4096 = vmatpush1.bf16.msra.mxu0 0
    %4097 = vmatprep.subr.bf16.mxu0 0
    %4098 = vmatpush1.bf16.msra.mxu0 0
    %4099 = vmatprep.subr.bf16.mxu0 0
    %4100 = vmatpush1.bf16.msra.mxu0 0
    %4101 = vmatprep.subr.bf16.mxu0 0
    %4102 = vmatpush1.bf16.msra.mxu0 0
    %4103 = vmatprep.subr.bf16.mxu0 0
    %4104 = vmatpush1.bf16.msra.mxu0 0
    %4105 = vmatprep.subr.bf16.mxu0 0
    %4106 = vmatpush1.bf16.msra.mxu0 0
    %4107 = vmatprep.mubr.bf16.mxu0 0
    %4108 = vmatmul.mubr.bf16.gmra.mrb[0].mxu0 %v4073
    %v4109 = vpop.f32.mrb[0].mxu0
    %v4110 = vadd.f32 0.0, %v4109
    %v4111 = vpop.f32.mrb[0].mxu0
    %v4112 = vpop.f32.mrb[0].mxu0
    %v4113 = vpop.f32.mrb[0].mxu0
    %4114 = vdwg.mxu0
    %v4115 = vadd.f32 %v4054, %v4110
    %v4116 = vlaneseq
    %v4117 = vshrl.u32 %v4116, 7
    %v4118 = vsub.s32 3, %v4117
    %v4119 = vrot.slane %v101, %v4118
    %v4120 = vadd.f32 %v4115, %v4119
    %v4121 = vmul.f32 %v4120, %v98
    %v4122 = vadd.f32 %v4121, %v47
    %4123 = vst [vmem:[#allocation2] sm:$0xff] %v4122
    // Predicated region
    $region26: #{forward.1} parent=1 // pred_check
      _
    $region27: #{forward.1} parent=1 // pred_check_branch
      %4125 = sbr.rel (0) target = $region29
    $region28: #{forward.1} parent=1 // pred_region
      %s4127 = ssub.s32 128, 128
      %4128 = vsyncadd [#allocation3], %s4127
      %s4130 = sshll.u32 [#allocation2], 4
      %s4131 = int_to_ptr.vmem [resolvable:$true] %s4130
      %4133 = dma.vmem_to_hbm [thread:$0]  %s4131, 128, %s6, [#allocation3]
    $region29: #{forward.1} parent=1 // pred_fallthru
      _
    // Predicated region
    $region30: #{forward.1} parent=1 // pred_check
      _
    $region31: #{forward.1} parent=1 // pred_check_branch
      %4135 = sbr.rel (0) target = $region33
    $region32: #{forward.1} parent=1 // pred_region
      %4136 = dma.done [#allocation3], 128
    $region33: #{forward.1} parent=1 // pred_fallthru
      _
    %4137 = vsyncpa [#allocation3], 1

</llo_original>
